<compile_context>
chip_gen: v6e
topology: v6e:2x2x1
jax: 0.10.0
libtpu: 0.0.40
codegen_flags: <defaults>
</compile_context>

<pallas_src>
import functools

import jax
import jax.numpy as jnp
from jax.experimental import pallas as pl
from jax.experimental.pallas import tpu as pltpu

_LN_EPS = 1e-5  # nn.LayerNorm default
_VMEM_LIMIT_CACHE = [None]


def _pick_vmem_limit():
    """Generation-aware scoped-VMEM limit (bytes), with headroom."""
    if _VMEM_LIMIT_CACHE[0] is None:
        try:
            cap = int(pltpu.get_tpu_info().vmem_capacity_bytes)
        except Exception:
            cap = 64 * 1024 * 1024  # conservative: v7x per-core VMEM
        # Leave ~16 MiB for compiler internal scratch / double buffers,
        # and never request more than ~100 MiB even on 128 MiB parts.
        _VMEM_LIMIT_CACHE[0] = int(
            min(max(cap - 16 * 1024 * 1024, 32 * 1024 * 1024),
                100 * 1024 * 1024))
    return _VMEM_LIMIT_CACHE[0]


def _layernorm_f32(x, g, b):
    mu = jnp.mean(x, axis=-1, keepdims=True)
    xc = x - mu
    var = jnp.mean(xc * xc, axis=-1, keepdims=True)
    return xc * jax.lax.rsqrt(var + _LN_EPS) * g + b


# ----------------------------------------------------------------------------
# Attention block:  out[b, qtile] = x[b, qtile] + Wo @ MHA(LayerNorm(x[b])) + bo
# ----------------------------------------------------------------------------
def _attn_block_kernel(xq_ref, xf_ref, g_ref, be_ref, wq_ref, wkv_ref,
                       wo_ref, bo_ref, o_ref, *, heads, dim_head, mxu_dtype,
                       approx_recip):
    inner = heads * dim_head

    x_q = xq_ref[0].astype(jnp.float32)                                # (TQ, D)
    x_f = xf_ref[0].astype(jnp.float32)                                # (N,  D)
    g = g_ref[...].astype(jnp.float32)
    b = be_ref[...].astype(jnp.float32)

    xn_q = _layernorm_f32(x_q, g, b).astype(mxu_dtype)                 # (TQ, D)
    xn_f = _layernorm_f32(x_f, g, b).astype(mxu_dtype)                 # (N,  D)

    # Fused lane-dense projection GEMMs.  The softmax scale is pre-folded into
    # wq (prepare_params), so no per-element scale of the score matrix is
    # needed.  Results are emitted directly in the MXU dtype (f32 internal
    # accumulation, rounded on output).
    q_all = jnp.dot(xn_q, wq_ref[...],
                    preferred_element_type=mxu_dtype)                  # (TQ, inner)
    kv_all = jnp.dot(xn_f, wkv_ref[...],
                     preferred_element_type=mxu_dtype)                 # (N, 2*inner)

    o_heads = []
    for h in range(heads):
        c0 = h * dim_head
        q_h = q_all[:, c0:c0 + dim_head]                               # (TQ, dh)
        k_h = kv_all[:, c0:c0 + dim_head]                              # (N,  dh)
        v_h = kv_all[:, inner + c0:inner + c0 + dim_head]              # (N,  dh)

        # scores = q @ k^T   (contract on dim_head, no explicit transpose)
        s = jax.lax.dot_general(
            q_h, k_h, (((1,), (1,)), ((), ())),
            preferred_element_type=jnp.float32)                        # (TQ, N)
        s = s - jnp.max(s, axis=-1, keepdims=True)
        p = jnp.exp(s)
        l = jnp.sum(p, axis=-1, keepdims=True)                         # (TQ, 1)

        # Deferred softmax normalization: normalize the (TQ, dh) PV result
        # instead of the (TQ, N) probability matrix.
        o_h = jnp.dot(p.astype(mxu_dtype), v_h,
                      preferred_element_type=jnp.float32)              # (TQ, dh)
        o_h = o_h * pl.reciprocal(l, approx=approx_recip)
        o_heads.append(o_h.astype(mxu_dtype))

    o_cat = jnp.concatenate(o_heads, axis=-1)                          # (TQ, inner)
    proj = jnp.dot(o_cat, wo_ref[...],
                   preferred_element_type=jnp.float32)                 # (TQ, D)
    o_ref[0] = (x_q + proj + bo_ref[...].astype(jnp.float32)).astype(o_ref.dtype)


def attention_block(x, ln_g, ln_b, wq_f, wkv_f, wo_f, bo, *, heads, dim_head,
                    mxu_dtype=jnp.bfloat16, tq=128, vmem_limit_bytes=None):
    """x: (B, N, D). wq_f: (D, inner) (scale folded), wkv_f: (D, 2*inner),
    wo_f: (inner, D).  LN params / bias already shaped (1, D), f32."""
    B, N, D = x.shape
    inner = heads * dim_head
    if N % tq != 0:
        tq = N
    n_q = N // tq
    if vmem_limit_bytes is None:
        vmem_limit_bytes = _pick_vmem_limit()

    approx_recip = jnp.dtype(mxu_dtype) != jnp.dtype(jnp.float32)
    kernel = functools.partial(_attn_block_kernel, heads=heads,
                               dim_head=dim_head, mxu_dtype=mxu_dtype,
                               approx_recip=approx_recip)

    wbytes = (D * 3 * inner + inner * D) * jnp.dtype(mxu_dtype).itemsize
    cost = pl.CostEstimate(
        flops=(2 * B * N * D * inner                       # Q projection
               + 2 * B * n_q * N * D * 2 * inner           # K/V (per q-tile)
               + 4 * B * heads * N * N * dim_head          # QK^T + PV
               + 2 * B * N * inner * D),                   # out projection
        transcendentals=B * heads * N * N,
        bytes_accessed=2 * B * N * D * x.dtype.itemsize + wbytes)

    return pl.pallas_call(
        kernel,
        out_shape=jax.ShapeDtypeStruct((B, N, D), x.dtype),
        grid_spec=pl.GridSpec(
            grid=(B, n_q),
            in_specs=[
                pl.BlockSpec((1, tq, D), lambda b, q: (b, q, 0)),        # x (q-tile rows)
                pl.BlockSpec((1, N, D), lambda b, q: (b, 0, 0)),         # x (full, for K/V)
                pl.BlockSpec((1, D), lambda b, q: (0, 0)),               # LN gamma
                pl.BlockSpec((1, D), lambda b, q: (0, 0)),               # LN beta
                pl.BlockSpec((D, inner), lambda b, q: (0, 0)),           # Wq (fused, scaled)
                pl.BlockSpec((D, 2 * inner), lambda b, q: (0, 0)),       # Wkv (fused)
                pl.BlockSpec((inner, D), lambda b, q: (0, 0)),           # Wo (fused)
                pl.BlockSpec((1, D), lambda b, q: (0, 0)),               # bo
            ],
            out_specs=pl.BlockSpec((1, tq, D), lambda b, q: (b, q, 0)),
        ),
        compiler_params=pltpu.CompilerParams(
            dimension_semantics=("parallel", "parallel"),
            vmem_limit_bytes=vmem_limit_bytes),
        cost_estimate=cost,
    )(x, x, ln_g, ln_b, wq_f, wkv_f, wo_f, bo)


# ----------------------------------------------------------------------------
# MLP block:  out = x + W2 @ GELU(W1 @ LayerNorm(x) + b1) + b2
# ----------------------------------------------------------------------------
def _mlp_block_kernel(x_ref, g_ref, be_ref, w1_ref, b1_ref, w2_ref, b2_ref,
                      o_ref, *, mxu_dtype):
    # Every row (token) is independent, so a padded final token tile is benign:
    # out-of-bounds rows are never stored.
    x = x_ref[...].astype(jnp.float32)                                 # (TM, D)
    xn = _layernorm_f32(x, g_ref[...].astype(jnp.float32),
                        be_ref[...].astype(jnp.float32))
    h = jnp.dot(xn.astype(mxu_dtype), w1_ref[...],
                preferred_element_type=jnp.float32)
    h = h + b1_ref[...].astype(jnp.float32)
    h = jax.nn.gelu(h, approximate=False)        # exact erf GELU == nn.GELU()
    # Dropout(p=0.0) is the identity.
    y = jnp.dot(h.astype(mxu_dtype), w2_ref[...],
                preferred_element_type=jnp.float32)
    y = y + b2_ref[...].astype(jnp.float32)
    o_ref[...] = (x + y).astype(o_ref.dtype)     # residual


def mlp_block(x, ln_g, ln_b, w1, b1, w2, b2, *, mxu_dtype=jnp.bfloat16,
              tm=256, vmem_limit_bytes=None):
    """x: (..., D). Weights already in MXU dtype; LN params / biases f32,
    shaped (1, ...)."""
    orig_shape = x.shape
    D = orig_shape[-1]
    H = w1.shape[1]
    x2 = x.reshape(-1, D)
    n_tok = x2.shape[0]
    tm = min(tm, n_tok)                      # token tile (multiple of 8, or full)
    grid = (pl.cdiv(n_tok, tm),)
    if vmem_limit_bytes is None:
        vmem_limit_bytes = _pick_vmem_limit()

    kernel = functools.partial(_mlp_block_kernel, mxu_dtype=mxu_dtype)
    cost = pl.CostEstimate(
        flops=4 * n_tok * D * H,
        transcendentals=n_tok * H,
        bytes_accessed=2 * n_tok * D * x.dtype.itemsize
        + 2 * D * H * jnp.dtype(mxu_dtype).itemsize)

    out2 = pl.pallas_call(
        kernel,
        out_shape=jax.ShapeDtypeStruct((n_tok, D), x.dtype),
        grid_spec=pl.GridSpec(
            grid=grid,
            in_specs=[
                pl.BlockSpec((tm, D), lambda i: (i, 0)),   # activations (streamed)
                pl.BlockSpec((1, D), lambda i: (0, 0)),    # LN gamma (resident)
                pl.BlockSpec((1, D), lambda i: (0, 0)),    # LN beta
                pl.BlockSpec((D, H), lambda i: (0, 0)),    # W1 (resident)
                pl.BlockSpec((1, H), lambda i: (0, 0)),    # b1
                pl.BlockSpec((H, D), lambda i: (0, 0)),    # W2 (resident)
                pl.BlockSpec((1, D), lambda i: (0, 0)),    # b2
            ],
            out_specs=pl.BlockSpec((tm, D), lambda i: (i, 0)),
        ),
        compiler_params=pltpu.CompilerParams(
            dimension_semantics=("parallel",),
            vmem_limit_bytes=vmem_limit_bytes),
        cost_estimate=cost,
    )(x2, ln_g, ln_b, w1, b1, w2, b2)
    return out2.reshape(orig_shape)


# ----------------------------------------------------------------------------
# Parameter preparation (once per model, NOT per forward call)
# ----------------------------------------------------------------------------
def prepare_params(layer_params, *, mxu_dtype=jnp.bfloat16):
    """Fuses / re-lays out the per-layer weights for the kernels:
      - wq -> (D, inner) with the softmax scale folded in, cast to mxu_dtype
      - wk, wv -> single (D, 2*inner) weight, cast to mxu_dtype
      - wo -> (inner, D), cast to mxu_dtype
      - W1/W2 cast to mxu_dtype; LN params / biases kept f32, shaped (1, ...)
    Head h occupies columns [h*dim_head, (h+1)*dim_head) of each fused chunk.
    """
    prepared = []
    for p in layer_params:
        heads, D, dh = p["wq"].shape
        inner = heads * dh
        H = p["w1"].shape[1]
        scale = dh ** -0.5
        wq_f = (jnp.transpose(p["wq"], (1, 0, 2)).reshape(D, inner)
                * jnp.float32(scale))
        wk_f = jnp.transpose(p["wk"], (1, 0, 2)).reshape(D, inner)
        wv_f = jnp.transpose(p["wv"], (1, 0, 2)).reshape(D, inner)
        wkv_f = jnp.concatenate([wk_f, wv_f], axis=-1)
        wo_f = p["wo"].reshape(inner, D)
        prepared.append(dict(
            ln1_g=p["ln1_g"].astype(jnp.float32).reshape(1, D),
            ln1_b=p["ln1_b"].astype(jnp.float32).reshape(1, D),
            wq=wq_f.astype(mxu_dtype),
            wkv=wkv_f.astype(mxu_dtype),
            wo=wo_f.astype(mxu_dtype),
            bo=p["bo"].astype(jnp.float32).reshape(1, D),
            ln2_g=p["ln2_g"].astype(jnp.float32).reshape(1, D),
            ln2_b=p["ln2_b"].astype(jnp.float32).reshape(1, D),
            w1=p["w1"].astype(mxu_dtype),
            b1=p["b1"].astype(jnp.float32).reshape(1, H),
            w2=p["w2"].astype(mxu_dtype),
            b2=p["b2"].astype(jnp.float32).reshape(1, D),
        ))
    return prepared


# ----------------------------------------------------------------------------
# Full AttentionLayer forward (depth blocks)
# ----------------------------------------------------------------------------
def attention_layer_forward(x, prepared_params, *, heads, dim_head,
                            mxu_dtype=jnp.bfloat16, tq=128, mlp_tile=256):
    for p in prepared_params:
        x = attention_block(x, p["ln1_g"], p["ln1_b"], p["wq"], p["wkv"],
                            p["wo"], p["bo"], heads=heads, dim_head=dim_head,
                            mxu_dtype=mxu_dtype, tq=tq)
        x = mlp_block(x, p["ln2_g"], p["ln2_b"], p["w1"], p["b1"], p["w2"],
                      p["b2"], mxu_dtype=mxu_dtype, tm=mlp_tile)
    return x


def init_attention_layer_params(key, dim, depth, heads, dim_head, mlp_dim,
                                dtype=jnp.float32):
    """Mirrors the PyTorch module's parameters (pre-transposed Linear weights).

      wq[h, :, d] == to_qkv.weight[h*dim_head + d, :]  (similarly k, v)
      wo[h, d, :] == to_out.weight[:, h*dim_head + d]
    If heads == 1 and dim_head == dim, to_out is nn.Identity(); represented by
    wo = I, bo = 0 (numerically identical).
    """
    inner = heads * dim_head
    project_out = not (heads == 1 and dim_head == dim)
    layers = []
    for _ in range(depth):
        key, *ks = jax.random.split(key, 10)
        bq = 1.0 / (dim ** 0.5)
        bi = 1.0 / (inner ** 0.5)
        bh = 1.0 / (mlp_dim ** 0.5)
        if project_out:
            wo = jax.random.uniform(ks[3], (heads, dim_head, dim), dtype, -bi, bi)
            bo = jax.random.uniform(ks[4], (dim,), dtype, -bi, bi)
        else:
            wo = jnp.eye(dim, dtype=dtype).reshape(1, dim, dim)
            bo = jnp.zeros((dim,), dtype)
        layers.append(dict(
            ln1_g=jnp.ones((dim,), dtype), ln1_b=jnp.zeros((dim,), dtype),
            wq=jax.random.uniform(ks[0], (heads, dim, dim_head), dtype, -bq, bq),
            wk=jax.random.uniform(ks[1], (heads, dim, dim_head), dtype, -bq, bq),
            wv=jax.random.uniform(ks[2], (heads, dim, dim_head), dtype, -bq, bq),
            wo=wo, bo=bo,
            ln2_g=jnp.ones((dim,), dtype), ln2_b=jnp.zeros((dim,), dtype),
            w1=jax.random.uniform(ks[5], (dim, mlp_dim), dtype, -bq, bq),
            b1=jax.random.uniform(ks[6], (mlp_dim,), dtype, -bq, bq),
            w2=jax.random.uniform(ks[7], (mlp_dim, dim), dtype, -bh, bh),
            b2=jax.random.uniform(ks[8], (dim,), dtype, -bh, bh),
        ))
    return layers


def reference_forward(x, layer_params, *, heads, dim_head):
    """Pure-JAX reference matching the PyTorch module (dropout p=0)."""
    scale = dim_head ** -0.5
    for p in layer_params:
        xn = _layernorm_f32(x, p["ln1_g"], p["ln1_b"])
        q = jnp.einsum("bnd,hde->bhne", xn, p["wq"])
        k = jnp.einsum("bnd,hde->bhne", xn, p["wk"])
        v = jnp.einsum("bnd,hde->bhne", xn, p["wv"])
        s = jnp.einsum("bhqe,bhke->bhqk", q, k) * scale
        a = jax.nn.softmax(s, axis=-1)
        o = jnp.einsum("bhqk,bhke->bhqe", a, v)
        x = jnp.einsum("bhne,hed->bnd", o, p["wo"]) + p["bo"] + x
        xn = _layernorm_f32(x, p["ln2_g"], p["ln2_b"])
        hh = jax.nn.gelu(xn @ p["w1"] + p["b1"], approximate=False)
        x = hh @ p["w2"] + p["b2"] + x
    return x


if __name__ == "__main__":
    key = jax.random.PRNGKey(0)
    kx, kp = jax.random.split(key)

    # Small but lane-dense shapes (dim / mlp_dim are multiples of 128).
    batch, seq, dim = 2, 128, 128
    depth, heads, dim_head, mlp_dim = 2, 4, 64, 256

    x = jax.random.normal(kx, (batch, seq, dim), jnp.float32)
    params = init_attention_layer_params(kp, dim, depth, heads, dim_head,
                                         mlp_dim)

    with jax.default_matmul_precision("float32"):
        ref = reference_forward(x, params, heads=heads, dim_head=dim_head)

    # Exact-precision path (f32 MXU operands) -> tight correctness check for
    # the restructured (fused-QKV / fused-out-proj / deferred-softmax) kernel.
    # tq=64 -> attention grid (2, 2); mlp_tile=64 -> MLP grid of 4 steps.
    prep_exact = prepare_params(params, mxu_dtype=jnp.float32)
    out_exact = jax.block_until_ready(
        attention_layer_forward(x, prep_exact, heads=heads, dim_head=dim_head,
                                mxu_dtype=jnp.float32, tq=64, mlp_tile=64))
    assert out_exact.shape == x.shape
    assert jnp.allclose(out_exact, ref, atol=1e-3, rtol=1e-3), float(
        jnp.max(jnp.abs(out_exact - ref)))

    # Fast path: bf16 MXU operands / weights (cast once in prepare_params)
    # with f32 accumulation; looser tolerance vs the f32 reference.
    prep_fast = prepare_params(params, mxu_dtype=jnp.bfloat16)
    out_fast = jax.block_until_ready(
        attention_layer_forward(x, prep_fast, heads=heads, dim_head=dim_head,
                                mxu_dtype=jnp.bfloat16, tq=64, mlp_tile=64))
    assert jnp.allclose(out_fast, ref, atol=1e-1, rtol=1e-1), float(
        jnp.max(jnp.abs(out_fast - ref)))

    print("KERNEL_OK")
</pallas_src>

<mosaic_0001>
module attributes {stable_mosaic.version = 11 : i64} {
  func.func @_attn_block_kernel(%arg0: i32, %arg1: i32, %arg2: memref<1x64x128xf32, #tpu.memory_space<vmem>>, %arg3: memref<1x128x128xf32, #tpu.memory_space<vmem>>, %arg4: memref<1x128xf32, #tpu.memory_space<vmem>>, %arg5: memref<1x128xf32, #tpu.memory_space<vmem>>, %arg6: memref<128x256xf32, #tpu.memory_space<vmem>>, %arg7: memref<128x512xf32, #tpu.memory_space<vmem>>, %arg8: memref<256x128xf32, #tpu.memory_space<vmem>>, %arg9: memref<1x128xf32, #tpu.memory_space<vmem>>, %arg10: memref<1x64x128xf32, #tpu.memory_space<vmem>>) attributes {dimension_semantics = [#tpu.dimension_semantics<parallel>, #tpu.dimension_semantics<parallel>], iteration_bounds = array<i64: 2, 2>, scalar_prefetch = 0 : i64, scratch_operands = 0 : i64, tpu.core_type = #tpu.core_type<tc>, window_params = [{transform_indices = @transform_0, window_bounds = array<i64: 1, 64, 128>}, {transform_indices = @transform_1, window_bounds = array<i64: 1, 128, 128>}, {pipeline_mode = #tpu.pipeline_mode<synchronous>, transform_indices = @transform_2, window_bounds = array<i64: 1, 128>}, {pipeline_mode = #tpu.pipeline_mode<synchronous>, transform_indices = @transform_3, window_bounds = array<i64: 1, 128>}, {pipeline_mode = #tpu.pipeline_mode<synchronous>, transform_indices = @transform_4, window_bounds = array<i64: 128, 256>}, {pipeline_mode = #tpu.pipeline_mode<synchronous>, transform_indices = @transform_5, window_bounds = array<i64: 128, 512>}, {pipeline_mode = #tpu.pipeline_mode<synchronous>, transform_indices = @transform_6, window_bounds = array<i64: 256, 128>}, {pipeline_mode = #tpu.pipeline_mode<synchronous>, transform_indices = @transform_7, window_bounds = array<i64: 1, 128>}, {transform_indices = @transform_8, window_bounds = array<i64: 1, 64, 128>}]} {
    %c0 = arith.constant 0 : index
    %c0_0 = arith.constant 0 : index
    %c0_1 = arith.constant 0 : index
    %0 = vector.load %arg2[%c0, %c0_0, %c0_1] : memref<1x64x128xf32, #tpu.memory_space<vmem>>, vector<1x64x128xf32>
    %1 = vector.shape_cast %0 : vector<1x64x128xf32> to vector<64x128xf32>
    %c0_2 = arith.constant 0 : index
    %c0_3 = arith.constant 0 : index
    %c0_4 = arith.constant 0 : index
    %2 = vector.load %arg3[%c0_2, %c0_3, %c0_4] : memref<1x128x128xf32, #tpu.memory_space<vmem>>, vector<1x128x128xf32>
    %3 = vector.shape_cast %2 : vector<1x128x128xf32> to vector<128x128xf32>
    %c0_5 = arith.constant 0 : index
    %c0_6 = arith.constant 0 : index
    %4 = vector.load %arg4[%c0_5, %c0_6] : memref<1x128xf32, #tpu.memory_space<vmem>>, vector<1x128xf32>
    %c0_7 = arith.constant 0 : index
    %c0_8 = arith.constant 0 : index
    %5 = vector.load %arg5[%c0_7, %c0_8] : memref<1x128xf32, #tpu.memory_space<vmem>>, vector<1x128xf32>
    %cst = arith.constant dense<0.000000e+00> : vector<64xf32>
    %6 = vector.multi_reduction <add>, %1, %cst [1] : vector<64x128xf32> to vector<64xf32>
    %7 = vector.shape_cast %6 : vector<64xf32> to vector<64x1xf32>
    %cst_9 = arith.constant 1.280000e+02 : f32
    %8 = vector.broadcast %cst_9 : f32 to vector<64x1xf32>
    %9 = arith.divf %7, %8 : vector<64x1xf32>
    %10 = vector.broadcast %9 : vector<64x1xf32> to vector<64x128xf32>
    %11 = arith.subf %1, %10 : vector<64x128xf32>
    %12 = arith.mulf %11, %11 : vector<64x128xf32>
    %cst_10 = arith.constant dense<0.000000e+00> : vector<64xf32>
    %13 = vector.multi_reduction <add>, %12, %cst_10 [1] : vector<64x128xf32> to vector<64xf32>
    %14 = vector.shape_cast %13 : vector<64xf32> to vector<64x1xf32>
    %cst_11 = arith.constant 1.280000e+02 : f32
    %15 = vector.broadcast %cst_11 : f32 to vector<64x1xf32>
    %16 = arith.divf %14, %15 : vector<64x1xf32>
    %cst_12 = arith.constant 9.99999974E-6 : f32
    %17 = vector.broadcast %cst_12 : f32 to vector<64x1xf32>
    %18 = arith.addf %16, %17 : vector<64x1xf32>
    %19 = math.rsqrt %18 : vector<64x1xf32>
    %20 = vector.broadcast %19 : vector<64x1xf32> to vector<64x128xf32>
    %21 = arith.mulf %11, %20 : vector<64x128xf32>
    %22 = vector.broadcast %4 : vector<1x128xf32> to vector<64x128xf32>
    %23 = arith.mulf %21, %22 : vector<64x128xf32>
    %24 = vector.broadcast %5 : vector<1x128xf32> to vector<64x128xf32>
    %25 = arith.addf %23, %24 : vector<64x128xf32>
    %cst_13 = arith.constant dense<0.000000e+00> : vector<128xf32>
    %26 = vector.multi_reduction <add>, %3, %cst_13 [1] : vector<128x128xf32> to vector<128xf32>
    %27 = vector.shape_cast %26 : vector<128xf32> to vector<128x1xf32>
    %cst_14 = arith.constant 1.280000e+02 : f32
    %28 = vector.broadcast %cst_14 : f32 to vector<128x1xf32>
    %29 = arith.divf %27, %28 : vector<128x1xf32>
    %30 = vector.broadcast %29 : vector<128x1xf32> to vector<128x128xf32>
    %31 = arith.subf %3, %30 : vector<128x128xf32>
    %32 = arith.mulf %31, %31 : vector<128x128xf32>
    %cst_15 = arith.constant dense<0.000000e+00> : vector<128xf32>
    %33 = vector.multi_reduction <add>, %32, %cst_15 [1] : vector<128x128xf32> to vector<128xf32>
    %34 = vector.shape_cast %33 : vector<128xf32> to vector<128x1xf32>
    %cst_16 = arith.constant 1.280000e+02 : f32
    %35 = vector.broadcast %cst_16 : f32 to vector<128x1xf32>
    %36 = arith.divf %34, %35 : vector<128x1xf32>
    %cst_17 = arith.constant 9.99999974E-6 : f32
    %37 = vector.broadcast %cst_17 : f32 to vector<128x1xf32>
    %38 = arith.addf %36, %37 : vector<128x1xf32>
    %39 = math.rsqrt %38 : vector<128x1xf32>
    %40 = vector.broadcast %39 : vector<128x1xf32> to vector<128x128xf32>
    %41 = arith.mulf %31, %40 : vector<128x128xf32>
    %42 = vector.broadcast %4 : vector<1x128xf32> to vector<128x128xf32>
    %43 = arith.mulf %41, %42 : vector<128x128xf32>
    %44 = vector.broadcast %5 : vector<1x128xf32> to vector<128x128xf32>
    %45 = arith.addf %43, %44 : vector<128x128xf32>
    %c0_18 = arith.constant 0 : index
    %c0_19 = arith.constant 0 : index
    %46 = vector.load %arg6[%c0_18, %c0_19] : memref<128x256xf32, #tpu.memory_space<vmem>>, vector<128x256xf32>
    %cst_20 = arith.constant dense<0.000000e+00> : vector<64x256xf32>
    %47 = tpu.matmul %25, %46, %cst_20 {dimension_numbers = #tpu.dot_dimension_numbers<[1], [0], [0], [1], [0, 0, 1, 1], [], []>} : vector<64x128xf32>, vector<128x256xf32>, vector<64x256xf32> -> vector<64x256xf32>
    %c0_21 = arith.constant 0 : index
    %c0_22 = arith.constant 0 : index
    %48 = vector.load %arg7[%c0_21, %c0_22] : memref<128x512xf32, #tpu.memory_space<vmem>>, vector<128x512xf32>
    %cst_23 = arith.constant dense<0.000000e+00> : vector<128x512xf32>
    %49 = tpu.matmul %45, %48, %cst_23 {dimension_numbers = #tpu.dot_dimension_numbers<[1], [0], [0], [1], [0, 0, 1, 1], [], []>} : vector<128x128xf32>, vector<128x512xf32>, vector<128x512xf32> -> vector<128x512xf32>
    %50 = vector.extract_strided_slice %47 {offsets = [0, 0], sizes = [64, 64], strides = [1, 1]} : vector<64x256xf32> to vector<64x64xf32>
    %51 = vector.extract_strided_slice %49 {offsets = [0, 0], sizes = [128, 64], strides = [1, 1]} : vector<128x512xf32> to vector<128x64xf32>
    %52 = vector.extract_strided_slice %49 {offsets = [0, 256], sizes = [128, 64], strides = [1, 1]} : vector<128x512xf32> to vector<128x64xf32>
    %cst_24 = arith.constant dense<0.000000e+00> : vector<64x128xf32>
    %53 = tpu.matmul %50, %51, %cst_24 {dimension_numbers = #tpu.dot_dimension_numbers<[1], [1], [0], [0], [0, 0, 1, 0], [], []>} : vector<64x64xf32>, vector<128x64xf32>, vector<64x128xf32> -> vector<64x128xf32>
    %cst_25 = arith.constant dense<0xFF800000> : vector<64xf32>
    %54 = vector.multi_reduction <maximumf>, %53, %cst_25 [1] : vector<64x128xf32> to vector<64xf32>
    %55 = vector.shape_cast %54 : vector<64xf32> to vector<64x1xf32>
    %56 = vector.broadcast %55 : vector<64x1xf32> to vector<64x128xf32>
    %57 = arith.subf %53, %56 : vector<64x128xf32>
    %58 = math.exp %57 : vector<64x128xf32>
    %cst_26 = arith.constant dense<0.000000e+00> : vector<64xf32>
    %59 = vector.multi_reduction <add>, %58, %cst_26 [1] : vector<64x128xf32> to vector<64xf32>
    %60 = vector.shape_cast %59 : vector<64xf32> to vector<64x1xf32>
    %cst_27 = arith.constant dense<0.000000e+00> : vector<64x64xf32>
    %61 = tpu.matmul %58, %52, %cst_27 {dimension_numbers = #tpu.dot_dimension_numbers<[1], [0], [0], [1], [0, 0, 1, 1], [], []>} : vector<64x128xf32>, vector<128x64xf32>, vector<64x64xf32> -> vector<64x64xf32>
    %62 = tpu.reciprocal %60 : vector<64x1xf32> -> vector<64x1xf32>
    %63 = vector.broadcast %62 : vector<64x1xf32> to vector<64x64xf32>
    %64 = arith.mulf %61, %63 : vector<64x64xf32>
    %65 = vector.extract_strided_slice %47 {offsets = [0, 64], sizes = [64, 64], strides = [1, 1]} : vector<64x256xf32> to vector<64x64xf32>
    %66 = vector.extract_strided_slice %49 {offsets = [0, 64], sizes = [128, 64], strides = [1, 1]} : vector<128x512xf32> to vector<128x64xf32>
    %67 = vector.extract_strided_slice %49 {offsets = [0, 320], sizes = [128, 64], strides = [1, 1]} : vector<128x512xf32> to vector<128x64xf32>
    %cst_28 = arith.constant dense<0.000000e+00> : vector<64x128xf32>
    %68 = tpu.matmul %65, %66, %cst_28 {dimension_numbers = #tpu.dot_dimension_numbers<[1], [1], [0], [0], [0, 0, 1, 0], [], []>} : vector<64x64xf32>, vector<128x64xf32>, vector<64x128xf32> -> vector<64x128xf32>
    %cst_29 = arith.constant dense<0xFF800000> : vector<64xf32>
    %69 = vector.multi_reduction <maximumf>, %68, %cst_29 [1] : vector<64x128xf32> to vector<64xf32>
    %70 = vector.shape_cast %69 : vector<64xf32> to vector<64x1xf32>
    %71 = vector.broadcast %70 : vector<64x1xf32> to vector<64x128xf32>
    %72 = arith.subf %68, %71 : vector<64x128xf32>
    %73 = math.exp %72 : vector<64x128xf32>
    %cst_30 = arith.constant dense<0.000000e+00> : vector<64xf32>
    %74 = vector.multi_reduction <add>, %73, %cst_30 [1] : vector<64x128xf32> to vector<64xf32>
    %75 = vector.shape_cast %74 : vector<64xf32> to vector<64x1xf32>
    %cst_31 = arith.constant dense<0.000000e+00> : vector<64x64xf32>
    %76 = tpu.matmul %73, %67, %cst_31 {dimension_numbers = #tpu.dot_dimension_numbers<[1], [0], [0], [1], [0, 0, 1, 1], [], []>} : vector<64x128xf32>, vector<128x64xf32>, vector<64x64xf32> -> vector<64x64xf32>
    %77 = tpu.reciprocal %75 : vector<64x1xf32> -> vector<64x1xf32>
    %78 = vector.broadcast %77 : vector<64x1xf32> to vector<64x64xf32>
    %79 = arith.mulf %76, %78 : vector<64x64xf32>
    %80 = vector.extract_strided_slice %47 {offsets = [0, 128], sizes = [64, 64], strides = [1, 1]} : vector<64x256xf32> to vector<64x64xf32>
    %81 = vector.extract_strided_slice %49 {offsets = [0, 128], sizes = [128, 64], strides = [1, 1]} : vector<128x512xf32> to vector<128x64xf32>
    %82 = vector.extract_strided_slice %49 {offsets = [0, 384], sizes = [128, 64], strides = [1, 1]} : vector<128x512xf32> to vector<128x64xf32>
    %cst_32 = arith.constant dense<0.000000e+00> : vector<64x128xf32>
    %83 = tpu.matmul %80, %81, %cst_32 {dimension_numbers = #tpu.dot_dimension_numbers<[1], [1], [0], [0], [0, 0, 1, 0], [], []>} : vector<64x64xf32>, vector<128x64xf32>, vector<64x128xf32> -> vector<64x128xf32>
    %cst_33 = arith.constant dense<0xFF800000> : vector<64xf32>
    %84 = vector.multi_reduction <maximumf>, %83, %cst_33 [1] : vector<64x128xf32> to vector<64xf32>
    %85 = vector.shape_cast %84 : vector<64xf32> to vector<64x1xf32>
    %86 = vector.broadcast %85 : vector<64x1xf32> to vector<64x128xf32>
    %87 = arith.subf %83, %86 : vector<64x128xf32>
    %88 = math.exp %87 : vector<64x128xf32>
    %cst_34 = arith.constant dense<0.000000e+00> : vector<64xf32>
    %89 = vector.multi_reduction <add>, %88, %cst_34 [1] : vector<64x128xf32> to vector<64xf32>
    %90 = vector.shape_cast %89 : vector<64xf32> to vector<64x1xf32>
    %cst_35 = arith.constant dense<0.000000e+00> : vector<64x64xf32>
    %91 = tpu.matmul %88, %82, %cst_35 {dimension_numbers = #tpu.dot_dimension_numbers<[1], [0], [0], [1], [0, 0, 1, 1], [], []>} : vector<64x128xf32>, vector<128x64xf32>, vector<64x64xf32> -> vector<64x64xf32>
    %92 = tpu.reciprocal %90 : vector<64x1xf32> -> vector<64x1xf32>
    %93 = vector.broadcast %92 : vector<64x1xf32> to vector<64x64xf32>
    %94 = arith.mulf %91, %93 : vector<64x64xf32>
    %95 = vector.extract_strided_slice %47 {offsets = [0, 192], sizes = [64, 64], strides = [1, 1]} : vector<64x256xf32> to vector<64x64xf32>
    %96 = vector.extract_strided_slice %49 {offsets = [0, 192], sizes = [128, 64], strides = [1, 1]} : vector<128x512xf32> to vector<128x64xf32>
    %97 = vector.extract_strided_slice %49 {offsets = [0, 448], sizes = [128, 64], strides = [1, 1]} : vector<128x512xf32> to vector<128x64xf32>
    %cst_36 = arith.constant dense<0.000000e+00> : vector<64x128xf32>
    %98 = tpu.matmul %95, %96, %cst_36 {dimension_numbers = #tpu.dot_dimension_numbers<[1], [1], [0], [0], [0, 0, 1, 0], [], []>} : vector<64x64xf32>, vector<128x64xf32>, vector<64x128xf32> -> vector<64x128xf32>
    %cst_37 = arith.constant dense<0xFF800000> : vector<64xf32>
    %99 = vector.multi_reduction <maximumf>, %98, %cst_37 [1] : vector<64x128xf32> to vector<64xf32>
    %100 = vector.shape_cast %99 : vector<64xf32> to vector<64x1xf32>
    %101 = vector.broadcast %100 : vector<64x1xf32> to vector<64x128xf32>
    %102 = arith.subf %98, %101 : vector<64x128xf32>
    %103 = math.exp %102 : vector<64x128xf32>
    %cst_38 = arith.constant dense<0.000000e+00> : vector<64xf32>
    %104 = vector.multi_reduction <add>, %103, %cst_38 [1] : vector<64x128xf32> to vector<64xf32>
    %105 = vector.shape_cast %104 : vector<64xf32> to vector<64x1xf32>
    %cst_39 = arith.constant dense<0.000000e+00> : vector<64x64xf32>
    %106 = tpu.matmul %103, %97, %cst_39 {dimension_numbers = #tpu.dot_dimension_numbers<[1], [0], [0], [1], [0, 0, 1, 1], [], []>} : vector<64x128xf32>, vector<128x64xf32>, vector<64x64xf32> -> vector<64x64xf32>
    %107 = tpu.reciprocal %105 : vector<64x1xf32> -> vector<64x1xf32>
    %108 = vector.broadcast %107 : vector<64x1xf32> to vector<64x64xf32>
    %109 = arith.mulf %106, %108 : vector<64x64xf32>
    %110 = tpu.concatenate %64, %79, %94, %109 in 1 : vector<64x64xf32>, vector<64x64xf32>, vector<64x64xf32>, vector<64x64xf32> -> vector<64x256xf32>
    %c0_40 = arith.constant 0 : index
    %c0_41 = arith.constant 0 : index
    %111 = vector.load %arg8[%c0_40, %c0_41] : memref<256x128xf32, #tpu.memory_space<vmem>>, vector<256x128xf32>
    %cst_42 = arith.constant dense<0.000000e+00> : vector<64x128xf32>
    %112 = tpu.matmul %110, %111, %cst_42 {dimension_numbers = #tpu.dot_dimension_numbers<[1], [0], [0], [1], [0, 0, 1, 1], [], []>} : vector<64x256xf32>, vector<256x128xf32>, vector<64x128xf32> -> vector<64x128xf32>
    %113 = arith.addf %1, %112 : vector<64x128xf32>
    %c0_43 = arith.constant 0 : index
    %c0_44 = arith.constant 0 : index
    %114 = vector.load %arg9[%c0_43, %c0_44] : memref<1x128xf32, #tpu.memory_space<vmem>>, vector<1x128xf32>
    %115 = vector.broadcast %114 : vector<1x128xf32> to vector<64x128xf32>
    %116 = arith.addf %113, %115 : vector<64x128xf32>
    %c0_45 = arith.constant 0 : index
    %c0_46 = arith.constant 0 : index
    %c0_47 = arith.constant 0 : index
    %117 = vector.load %arg10[%c0_45, %c0_46, %c0_47] : memref<1x64x128xf32, #tpu.memory_space<vmem>>, vector<1x64x128xf32>
    %118 = vector.shape_cast %117 : vector<1x64x128xf32> to vector<64x128xf32>
    %119 = vector.shape_cast %116 : vector<64x128xf32> to vector<1x64x128xf32>
    tpu.vector_store %arg10[%c0_45, %c0_46, %c0_47], %119 {strides = array<i32>} : memref<1x64x128xf32, #tpu.memory_space<vmem>>, vector<1x64x128xf32>,
    return
  }
  func.func @transform_0(%arg0: i32, %arg1: i32) -> (i32, i32, i32) {
    %c0_i32 = arith.constant 0 : i32
    %c0_i32_0 = arith.constant 0 : i32
    return %arg0, %arg1, %c0_i32 : i32, i32, i32
  }
  func.func @transform_1(%arg0: i32, %arg1: i32) -> (i32, i32, i32) {
    %c0_i32 = arith.constant 0 : i32
    %c0_i32_0 = arith.constant 0 : i32
    %c0_i32_1 = arith.constant 0 : i32
    return %arg0, %c0_i32, %c0_i32_0 : i32, i32, i32
  }
  func.func @transform_2(%arg0: i32, %arg1: i32) -> (i32, i32) {
    %c0_i32 = arith.constant 0 : i32
    %c0_i32_0 = arith.constant 0 : i32
    %c0_i32_1 = arith.constant 0 : i32
    return %c0_i32, %c0_i32_0 : i32, i32
  }
  func.func @transform_3(%arg0: i32, %arg1: i32) -> (i32, i32) {
    %c0_i32 = arith.constant 0 : i32
    %c0_i32_0 = arith.constant 0 : i32
    %c0_i32_1 = arith.constant 0 : i32
    return %c0_i32, %c0_i32_0 : i32, i32
  }
  func.func @transform_4(%arg0: i32, %arg1: i32) -> (i32, i32) {
    %c0_i32 = arith.constant 0 : i32
    %c0_i32_0 = arith.constant 0 : i32
    %c0_i32_1 = arith.constant 0 : i32
    return %c0_i32, %c0_i32_0 : i32, i32
  }
  func.func @transform_5(%arg0: i32, %arg1: i32) -> (i32, i32) {
    %c0_i32 = arith.constant 0 : i32
    %c0_i32_0 = arith.constant 0 : i32
    %c0_i32_1 = arith.constant 0 : i32
    return %c0_i32, %c0_i32_0 : i32, i32
  }
  func.func @transform_6(%arg0: i32, %arg1: i32) -> (i32, i32) {
    %c0_i32 = arith.constant 0 : i32
    %c0_i32_0 = arith.constant 0 : i32
    %c0_i32_1 = arith.constant 0 : i32
    return %c0_i32, %c0_i32_0 : i32, i32
  }
  func.func @transform_7(%arg0: i32, %arg1: i32) -> (i32, i32) {
    %c0_i32 = arith.constant 0 : i32
    %c0_i32_0 = arith.constant 0 : i32
    %c0_i32_1 = arith.constant 0 : i32
    return %c0_i32, %c0_i32_0 : i32, i32
  }
  func.func @transform_8(%arg0: i32, %arg1: i32) -> (i32, i32, i32) {
    %c0_i32 = arith.constant 0 : i32
    %c0_i32_0 = arith.constant 0 : i32
    return %arg0, %arg1, %c0_i32 : i32, i32, i32
  }
}

</mosaic_0001>

<llo_original>
// kernel: tpu_custom_call.1
$region0: #{tpu_custom_call.1}
  #allocation0 [shape = 'u32[]', space=smem, size = 0x4, offset = 0x4, fixed_abs, tag = 'smem constant byte address 0x4 - core index']
  #allocation1 [shape = 'u32[144,128]{1,0:T(1,128)}', space=vmem, size = 0x12000, scoped, tag = 'internal scratch']
  %s0 = inlined_call_operand.hbm [shape: f32[2,128,128], index: 0, kind: input, shape index: {}]
  %s1 = inlined_call_operand.hbm [shape: f32[2,128,128], index: 1, kind: input, shape index: {}]
  %s2 = inlined_call_operand.vmem [shape: f32[1,128], index: 2, kind: input, shape index: {}]
  %s3 = inlined_call_operand.vmem [shape: f32[1,128], index: 3, kind: input, shape index: {}]
  %s4 = inlined_call_operand.hbm [shape: f32[128,256], index: 4, kind: input, shape index: {}]
  %s5 = inlined_call_operand.hbm [shape: f32[128,512], index: 5, kind: input, shape index: {}]
  %s6 = inlined_call_operand.hbm [shape: f32[256,128], index: 6, kind: input, shape index: {}]
  %s7 = inlined_call_operand.vmem [shape: f32[1,128], index: 7, kind: input, shape index: {}]
  %s8 = inlined_call_operand.hbm [shape: f32[2,128,128], index: 8, kind: output, shape index: {}]
  %s9 = sld [smem:[#allocation0]]
  $region85: #{tpu_custom_call.1} parent=0
    _
  %s11 = ssub.s32 1, %s9
  %s12 = scalar_select 0, %s11, %s9
  $region1: #{tpu_custom_call.1} parent=0
    #allocation2 [shape = 'u8[65536]{0}', space=vmem, size = 0x10000, scoped, tag = 'input window, operand 0']
    #allocation3 [shape = 's32[2]{0}', space=sflag, size = 0x8, scoped, tag = 'scoped memory for tpu_custom_call.1']
    #allocation4 [shape = 's32[2]{0}', space=sflag, size = 0x8, scoped, tag = 'scoped memory for tpu_custom_call.1']
    #allocation5 [shape = 'u8[131072]{0}', space=vmem, size = 0x20000, scoped, tag = 'input window, operand 1']
    #allocation6 [shape = 's32[2]{0}', space=sflag, size = 0x8, scoped, tag = 'scoped memory for tpu_custom_call.1']
    #allocation7 [shape = 'u8[131072]{0}', space=vmem, size = 0x20000, scoped, tag = 'input window, operand 4, single buffered']
    #allocation8 [shape = 'u8[262144]{0}', space=vmem, size = 0x40000, scoped, tag = 'input window, operand 5, single buffered']
    #allocation9 [shape = 's32[1]{0}', space=sflag, size = 0x4, scoped, tag = 'scoped memory for tpu_custom_call.1']
    #allocation10 [shape = 'u8[131072]{0}', space=vmem, size = 0x20000, scoped, tag = 'input window, operand 6, single buffered']
    #allocation11 [shape = 'u8[65536]{0}', space=vmem, size = 0x10000, scoped, tag = 'output window, operand 0']
    %13 = vsyncpa [#allocation3], 0
    %s14 = scalar_lea.sflag [#allocation3], 1
    %15 = vsyncpa %s14, 0
    %16 = vsyncpa [#allocation6], 0
    %s17 = scalar_lea.sflag [#allocation6], 1
    %18 = vsyncpa %s17, 0
    %19 = vsyncpa [#allocation9], 0
    %20 = vsyncpa [#allocation4], 0
    %s21 = scalar_lea.sflag [#allocation4], 1
    %22 = vsyncpa %s21, 0
    loop: start=0, step=1, limit=6
    $region2: #{tpu_custom_call.1} parent=1 // loop_pre_header
      _
    $region3: #{tpu_custom_call.1} parent=1 // loop_header
      %s24 = sphi 0, %s28
      %p25 = scmp.ge.s32.totalorder %s24, 6
      %s31 = sphi 0, %s43
      %s32 = sphi 0, %s39
      %s33 = sphi 0, %s31
      %s34 = sphi 0, %s32
      %s35 = sphi 0, %s33
      %s36 = sphi 0, %s34
      %s48 = sphi 0, %s50
      %s51 = sphi 0, %s48
      %s52 = sphi 0, %s51
      %s68 = sphi 0, %s52
      %s74 = sphi 0, %s76
      %s77 = sphi 0, %s74
      %s78 = sphi 0, %s77
      %s94 = sphi 0, %s78
      %s98 = sphi 0, %s98
      %s100 = sphi 0, %s98
      %s101 = sphi 0, %s100
      %s115 = sphi 0, %s101
      %s119 = sphi 0, %s119
      %s121 = sphi 0, %s119
      %s122 = sphi 0, %s121
      %s136 = sphi 0, %s122
      %s140 = sphi 0, %s140
      %s142 = sphi 0, %s140
      %s143 = sphi 0, %s142
      %s157 = sphi 0, %s143
      %s161 = sphi 0, %s161
      %s163 = sphi 0, %s161
      %s164 = sphi 0, %s163
      %s178 = sphi 0, %s164
      %s182 = sphi 0, %s182
      %s184 = sphi 0, %s182
      %s185 = sphi 0, %s184
      %s199 = sphi 0, %s185
      %s203 = sphi 0, %s203
      %s205 = sphi 0, %s203
      %s206 = sphi 0, %s205
      %s220 = sphi 0, %s206
      %s228 = sphi 0, %s230
      %s231 = sphi 0, %s228
      %s232 = sphi 0, %s231
      %s248 = sphi 0, %s232
    $region4: #{tpu_custom_call.1} parent=1 // loop_header_branch
      %27 = sbr.rel (%p25) target = $region8
    $region5: #{tpu_custom_call.1} parent=1 // loop_body
      %s29 = ssub.s32 %s24, 1
      %s30 = ssub.s32 %s24, 2
      %s37 = sadd.s32 1, %s32
      %p38 = scmp.ge.s32.totalorder %s37, 2
      %s39 = scalar_select %p38, 0, %s37
      %s40 = sadd.s32 1, %s31
      %s41 = scalar_select %p38, %s40, %s31
      %p42 = scmp.ge.s32.totalorder %s41, 2
      %s43 = scalar_select %p42, 0, %s41
      %s44 = ssub.s32 %s31, %s43
      %s45 = ssub.s32 %s32, %s39
      %s46 = sor.u32 %s44, %s45
      %p47 = scmp.eq.s32.totalorder %s46, 0
      %s49 = sadd.s32 %s48, 1
      %s50 = scalar_select %p47, %s48, %s49
      %p53 = pneg %p47
      %p54 = scmp.eq.s32.totalorder %s24, 3
      %p55 = por %p53, %p54
      %p56 = scmp.ne.s32.totalorder %s48, %s51
      %p57 = scmp.eq.s32.totalorder %s24, 0
      %p58 = por %p56, %p57
      %p59 = scmp.ne.s32.totalorder %s48, %s51
      %p60 = scmp.eq.s32.totalorder %s29, 3
      %p61 = por %p59, %p60
      %p62 = scmp.ne.s32.totalorder %s51, %s52
      %p63 = scmp.eq.s32.totalorder %s29, 0
      %p64 = por %p62, %p63
      %p65 = scmp.ne.s32.totalorder %s51, %s52
      %p66 = scmp.eq.s32.totalorder %s30, 3
      %p67 = por %p65, %p66
      %p69 = scmp.ne.s32.totalorder %s52, %s68
      %p70 = scmp.eq.s32.totalorder %s30, 0
      %p71 = por %p69, %p70
      %s72 = ssub.s32 %s31, %s43
      %p73 = scmp.eq.s32.totalorder %s72, 0
      %s75 = sadd.s32 %s74, 1
      %s76 = scalar_select %p73, %s74, %s75
      %p79 = pneg %p73
      %p80 = scmp.eq.s32.totalorder %s24, 3
      %p81 = por %p79, %p80
      %p82 = scmp.ne.s32.totalorder %s74, %s77
      %p83 = scmp.eq.s32.totalorder %s24, 0
      %p84 = por %p82, %p83
      %p85 = scmp.ne.s32.totalorder %s74, %s77
      %p86 = scmp.eq.s32.totalorder %s29, 3
      %p87 = por %p85, %p86
      %p88 = scmp.ne.s32.totalorder %s77, %s78
      %p89 = scmp.eq.s32.totalorder %s29, 0
      %p90 = por %p88, %p89
      %p91 = scmp.ne.s32.totalorder %s77, %s78
      %p92 = scmp.eq.s32.totalorder %s30, 3
      %p93 = por %p91, %p92
      %p95 = scmp.ne.s32.totalorder %s78, %s94
      %p96 = scmp.eq.s32.totalorder %s30, 0
      %p97 = por %p95, %p96
      %s99 = sadd.s32 %s98, 1
      %p102 = scmp.eq.s32.totalorder %s24, 3
      %p103 = scmp.ne.s32.totalorder %s98, %s100
      %p104 = scmp.eq.s32.totalorder %s24, 0
      %p105 = por %p103, %p104
      %p106 = scmp.ne.s32.totalorder %s98, %s100
      %p107 = scmp.eq.s32.totalorder %s29, 3
      %p108 = por %p106, %p107
      %p109 = scmp.ne.s32.totalorder %s100, %s101
      %p110 = scmp.eq.s32.totalorder %s29, 0
      %p111 = por %p109, %p110
      %p112 = scmp.ne.s32.totalorder %s100, %s101
      %p113 = scmp.eq.s32.totalorder %s30, 3
      %p114 = por %p112, %p113
      %p116 = scmp.ne.s32.totalorder %s101, %s115
      %p117 = scmp.eq.s32.totalorder %s30, 0
      %p118 = por %p116, %p117
      %s120 = sadd.s32 %s119, 1
      %p123 = scmp.eq.s32.totalorder %s24, 3
      %p124 = scmp.ne.s32.totalorder %s119, %s121
      %p125 = scmp.eq.s32.totalorder %s24, 0
      %p126 = por %p124, %p125
      %p127 = scmp.ne.s32.totalorder %s119, %s121
      %p128 = scmp.eq.s32.totalorder %s29, 3
      %p129 = por %p127, %p128
      %p130 = scmp.ne.s32.totalorder %s121, %s122
      %p131 = scmp.eq.s32.totalorder %s29, 0
      %p132 = por %p130, %p131
      %p133 = scmp.ne.s32.totalorder %s121, %s122
      %p134 = scmp.eq.s32.totalorder %s30, 3
      %p135 = por %p133, %p134
      %p137 = scmp.ne.s32.totalorder %s122, %s136
      %p138 = scmp.eq.s32.totalorder %s30, 0
      %p139 = por %p137, %p138
      %s141 = sadd.s32 %s140, 1
      %p144 = scmp.eq.s32.totalorder %s24, 3
      %p145 = scmp.ne.s32.totalorder %s140, %s142
      %p146 = scmp.eq.s32.totalorder %s24, 0
      %p147 = por %p145, %p146
      %p148 = scmp.ne.s32.totalorder %s140, %s142
      %p149 = scmp.eq.s32.totalorder %s29, 3
      %p150 = por %p148, %p149
      %p151 = scmp.ne.s32.totalorder %s142, %s143
      %p152 = scmp.eq.s32.totalorder %s29, 0
      %p153 = por %p151, %p152
      %p154 = scmp.ne.s32.totalorder %s142, %s143
      %p155 = scmp.eq.s32.totalorder %s30, 3
      %p156 = por %p154, %p155
      %p158 = scmp.ne.s32.totalorder %s143, %s157
      %p159 = scmp.eq.s32.totalorder %s30, 0
      %p160 = por %p158, %p159
      %s162 = sadd.s32 %s161, 1
      %p165 = scmp.eq.s32.totalorder %s24, 3
      %p166 = scmp.ne.s32.totalorder %s161, %s163
      %p167 = scmp.eq.s32.totalorder %s24, 0
      %p168 = por %p166, %p167
      %p169 = scmp.ne.s32.totalorder %s161, %s163
      %p170 = scmp.eq.s32.totalorder %s29, 3
      %p171 = por %p169, %p170
      %p172 = scmp.ne.s32.totalorder %s163, %s164
      %p173 = scmp.eq.s32.totalorder %s29, 0
      %p174 = por %p172, %p173
      %p175 = scmp.ne.s32.totalorder %s163, %s164
      %p176 = scmp.eq.s32.totalorder %s30, 3
      %p177 = por %p175, %p176
      %p179 = scmp.ne.s32.totalorder %s164, %s178
      %p180 = scmp.eq.s32.totalorder %s30, 0
      %p181 = por %p179, %p180
      %s183 = sadd.s32 %s182, 1
      %p186 = scmp.eq.s32.totalorder %s24, 3
      %p187 = scmp.ne.s32.totalorder %s182, %s184
      %p188 = scmp.eq.s32.totalorder %s24, 0
      %p189 = por %p187, %p188
      %p190 = scmp.ne.s32.totalorder %s182, %s184
      %p191 = scmp.eq.s32.totalorder %s29, 3
      %p192 = por %p190, %p191
      %p193 = scmp.ne.s32.totalorder %s184, %s185
      %p194 = scmp.eq.s32.totalorder %s29, 0
      %p195 = por %p193, %p194
      %p196 = scmp.ne.s32.totalorder %s184, %s185
      %p197 = scmp.eq.s32.totalorder %s30, 3
      %p198 = por %p196, %p197
      %p200 = scmp.ne.s32.totalorder %s185, %s199
      %p201 = scmp.eq.s32.totalorder %s30, 0
      %p202 = por %p200, %p201
      %s204 = sadd.s32 %s203, 1
      %p207 = scmp.eq.s32.totalorder %s24, 3
      %p208 = scmp.ne.s32.totalorder %s203, %s205
      %p209 = scmp.eq.s32.totalorder %s24, 0
      %p210 = por %p208, %p209
      %p211 = scmp.ne.s32.totalorder %s203, %s205
      %p212 = scmp.eq.s32.totalorder %s29, 3
      %p213 = por %p211, %p212
      %p214 = scmp.ne.s32.totalorder %s205, %s206
      %p215 = scmp.eq.s32.totalorder %s29, 0
      %p216 = por %p214, %p215
      %p217 = scmp.ne.s32.totalorder %s205, %s206
      %p218 = scmp.eq.s32.totalorder %s30, 3
      %p219 = por %p217, %p218
      %p221 = scmp.ne.s32.totalorder %s206, %s220
      %p222 = scmp.eq.s32.totalorder %s30, 0
      %p223 = por %p221, %p222
      %s224 = ssub.s32 %s31, %s43
      %s225 = ssub.s32 %s32, %s39
      %s226 = sor.u32 %s224, %s225
      %p227 = scmp.eq.s32.totalorder %s226, 0
      %s229 = sadd.s32 %s228, 1
      %s230 = scalar_select %p227, %s228, %s229
      %p233 = pneg %p227
      %p234 = scmp.eq.s32.totalorder %s24, 3
      %p235 = por %p233, %p234
      %p236 = scmp.ne.s32.totalorder %s228, %s231
      %p237 = scmp.eq.s32.totalorder %s24, 0
      %p238 = por %p236, %p237
      %p239 = scmp.ne.s32.totalorder %s228, %s231
      %p240 = scmp.eq.s32.totalorder %s29, 3
      %p241 = por %p239, %p240
      %p242 = scmp.ne.s32.totalorder %s231, %s232
      %p243 = scmp.eq.s32.totalorder %s29, 0
      %p244 = por %p242, %p243
      %p245 = scmp.ne.s32.totalorder %s231, %s232
      %p246 = scmp.eq.s32.totalorder %s30, 3
      %p247 = por %p245, %p246
      %p249 = scmp.ne.s32.totalorder %s232, %s248
      %p250 = scmp.eq.s32.totalorder %s30, 0
      %p251 = por %p249, %p250
      %p252 = scmp.le.s32.totalorder 1, %s24
      %p253 = scmp.lt.s32.totalorder %s24, 5
      %p254 = pnand %p252, %p253
      %p255 = pneg %p254
      // Predicated region
      $region9: #{tpu_custom_call.1} parent=5 // pred_check
        _
      $region10: #{tpu_custom_call.1} parent=5 // pred_check_branch
        %257 = sbr.rel (%p254) target = $region12
      $region11: #{tpu_custom_call.1} parent=5 // pred_region
        %s258 = ssub.s32 %s24, 1
        // Predicated region
        $region13: #{tpu_custom_call.1} parent=11 // pred_check
          %p259 = pneg %p111
        $region14: #{tpu_custom_call.1} parent=11 // pred_check_branch
          %261 = sbr.rel (%p259) target = $region16
        $region15: #{tpu_custom_call.1} parent=11 // pred_region
          _
        $region16: #{tpu_custom_call.1} parent=11 // pred_fallthru
          _
        // Predicated region
        $region17: #{tpu_custom_call.1} parent=11 // pred_check
          %p262 = pneg %p132
        $region18: #{tpu_custom_call.1} parent=11 // pred_check_branch
          %264 = sbr.rel (%p262) target = $region20
        $region19: #{tpu_custom_call.1} parent=11 // pred_region
          _
        $region20: #{tpu_custom_call.1} parent=11 // pred_fallthru
          _
        // Predicated region
        $region21: #{tpu_custom_call.1} parent=11 // pred_check
          %p265 = pneg %p153
        $region22: #{tpu_custom_call.1} parent=11 // pred_check_branch
          %267 = sbr.rel (%p265) target = $region24
        $region23: #{tpu_custom_call.1} parent=11 // pred_region
          %s269 = ssub.s32 4096, 4096
          %270 = vsyncadd [#allocation6], %s269
          %s271 = sshll.u32 [#allocation7], 4
          %s272 = int_to_ptr.vmem [resolvable:$true] %s271
          %277 = dma.hbm_to_vmem [thread:$0]  %s4, 4096, %s272, [#allocation6], 256, 256, 16
        $region24: #{tpu_custom_call.1} parent=11 // pred_fallthru
          _
        // Predicated region
        $region25: #{tpu_custom_call.1} parent=11 // pred_check
          %p278 = pneg %p174
        $region26: #{tpu_custom_call.1} parent=11 // pred_check_branch
          %280 = sbr.rel (%p278) target = $region28
        $region27: #{tpu_custom_call.1} parent=11 // pred_region
          %s282 = ssub.s32 8192, 8192
          %283 = vsyncadd [#allocation9], %s282
          %s284 = sshll.u32 [#allocation8], 4
          %s285 = int_to_ptr.vmem [resolvable:$true] %s284
          %290 = dma.hbm_to_vmem [thread:$0]  %s5, 8192, %s285, [#allocation9], 512, 512, 32
        $region28: #{tpu_custom_call.1} parent=11 // pred_fallthru
          _
        // Predicated region
        $region29: #{tpu_custom_call.1} parent=11 // pred_check
          %p291 = pneg %p195
        $region30: #{tpu_custom_call.1} parent=11 // pred_check_branch
          %293 = sbr.rel (%p291) target = $region32
        $region31: #{tpu_custom_call.1} parent=11 // pred_region
          %s295 = ssub.s32 4096, 4096
          %296 = vsyncadd [#allocation9], %s295
          %s297 = sshll.u32 [#allocation10], 4
          %s298 = int_to_ptr.vmem [resolvable:$true] %s297
          %303 = dma.hbm_to_vmem [thread:$0]  %s6, 4096, %s298, [#allocation9], 128, 128, 8
        $region32: #{tpu_custom_call.1} parent=11 // pred_fallthru
          _
        // Predicated region
        $region33: #{tpu_custom_call.1} parent=11 // pred_check
          %p304 = pneg %p216
        $region34: #{tpu_custom_call.1} parent=11 // pred_check_branch
          %306 = sbr.rel (%p304) target = $region36
        $region35: #{tpu_custom_call.1} parent=11 // pred_region
          _
        $region36: #{tpu_custom_call.1} parent=11 // pred_fallthru
          _
      $region12: #{tpu_custom_call.1} parent=5 // pred_fallthru
        _
      %p307 = scmp.lt.s32.totalorder %s24, 4
      // Predicated region
      $region37: #{tpu_custom_call.1} parent=5 // pred_check
        %p308 = pneg %p307
      $region38: #{tpu_custom_call.1} parent=5 // pred_check_branch
        %310 = sbr.rel (%p308) target = $region40
      $region39: #{tpu_custom_call.1} parent=5 // pred_region
        // Predicated region
        $region41: #{tpu_custom_call.1} parent=39 // pred_check
          %p311 = pneg %p58
        $region42: #{tpu_custom_call.1} parent=39 // pred_check_branch
          %313 = sbr.rel (%p311) target = $region44
        $region43: #{tpu_custom_call.1} parent=39 // pred_region
          %s314 = sand.u32 %s48, 1
          %s315 = scalar_lea.sflag [#allocation3], %s314
          %s316 = sand.u32 %s48, 1
          %s317 = smul.addr %s316, 64
          %s318 = scalar_lea.vmem [#allocation2], %s317
          %s319 = smul.u32 8, %s32
          %s321 = ssub.s32 1024, 1024
          %322 = vsyncadd %s315, %s321
          %s323 = smul.addr %s31, 16
          %s324 = sadd.s32 %s319, %s323
          %s325 = smul.addr %s324, 128
          %s326 = scalar_lea.hbm %s0, %s325
          %s327 = sshll.u32 %s318, 4
          %s328 = int_to_ptr.vmem [resolvable:$true] %s327
          %333 = dma.hbm_to_vmem [thread:$0]  %s326, 1024, %s328, %s315, 128, 128, 8
        $region44: #{tpu_custom_call.1} parent=39 // pred_fallthru
          _
        // Predicated region
        $region45: #{tpu_custom_call.1} parent=39 // pred_check
          %p334 = pneg %p84
        $region46: #{tpu_custom_call.1} parent=39 // pred_check_branch
          %336 = sbr.rel (%p334) target = $region48
        $region47: #{tpu_custom_call.1} parent=39 // pred_region
          %s337 = sand.u32 %s24, 1
          %s338 = scalar_lea.sflag [#allocation6], %s337
          %s339 = sand.u32 %s74, 1
          %s340 = smul.addr %s339, 128
          %s341 = scalar_lea.vmem [#allocation5], %s340
          %s343 = ssub.s32 2048, 2048
          %344 = vsyncadd %s338, %s343
          %s345 = smul.addr %s31, 16
          %s346 = smul.addr %s345, 128
          %s347 = scalar_lea.hbm %s1, %s346
          %s348 = sshll.u32 %s341, 4
          %s349 = int_to_ptr.vmem [resolvable:$true] %s348
          %354 = dma.hbm_to_vmem [thread:$0]  %s347, 2048, %s349, %s338, 128, 128, 8
        $region48: #{tpu_custom_call.1} parent=39 // pred_fallthru
          _
      $region40: #{tpu_custom_call.1} parent=5 // pred_fallthru
        _
      %p355 = scmp.le.s32.totalorder 1, %s24
      %p356 = scmp.lt.s32.totalorder %s24, 5
      %p357 = pnand %p355, %p356
      %p358 = pneg %p357
      // Predicated region
      $region49: #{tpu_custom_call.1} parent=5 // pred_check
        _
      $region50: #{tpu_custom_call.1} parent=5 // pred_check_branch
        %360 = sbr.rel (%p357) target = $region52
      $region51: #{tpu_custom_call.1} parent=5 // pred_region
        %s361 = ssub.s32 %s24, 1
        %s362 = sand.u32 %s51, 1
        %s363 = scalar_lea.sflag [#allocation3], %s362
        %s364 = sand.u32 %s51, 1
        %s365 = smul.addr %s364, 64
        %s366 = scalar_lea.vmem [#allocation2], %s365
        // Predicated region
        $region53: #{tpu_custom_call.1} parent=51 // pred_check
          %p367 = pneg %p64
        $region54: #{tpu_custom_call.1} parent=51 // pred_check_branch
          %369 = sbr.rel (%p367) target = $region56
        $region55: #{tpu_custom_call.1} parent=51 // pred_region
          %370 = dma.done %s363, 1024
        $region56: #{tpu_custom_call.1} parent=51 // pred_fallthru
          _
        %s371 = sand.u32 %s29, 1
        %s372 = scalar_lea.sflag [#allocation6], %s371
        %s373 = sand.u32 %s77, 1
        %s374 = smul.addr %s373, 128
        %s375 = scalar_lea.vmem [#allocation5], %s374
        // Predicated region
        $region57: #{tpu_custom_call.1} parent=51 // pred_check
          %p376 = pneg %p90
        $region58: #{tpu_custom_call.1} parent=51 // pred_check_branch
          %378 = sbr.rel (%p376) target = $region60
        $region59: #{tpu_custom_call.1} parent=51 // pred_region
          %379 = dma.done %s372, 2048
        $region60: #{tpu_custom_call.1} parent=51 // pred_fallthru
          _
        // Predicated region
        $region61: #{tpu_custom_call.1} parent=51 // pred_check
          %p380 = pneg %p153
        $region62: #{tpu_custom_call.1} parent=51 // pred_check_branch
          %382 = sbr.rel (%p380) target = $region64
        $region63: #{tpu_custom_call.1} parent=51 // pred_region
          %383 = dma.done [#allocation6], 4096
        $region64: #{tpu_custom_call.1} parent=51 // pred_fallthru
          _
        // Predicated region
        $region65: #{tpu_custom_call.1} parent=51 // pred_check
          %p384 = pneg %p174
        $region66: #{tpu_custom_call.1} parent=51 // pred_check_branch
          %386 = sbr.rel (%p384) target = $region68
        $region67: #{tpu_custom_call.1} parent=51 // pred_region
          %387 = dma.done [#allocation9], 8192
        $region68: #{tpu_custom_call.1} parent=51 // pred_fallthru
          _
        // Predicated region
        $region69: #{tpu_custom_call.1} parent=51 // pred_check
          %p388 = pneg %p195
        $region70: #{tpu_custom_call.1} parent=51 // pred_check_branch
          %390 = sbr.rel (%p388) target = $region72
        $region71: #{tpu_custom_call.1} parent=51 // pred_region
          %391 = dma.done [#allocation9], 4096
        $region72: #{tpu_custom_call.1} parent=51 // pred_fallthru
          _
        %s392 = sand.u32 %s51, 1
        %s393 = scalar_lea.sflag [#allocation3], %s392
        %s394 = sand.u32 %s51, 1
        %s395 = smul.addr %s394, 64
        %s396 = scalar_lea.vmem [#allocation2], %s395
        %p397 = pneg %p64
        %p398 = pneg %p61
        %s399 = sand.u32 %s29, 1
        %s400 = scalar_lea.sflag [#allocation6], %s399
        %s401 = sand.u32 %s77, 1
        %s402 = smul.addr %s401, 128
        %s403 = scalar_lea.vmem [#allocation5], %s402
        %p404 = pneg %p90
        %p405 = pneg %p87
        %p406 = pneg %p111
        %p407 = pneg %p108
        %p408 = pneg %p132
        %p409 = pneg %p129
        %p410 = pneg %p153
        %p411 = pneg %p150
        %p412 = pneg %p174
        %p413 = pneg %p171
        %p414 = pneg %p195
        %p415 = pneg %p192
        %p416 = pneg %p216
        %p417 = pneg %p213
        %p418 = pneg %p244
        %p419 = pneg %p241
        %s420 = sand.u32 %s231, 1
        %s421 = scalar_lea.sflag [#allocation4], %s420
        %s422 = sand.u32 %s231, 1
        %s423 = smul.addr %s422, 64
        %s424 = scalar_lea.vmem [#allocation11], %s423
        %s425 = smul.u32 8, %s34
        %s426 = smul.u32 8, %s34
        %v427 = vld [vmem:[%s366] sm:$0xff]
        %v428 = vld [vmem:[%s366 + $0x8] sm:$0xff]
        %v429 = vld [vmem:[%s366 + $0x10] sm:$0xff]
        %v430 = vld [vmem:[%s366 + $0x18] sm:$0xff]
        %v431 = vld [vmem:[%s366 + $0x20] sm:$0xff]
        %v432 = vld [vmem:[%s366 + $0x28] sm:$0xff]
        %v433 = vld [vmem:[%s366 + $0x30] sm:$0xff]
        %v434 = vld [vmem:[%s366 + $0x38] sm:$0xff]
        %v435 = vld [vmem:[%s375] sm:$0xff]
        %v436 = vld [vmem:[%s375 + $0x8] sm:$0xff]
        %v437 = vld [vmem:[%s375 + $0x10] sm:$0xff]
        %v438 = vld [vmem:[%s375 + $0x18] sm:$0xff]
        %v439 = vld [vmem:[%s375 + $0x20] sm:$0xff]
        %v440 = vld [vmem:[%s375 + $0x28] sm:$0xff]
        %v441 = vld [vmem:[%s375 + $0x30] sm:$0xff]
        %v442 = vld [vmem:[%s375 + $0x38] sm:$0xff]
        %v443 = vld [vmem:[%s375 + $0x40] sm:$0xff]
        %v444 = vld [vmem:[%s375 + $0x48] sm:$0xff]
        %v445 = vld [vmem:[%s375 + $0x50] sm:$0xff]
        %v446 = vld [vmem:[%s375 + $0x58] sm:$0xff]
        %v447 = vld [vmem:[%s375 + $0x60] sm:$0xff]
        %v448 = vld [vmem:[%s375 + $0x68] sm:$0xff]
        %v449 = vld [vmem:[%s375 + $0x70] sm:$0xff]
        %v450 = vld [vmem:[%s375 + $0x78] sm:$0xff]
        %v451 = vld [vmem:[%s2] sm:$0x1]
        %v452 = vld [vmem:[%s3] sm:$0x1]
        %453 = vadd.xlane.f32.xlu0 %v427
        %v454 = vpop.xlane.xlu0 %453
        %455 = vadd.xlane.f32.xlu0 %v428
        %v456 = vpop.xlane.xlu0 %455
        %457 = vadd.xlane.f32.xlu0 %v429
        %v458 = vpop.xlane.xlu0 %457
        %459 = vadd.xlane.f32.xlu0 %v430
        %v460 = vpop.xlane.xlu0 %459
        %461 = vadd.xlane.f32.xlu0 %v431
        %v462 = vpop.xlane.xlu0 %461
        %463 = vadd.xlane.f32.xlu0 %v432
        %v464 = vpop.xlane.xlu0 %463
        %465 = vadd.xlane.f32.xlu0 %v433
        %v466 = vpop.xlane.xlu0 %465
        %467 = vadd.xlane.f32.xlu0 %v434
        %v468 = vpop.xlane.xlu0 %467
        %v469 = vrcp.pop 128.0
        %v470 = vmul.f32 %v454, %v469
        %v471 = vmul.f32 %v456, %v469
        %v472 = vmul.f32 %v458, %v469
        %v473 = vmul.f32 %v460, %v469
        %v474 = vmul.f32 %v462, %v469
        %v475 = vmul.f32 %v464, %v469
        %v476 = vmul.f32 %v466, %v469
        %v477 = vmul.f32 %v468, %v469
        %v478 = vsub.f32 %v427, %v470
        %v479 = vsub.f32 %v428, %v471
        %v480 = vsub.f32 %v429, %v472
        %v481 = vsub.f32 %v430, %v473
        %v482 = vsub.f32 %v431, %v474
        %v483 = vsub.f32 %v432, %v475
        %v484 = vsub.f32 %v433, %v476
        %v485 = vsub.f32 %v434, %v477
        %v486 = vmul.f32 %v478, %v478
        %v487 = vmul.f32 %v479, %v479
        %v488 = vmul.f32 %v480, %v480
        %v489 = vmul.f32 %v481, %v481
        %v490 = vmul.f32 %v482, %v482
        %v491 = vmul.f32 %v483, %v483
        %v492 = vmul.f32 %v484, %v484
        %v493 = vmul.f32 %v485, %v485
        %494 = vadd.xlane.f32.xlu0 %v486
        %v495 = vpop.xlane.xlu0 %494
        %496 = vadd.xlane.f32.xlu0 %v487
        %v497 = vpop.xlane.xlu0 %496
        %498 = vadd.xlane.f32.xlu0 %v488
        %v499 = vpop.xlane.xlu0 %498
        %500 = vadd.xlane.f32.xlu0 %v489
        %v501 = vpop.xlane.xlu0 %500
        %502 = vadd.xlane.f32.xlu0 %v490
        %v503 = vpop.xlane.xlu0 %502
        %504 = vadd.xlane.f32.xlu0 %v491
        %v505 = vpop.xlane.xlu0 %504
        %506 = vadd.xlane.f32.xlu0 %v492
        %v507 = vpop.xlane.xlu0 %506
        %508 = vadd.xlane.f32.xlu0 %v493
        %v509 = vpop.xlane.xlu0 %508
        %v510 = vmul.f32 %v495, %v469
        %v511 = vmul.f32 %v497, %v469
        %v512 = vmul.f32 %v499, %v469
        %v513 = vmul.f32 %v501, %v469
        %v514 = vmul.f32 %v503, %v469
        %v515 = vmul.f32 %v505, %v469
        %v516 = vmul.f32 %v507, %v469
        %v517 = vmul.f32 %v509, %v469
        %v518 = vadd.f32 %v510, 1e-05
        %v519 = vadd.f32 %v511, 1e-05
        %v520 = vadd.f32 %v512, 1e-05
        %v521 = vadd.f32 %v513, 1e-05
        %v522 = vadd.f32 %v514, 1e-05
        %v523 = vadd.f32 %v515, 1e-05
        %v524 = vadd.f32 %v516, 1e-05
        %v525 = vadd.f32 %v517, 1e-05
        %v526 = vrsqrt.pop %v518
        %v527 = vrsqrt.pop %v519
        %v528 = vrsqrt.pop %v520
        %v529 = vrsqrt.pop %v521
        %v530 = vrsqrt.pop %v522
        %v531 = vrsqrt.pop %v523
        %v532 = vrsqrt.pop %v524
        %v533 = vrsqrt.pop %v525
        %v534 = vmul.f32 %v478, %v526
        %v535 = vmul.f32 %v479, %v527
        %v536 = vmul.f32 %v480, %v528
        %v537 = vmul.f32 %v481, %v529
        %v538 = vmul.f32 %v482, %v530
        %v539 = vmul.f32 %v483, %v531
        %v540 = vmul.f32 %v484, %v532
        %v541 = vmul.f32 %v485, %v533
        %v543 = vlaneseq
        %v544 = vshrl.u32 %v543, 7
        %v545 = vsub.s32 0, %v544
        %v546 = vrot.slane %v451, %v545
        %v548 = vmul.f32 %v534, %v546
        %v549 = vmul.f32 %v535, %v546
        %v550 = vmul.f32 %v536, %v546
        %v551 = vmul.f32 %v537, %v546
        %v552 = vmul.f32 %v538, %v546
        %v553 = vmul.f32 %v539, %v546
        %v554 = vmul.f32 %v540, %v546
        %v555 = vmul.f32 %v541, %v546
        %v557 = vlaneseq
        %v558 = vshrl.u32 %v557, 7
        %v559 = vsub.s32 0, %v558
        %v560 = vrot.slane %v452, %v559
        %v562 = vadd.f32 %v548, %v560
        %v563 = vadd.f32 %v549, %v560
        %v564 = vadd.f32 %v550, %v560
        %v565 = vadd.f32 %v551, %v560
        %v566 = vadd.f32 %v552, %v560
        %v567 = vadd.f32 %v553, %v560
        %v568 = vadd.f32 %v554, %v560
        %v569 = vadd.f32 %v555, %v560
        %570 = vadd.xlane.f32.xlu0 %v435
        %v571 = vpop.xlane.xlu0 %570
        %572 = vadd.xlane.f32.xlu0 %v436
        %v573 = vpop.xlane.xlu0 %572
        %574 = vadd.xlane.f32.xlu0 %v437
        %v575 = vpop.xlane.xlu0 %574
        %576 = vadd.xlane.f32.xlu0 %v438
        %v577 = vpop.xlane.xlu0 %576
        %578 = vadd.xlane.f32.xlu0 %v439
        %v579 = vpop.xlane.xlu0 %578
        %580 = vadd.xlane.f32.xlu0 %v440
        %v581 = vpop.xlane.xlu0 %580
        %582 = vadd.xlane.f32.xlu0 %v441
        %v583 = vpop.xlane.xlu0 %582
        %584 = vadd.xlane.f32.xlu0 %v442
        %v585 = vpop.xlane.xlu0 %584
        %586 = vadd.xlane.f32.xlu0 %v443
        %v587 = vpop.xlane.xlu0 %586
        %588 = vadd.xlane.f32.xlu0 %v444
        %v589 = vpop.xlane.xlu0 %588
        %590 = vadd.xlane.f32.xlu0 %v445
        %v591 = vpop.xlane.xlu0 %590
        %592 = vadd.xlane.f32.xlu0 %v446
        %v593 = vpop.xlane.xlu0 %592
        %594 = vadd.xlane.f32.xlu0 %v447
        %v595 = vpop.xlane.xlu0 %594
        %596 = vadd.xlane.f32.xlu0 %v448
        %v597 = vpop.xlane.xlu0 %596
        %598 = vadd.xlane.f32.xlu0 %v449
        %v599 = vpop.xlane.xlu0 %598
        %600 = vadd.xlane.f32.xlu0 %v450
        %v601 = vpop.xlane.xlu0 %600
        %v602 = vmul.f32 %v571, %v469
        %v603 = vmul.f32 %v573, %v469
        %v604 = vmul.f32 %v575, %v469
        %v605 = vmul.f32 %v577, %v469
        %v606 = vmul.f32 %v579, %v469
        %v607 = vmul.f32 %v581, %v469
        %v608 = vmul.f32 %v583, %v469
        %v609 = vmul.f32 %v585, %v469
        %v610 = vmul.f32 %v587, %v469
        %v611 = vmul.f32 %v589, %v469
        %v612 = vmul.f32 %v591, %v469
        %v613 = vmul.f32 %v593, %v469
        %v614 = vmul.f32 %v595, %v469
        %v615 = vmul.f32 %v597, %v469
        %v616 = vmul.f32 %v599, %v469
        %v617 = vmul.f32 %v601, %v469
        %v618 = vsub.f32 %v435, %v602
        %v619 = vsub.f32 %v436, %v603
        %v620 = vsub.f32 %v437, %v604
        %v621 = vsub.f32 %v438, %v605
        %v622 = vsub.f32 %v439, %v606
        %v623 = vsub.f32 %v440, %v607
        %v624 = vsub.f32 %v441, %v608
        %v625 = vsub.f32 %v442, %v609
        %v626 = vsub.f32 %v443, %v610
        %v627 = vsub.f32 %v444, %v611
        %v628 = vsub.f32 %v445, %v612
        %v629 = vsub.f32 %v446, %v613
        %v630 = vsub.f32 %v447, %v614
        %v631 = vsub.f32 %v448, %v615
        %v632 = vsub.f32 %v449, %v616
        %v633 = vsub.f32 %v450, %v617
        %v634 = vmul.f32 %v618, %v618
        %v635 = vmul.f32 %v619, %v619
        %v636 = vmul.f32 %v620, %v620
        %v637 = vmul.f32 %v621, %v621
        %v638 = vmul.f32 %v622, %v622
        %v639 = vmul.f32 %v623, %v623
        %v640 = vmul.f32 %v624, %v624
        %v641 = vmul.f32 %v625, %v625
        %v642 = vmul.f32 %v626, %v626
        %v643 = vmul.f32 %v627, %v627
        %v644 = vmul.f32 %v628, %v628
        %v645 = vmul.f32 %v629, %v629
        %v646 = vmul.f32 %v630, %v630
        %v647 = vmul.f32 %v631, %v631
        %v648 = vmul.f32 %v632, %v632
        %v649 = vmul.f32 %v633, %v633
        %650 = vadd.xlane.f32.xlu0 %v634
        %v651 = vpop.xlane.xlu0 %650
        %652 = vadd.xlane.f32.xlu0 %v635
        %v653 = vpop.xlane.xlu0 %652
        %654 = vadd.xlane.f32.xlu0 %v636
        %v655 = vpop.xlane.xlu0 %654
        %656 = vadd.xlane.f32.xlu0 %v637
        %v657 = vpop.xlane.xlu0 %656
        %658 = vadd.xlane.f32.xlu0 %v638
        %v659 = vpop.xlane.xlu0 %658
        %660 = vadd.xlane.f32.xlu0 %v639
        %v661 = vpop.xlane.xlu0 %660
        %662 = vadd.xlane.f32.xlu0 %v640
        %v663 = vpop.xlane.xlu0 %662
        %664 = vadd.xlane.f32.xlu0 %v641
        %v665 = vpop.xlane.xlu0 %664
        %666 = vadd.xlane.f32.xlu0 %v642
        %v667 = vpop.xlane.xlu0 %666
        %668 = vadd.xlane.f32.xlu0 %v643
        %v669 = vpop.xlane.xlu0 %668
        %670 = vadd.xlane.f32.xlu0 %v644
        %v671 = vpop.xlane.xlu0 %670
        %672 = vadd.xlane.f32.xlu0 %v645
        %v673 = vpop.xlane.xlu0 %672
        %674 = vadd.xlane.f32.xlu0 %v646
        %v675 = vpop.xlane.xlu0 %674
        %676 = vadd.xlane.f32.xlu0 %v647
        %v677 = vpop.xlane.xlu0 %676
        %678 = vadd.xlane.f32.xlu0 %v648
        %v679 = vpop.xlane.xlu0 %678
        %680 = vadd.xlane.f32.xlu0 %v649
        %v681 = vpop.xlane.xlu0 %680
        %v682 = vmul.f32 %v651, %v469
        %v683 = vmul.f32 %v653, %v469
        %v684 = vmul.f32 %v655, %v469
        %v685 = vmul.f32 %v657, %v469
        %v686 = vmul.f32 %v659, %v469
        %v687 = vmul.f32 %v661, %v469
        %v688 = vmul.f32 %v663, %v469
        %v689 = vmul.f32 %v665, %v469
        %v690 = vmul.f32 %v667, %v469
        %v691 = vmul.f32 %v669, %v469
        %v692 = vmul.f32 %v671, %v469
        %v693 = vmul.f32 %v673, %v469
        %v694 = vmul.f32 %v675, %v469
        %v695 = vmul.f32 %v677, %v469
        %v696 = vmul.f32 %v679, %v469
        %v697 = vmul.f32 %v681, %v469
        %v698 = vadd.f32 %v682, 1e-05
        %v699 = vadd.f32 %v683, 1e-05
        %v700 = vadd.f32 %v684, 1e-05
        %v701 = vadd.f32 %v685, 1e-05
        %v702 = vadd.f32 %v686, 1e-05
        %v703 = vadd.f32 %v687, 1e-05
        %v704 = vadd.f32 %v688, 1e-05
        %v705 = vadd.f32 %v689, 1e-05
        %v706 = vadd.f32 %v690, 1e-05
        %v707 = vadd.f32 %v691, 1e-05
        %v708 = vadd.f32 %v692, 1e-05
        %v709 = vadd.f32 %v693, 1e-05
        %v710 = vadd.f32 %v694, 1e-05
        %v711 = vadd.f32 %v695, 1e-05
        %v712 = vadd.f32 %v696, 1e-05
        %v713 = vadd.f32 %v697, 1e-05
        %v714 = vrsqrt.pop %v698
        %v715 = vrsqrt.pop %v699
        %v716 = vrsqrt.pop %v700
        %v717 = vrsqrt.pop %v701
        %v718 = vrsqrt.pop %v702
        %v719 = vrsqrt.pop %v703
        %v720 = vrsqrt.pop %v704
        %v721 = vrsqrt.pop %v705
        %v722 = vrsqrt.pop %v706
        %v723 = vrsqrt.pop %v707
        %v724 = vrsqrt.pop %v708
        %v725 = vrsqrt.pop %v709
        %v726 = vrsqrt.pop %v710
        %v727 = vrsqrt.pop %v711
        %v728 = vrsqrt.pop %v712
        %v729 = vrsqrt.pop %v713
        %v730 = vmul.f32 %v618, %v714
        %v731 = vmul.f32 %v619, %v715
        %v732 = vmul.f32 %v620, %v716
        %v733 = vmul.f32 %v621, %v717
        %v734 = vmul.f32 %v622, %v718
        %v735 = vmul.f32 %v623, %v719
        %v736 = vmul.f32 %v624, %v720
        %v737 = vmul.f32 %v625, %v721
        %v738 = vmul.f32 %v626, %v722
        %v739 = vmul.f32 %v627, %v723
        %v740 = vmul.f32 %v628, %v724
        %v741 = vmul.f32 %v629, %v725
        %v742 = vmul.f32 %v630, %v726
        %v743 = vmul.f32 %v631, %v727
        %v744 = vmul.f32 %v632, %v728
        %v745 = vmul.f32 %v633, %v729
        %v746 = vmul.f32 %v730, %v546
        %v747 = vmul.f32 %v731, %v546
        %v748 = vmul.f32 %v732, %v546
        %v749 = vmul.f32 %v733, %v546
        %v750 = vmul.f32 %v734, %v546
        %v751 = vmul.f32 %v735, %v546
        %v752 = vmul.f32 %v736, %v546
        %v753 = vmul.f32 %v737, %v546
        %v754 = vmul.f32 %v738, %v546
        %v755 = vmul.f32 %v739, %v546
        %v756 = vmul.f32 %v740, %v546
        %v757 = vmul.f32 %v741, %v546
        %v758 = vmul.f32 %v742, %v546
        %v759 = vmul.f32 %v743, %v546
        %v760 = vmul.f32 %v744, %v546
        %v761 = vmul.f32 %v745, %v546
        %v762 = vadd.f32 %v746, %v560
        %v763 = vadd.f32 %v747, %v560
        %v764 = vadd.f32 %v748, %v560
        %v765 = vadd.f32 %v749, %v560
        %v766 = vadd.f32 %v750, %v560
        %v767 = vadd.f32 %v751, %v560
        %v768 = vadd.f32 %v752, %v560
        %v769 = vadd.f32 %v753, %v560
        %v770 = vadd.f32 %v754, %v560
        %v771 = vadd.f32 %v755, %v560
        %v772 = vadd.f32 %v756, %v560
        %v773 = vadd.f32 %v757, %v560
        %v774 = vadd.f32 %v758, %v560
        %v775 = vadd.f32 %v759, %v560
        %v776 = vadd.f32 %v760, %v560
        %v777 = vadd.f32 %v761, %v560
        %v778 = vld [vmem:[#allocation7] sm:$0xff]
        %v779 = vld [vmem:[#allocation7 + $0x8] sm:$0xff]
        %v780 = vld [vmem:[#allocation7 + $0x10] sm:$0xff]
        %v781 = vld [vmem:[#allocation7 + $0x18] sm:$0xff]
        %v782 = vld [vmem:[#allocation7 + $0x20] sm:$0xff]
        %v783 = vld [vmem:[#allocation7 + $0x28] sm:$0xff]
        %v784 = vld [vmem:[#allocation7 + $0x30] sm:$0xff]
        %v785 = vld [vmem:[#allocation7 + $0x38] sm:$0xff]
        %v786 = vld [vmem:[#allocation7 + $0x40] sm:$0xff]
        %v787 = vld [vmem:[#allocation7 + $0x48] sm:$0xff]
        %v788 = vld [vmem:[#allocation7 + $0x50] sm:$0xff]
        %v789 = vld [vmem:[#allocation7 + $0x58] sm:$0xff]
        %v790 = vld [vmem:[#allocation7 + $0x60] sm:$0xff]
        %v791 = vld [vmem:[#allocation7 + $0x68] sm:$0xff]
        %v792 = vld [vmem:[#allocation7 + $0x70] sm:$0xff]
        %v793 = vld [vmem:[#allocation7 + $0x78] sm:$0xff]
        %v794 = vld [vmem:[#allocation7 + $0x80] sm:$0xff]
        %v795 = vld [vmem:[#allocation7 + $0x88] sm:$0xff]
        %v796 = vld [vmem:[#allocation7 + $0x90] sm:$0xff]
        %v797 = vld [vmem:[#allocation7 + $0x98] sm:$0xff]
        %v798 = vld [vmem:[#allocation7 + $0xa0] sm:$0xff]
        %v799 = vld [vmem:[#allocation7 + $0xa8] sm:$0xff]
        %v800 = vld [vmem:[#allocation7 + $0xb0] sm:$0xff]
        %v801 = vld [vmem:[#allocation7 + $0xb8] sm:$0xff]
        %v802 = vld [vmem:[#allocation7 + $0xc0] sm:$0xff]
        %v803 = vld [vmem:[#allocation7 + $0xc8] sm:$0xff]
        %v804 = vld [vmem:[#allocation7 + $0xd0] sm:$0xff]
        %v805 = vld [vmem:[#allocation7 + $0xd8] sm:$0xff]
        %v806 = vld [vmem:[#allocation7 + $0xe0] sm:$0xff]
        %v807 = vld [vmem:[#allocation7 + $0xe8] sm:$0xff]
        %v808 = vld [vmem:[#allocation7 + $0xf0] sm:$0xff]
        %v809 = vld [vmem:[#allocation7 + $0xf8] sm:$0xff]
        %810 = vmatprep.subr.mxu0 %v809
        %811 = vmatpush1.msra.mxu0 %v808
        %812 = vmatprep.subr.mxu0 %v807
        %813 = vmatpush1.msra.mxu0 %v806
        %814 = vmatprep.subr.mxu0 %v805
        %815 = vmatpush1.msra.mxu0 %v804
        %816 = vmatprep.subr.mxu0 %v803
        %817 = vmatpush1.msra.mxu0 %v802
        %818 = vmatprep.subr.mxu0 %v801
        %819 = vmatpush1.msra.mxu0 %v800
        %820 = vmatprep.subr.mxu0 %v799
        %821 = vmatpush1.msra.mxu0 %v798
        %822 = vmatprep.subr.mxu0 %v797
        %823 = vmatpush1.msra.mxu0 %v796
        %824 = vmatprep.subr.mxu0 %v795
        %825 = vmatpush1.msra.mxu0 %v794
        %826 = vmatprep.subr.mxu0 %v793
        %827 = vmatpush1.msra.mxu0 %v792
        %828 = vmatprep.subr.mxu0 %v791
        %829 = vmatpush1.msra.mxu0 %v790
        %830 = vmatprep.subr.mxu0 %v789
        %831 = vmatpush1.msra.mxu0 %v788
        %832 = vmatprep.subr.mxu0 %v787
        %833 = vmatpush1.msra.mxu0 %v786
        %834 = vmatprep.subr.mxu0 %v785
        %835 = vmatpush1.msra.mxu0 %v784
        %836 = vmatprep.subr.mxu0 %v783
        %837 = vmatpush1.msra.mxu0 %v782
        %838 = vmatprep.subr.mxu0 %v781
        %839 = vmatpush1.msra.mxu0 %v780
        %840 = vmatprep.subr.mxu0 %v779
        %841 = vmatpush1.msra.mxu0 %v778
        %842 = vmatprep.subr.mxu0 0.0
        %843 = vmatpush2.msra.mxu0 0.0
        %844 = vmatprep.subr.mxu0 0.0
        %845 = vmatpush2.msra.mxu0 0.0
        %846 = vmatprep.subr.mxu0 0.0
        %847 = vmatpush2.msra.mxu0 0.0
        %848 = vmatprep.subr.mxu0 0.0
        %849 = vmatpush2.msra.mxu0 0.0
        %850 = vmatprep.subr.mxu0 0.0
        %851 = vmatpush2.msra.mxu0 0.0
        %852 = vmatprep.subr.mxu0 0.0
        %853 = vmatpush2.msra.mxu0 0.0
        %854 = vmatprep.subr.mxu0 0.0
        %855 = vmatpush2.msra.mxu0 0.0
        %856 = vmatprep.subr.mxu0 0.0
        %857 = vmatpush2.msra.mxu0 0.0
        %858 = vmatprep.subr.mxu0 0.0
        %859 = vmatpush2.msra.mxu0 0.0
        %860 = vmatprep.subr.mxu0 0.0
        %861 = vmatpush2.msra.mxu0 0.0
        %862 = vmatprep.subr.mxu0 0.0
        %863 = vmatpush2.msra.mxu0 0.0
        %864 = vmatprep.subr.mxu0 0.0
        %865 = vmatpush2.msra.mxu0 0.0
        %866 = vmatprep.subr.mxu0 0.0
        %867 = vmatpush2.msra.mxu0 0.0
        %868 = vmatprep.subr.mxu0 0.0
        %869 = vmatpush2.msra.mxu0 0.0
        %870 = vmatprep.subr.mxu0 0.0
        %871 = vmatpush2.msra.mxu0 0.0
        %872 = vmatprep.subr.mxu0 0.0
        %873 = vmatpush2.msra.mxu0 0.0
        %874 = vmatprep.mubr.f32.mxu0 0.0
        %875 = vmatmul.mubr.f32.gmra.mxu0 %v562
        %v876 = vpop.f32.mrf.mxu0
        %v877 = vadd.f32 0.0, %v876
        %v878 = vpop.f32.mrf.mxu0
        %v879 = vadd.f32 0.0, %v878
        %880 = vmatprep.mubr.f32.mxu0 0.0
        %881 = vmatmul.mubr.f32.gmra.mxu0 %v563
        %v882 = vpop.f32.mrf.mxu0
        %v883 = vadd.f32 0.0, %v882
        %v884 = vpop.f32.mrf.mxu0
        %v885 = vadd.f32 0.0, %v884
        %886 = vmatprep.mubr.f32.mxu0 0.0
        %887 = vmatmul.mubr.f32.gmra.mxu0 %v564
        %v888 = vpop.f32.mrf.mxu0
        %v889 = vadd.f32 0.0, %v888
        %v890 = vpop.f32.mrf.mxu0
        %v891 = vadd.f32 0.0, %v890
        %892 = vmatprep.mubr.f32.mxu0 0.0
        %893 = vmatmul.mubr.f32.gmra.mxu0 %v565
        %v894 = vpop.f32.mrf.mxu0
        %v895 = vadd.f32 0.0, %v894
        %v896 = vpop.f32.mrf.mxu0
        %v897 = vadd.f32 0.0, %v896
        %898 = vmatprep.mubr.f32.mxu0 0.0
        %899 = vmatmul.mubr.f32.gmra.mxu0 %v566
        %v900 = vpop.f32.mrf.mxu0
        %v901 = vadd.f32 0.0, %v900
        %v902 = vpop.f32.mrf.mxu0
        %v903 = vadd.f32 0.0, %v902
        %904 = vmatprep.mubr.f32.mxu0 0.0
        %905 = vmatmul.mubr.f32.gmra.mxu0 %v567
        %v906 = vpop.f32.mrf.mxu0
        %v907 = vadd.f32 0.0, %v906
        %v908 = vpop.f32.mrf.mxu0
        %v909 = vadd.f32 0.0, %v908
        %910 = vmatprep.mubr.f32.mxu0 0.0
        %911 = vmatmul.mubr.f32.gmra.mxu0 %v568
        %v912 = vpop.f32.mrf.mxu0
        %v913 = vadd.f32 0.0, %v912
        %v914 = vpop.f32.mrf.mxu0
        %v915 = vadd.f32 0.0, %v914
        %916 = vmatprep.mubr.f32.mxu0 0.0
        %917 = vmatmul.mubr.f32.gmra.mxu0 %v569
        %v918 = vpop.f32.mrf.mxu0
        %v919 = vadd.f32 0.0, %v918
        %v920 = vpop.f32.mrf.mxu0
        %v921 = vadd.f32 0.0, %v920
        %922 = vdwg.mxu0
        %v923 = vld [vmem:[#allocation8] sm:$0xff]
        %v924 = vld [vmem:[#allocation8 + $0x8] sm:$0xff]
        %v925 = vld [vmem:[#allocation8 + $0x10] sm:$0xff]
        %v926 = vld [vmem:[#allocation8 + $0x18] sm:$0xff]
        %v927 = vld [vmem:[#allocation8 + $0x20] sm:$0xff]
        %v928 = vld [vmem:[#allocation8 + $0x28] sm:$0xff]
        %v929 = vld [vmem:[#allocation8 + $0x30] sm:$0xff]
        %v930 = vld [vmem:[#allocation8 + $0x38] sm:$0xff]
        %v931 = vld [vmem:[#allocation8 + $0x40] sm:$0xff]
        %v932 = vld [vmem:[#allocation8 + $0x48] sm:$0xff]
        %v933 = vld [vmem:[#allocation8 + $0x50] sm:$0xff]
        %v934 = vld [vmem:[#allocation8 + $0x58] sm:$0xff]
        %v935 = vld [vmem:[#allocation8 + $0x60] sm:$0xff]
        %v936 = vld [vmem:[#allocation8 + $0x68] sm:$0xff]
        %v937 = vld [vmem:[#allocation8 + $0x70] sm:$0xff]
        %v938 = vld [vmem:[#allocation8 + $0x78] sm:$0xff]
        %v939 = vld [vmem:[#allocation8 + $0x80] sm:$0xff]
        %v940 = vld [vmem:[#allocation8 + $0x88] sm:$0xff]
        %v941 = vld [vmem:[#allocation8 + $0x90] sm:$0xff]
        %v942 = vld [vmem:[#allocation8 + $0x98] sm:$0xff]
        %v943 = vld [vmem:[#allocation8 + $0xa0] sm:$0xff]
        %v944 = vld [vmem:[#allocation8 + $0xa8] sm:$0xff]
        %v945 = vld [vmem:[#allocation8 + $0xb0] sm:$0xff]
        %v946 = vld [vmem:[#allocation8 + $0xb8] sm:$0xff]
        %v947 = vld [vmem:[#allocation8 + $0xc0] sm:$0xff]
        %v948 = vld [vmem:[#allocation8 + $0xc8] sm:$0xff]
        %v949 = vld [vmem:[#allocation8 + $0xd0] sm:$0xff]
        %v950 = vld [vmem:[#allocation8 + $0xd8] sm:$0xff]
        %v951 = vld [vmem:[#allocation8 + $0xe0] sm:$0xff]
        %v952 = vld [vmem:[#allocation8 + $0xe8] sm:$0xff]
        %v953 = vld [vmem:[#allocation8 + $0xf0] sm:$0xff]
        %v954 = vld [vmem:[#allocation8 + $0xf8] sm:$0xff]
        %v955 = vld [vmem:[#allocation8 + $0x100] sm:$0xff]
        %v956 = vld [vmem:[#allocation8 + $0x108] sm:$0xff]
        %v957 = vld [vmem:[#allocation8 + $0x110] sm:$0xff]
        %v958 = vld [vmem:[#allocation8 + $0x118] sm:$0xff]
        %v959 = vld [vmem:[#allocation8 + $0x120] sm:$0xff]
        %v960 = vld [vmem:[#allocation8 + $0x128] sm:$0xff]
        %v961 = vld [vmem:[#allocation8 + $0x130] sm:$0xff]
        %v962 = vld [vmem:[#allocation8 + $0x138] sm:$0xff]
        %v963 = vld [vmem:[#allocation8 + $0x140] sm:$0xff]
        %v964 = vld [vmem:[#allocation8 + $0x148] sm:$0xff]
        %v965 = vld [vmem:[#allocation8 + $0x150] sm:$0xff]
        %v966 = vld [vmem:[#allocation8 + $0x158] sm:$0xff]
        %v967 = vld [vmem:[#allocation8 + $0x160] sm:$0xff]
        %v968 = vld [vmem:[#allocation8 + $0x168] sm:$0xff]
        %v969 = vld [vmem:[#allocation8 + $0x170] sm:$0xff]
        %v970 = vld [vmem:[#allocation8 + $0x178] sm:$0xff]
        %v971 = vld [vmem:[#allocation8 + $0x180] sm:$0xff]
        %v972 = vld [vmem:[#allocation8 + $0x188] sm:$0xff]
        %v973 = vld [vmem:[#allocation8 + $0x190] sm:$0xff]
        %v974 = vld [vmem:[#allocation8 + $0x198] sm:$0xff]
        %v975 = vld [vmem:[#allocation8 + $0x1a0] sm:$0xff]
        %v976 = vld [vmem:[#allocation8 + $0x1a8] sm:$0xff]
        %v977 = vld [vmem:[#allocation8 + $0x1b0] sm:$0xff]
        %v978 = vld [vmem:[#allocation8 + $0x1b8] sm:$0xff]
        %v979 = vld [vmem:[#allocation8 + $0x1c0] sm:$0xff]
        %v980 = vld [vmem:[#allocation8 + $0x1c8] sm:$0xff]
        %v981 = vld [vmem:[#allocation8 + $0x1d0] sm:$0xff]
        %v982 = vld [vmem:[#allocation8 + $0x1d8] sm:$0xff]
        %v983 = vld [vmem:[#allocation8 + $0x1e0] sm:$0xff]
        %v984 = vld [vmem:[#allocation8 + $0x1e8] sm:$0xff]
        %v985 = vld [vmem:[#allocation8 + $0x1f0] sm:$0xff]
        %v986 = vld [vmem:[#allocation8 + $0x1f8] sm:$0xff]
        %987 = vmatprep.subr.mxu0 %v984
        %988 = vmatpush1.msra.mxu0 %v983
        %989 = vmatprep.subr.mxu0 %v980
        %990 = vmatpush1.msra.mxu0 %v979
        %991 = vmatprep.subr.mxu0 %v976
        %992 = vmatpush1.msra.mxu0 %v975
        %993 = vmatprep.subr.mxu0 %v972
        %994 = vmatpush1.msra.mxu0 %v971
        %995 = vmatprep.subr.mxu0 %v968
        %996 = vmatpush1.msra.mxu0 %v967
        %997 = vmatprep.subr.mxu0 %v964
        %998 = vmatpush1.msra.mxu0 %v963
        %999 = vmatprep.subr.mxu0 %v960
        %1000 = vmatpush1.msra.mxu0 %v959
        %1001 = vmatprep.subr.mxu0 %v956
        %1002 = vmatpush1.msra.mxu0 %v955
        %1003 = vmatprep.subr.mxu0 %v952
        %1004 = vmatpush1.msra.mxu0 %v951
        %1005 = vmatprep.subr.mxu0 %v948
        %1006 = vmatpush1.msra.mxu0 %v947
        %1007 = vmatprep.subr.mxu0 %v944
        %1008 = vmatpush1.msra.mxu0 %v943
        %1009 = vmatprep.subr.mxu0 %v940
        %1010 = vmatpush1.msra.mxu0 %v939
        %1011 = vmatprep.subr.mxu0 %v936
        %1012 = vmatpush1.msra.mxu0 %v935
        %1013 = vmatprep.subr.mxu0 %v932
        %1014 = vmatpush1.msra.mxu0 %v931
        %1015 = vmatprep.subr.mxu0 %v928
        %1016 = vmatpush1.msra.mxu0 %v927
        %1017 = vmatprep.subr.mxu0 %v924
        %1018 = vmatpush1.msra.mxu0 %v923
        %1019 = vmatprep.subr.mxu0 0.0
        %1020 = vmatpush2.msra.mxu0 0.0
        %1021 = vmatprep.subr.mxu0 0.0
        %1022 = vmatpush2.msra.mxu0 0.0
        %1023 = vmatprep.subr.mxu0 0.0
        %1024 = vmatpush2.msra.mxu0 0.0
        %1025 = vmatprep.subr.mxu0 0.0
        %1026 = vmatpush2.msra.mxu0 0.0
        %1027 = vmatprep.subr.mxu0 0.0
        %1028 = vmatpush2.msra.mxu0 0.0
        %1029 = vmatprep.subr.mxu0 0.0
        %1030 = vmatpush2.msra.mxu0 0.0
        %1031 = vmatprep.subr.mxu0 0.0
        %1032 = vmatpush2.msra.mxu0 0.0
        %1033 = vmatprep.subr.mxu0 0.0
        %1034 = vmatpush2.msra.mxu0 0.0
        %1035 = vmatprep.subr.mxu0 0.0
        %1036 = vmatpush2.msra.mxu0 0.0
        %1037 = vmatprep.subr.mxu0 0.0
        %1038 = vmatpush2.msra.mxu0 0.0
        %1039 = vmatprep.subr.mxu0 0.0
        %1040 = vmatpush2.msra.mxu0 0.0
        %1041 = vmatprep.subr.mxu0 0.0
        %1042 = vmatpush2.msra.mxu0 0.0
        %1043 = vmatprep.subr.mxu0 0.0
        %1044 = vmatpush2.msra.mxu0 0.0
        %1045 = vmatprep.subr.mxu0 0.0
        %1046 = vmatpush2.msra.mxu0 0.0
        %1047 = vmatprep.subr.mxu0 0.0
        %1048 = vmatpush2.msra.mxu0 0.0
        %1049 = vmatprep.subr.mxu0 0.0
        %1050 = vmatpush2.msra.mxu0 0.0
        %1051 = vmatprep.mubr.f32.mxu0 0.0
        %1052 = vmatmul.mubr.f32.gmra.mxu0 %v762
        %v1053 = vpop.f32.mrf.mxu0
        %v1054 = vadd.f32 0.0, %v1053
        %v1055 = vpop.f32.mrf.mxu0
        %v1056 = vadd.f32 0.0, %v1055
        %1057 = vmatprep.mubr.f32.mxu0 0.0
        %1058 = vmatmul.mubr.f32.gmra.mxu0 %v763
        %v1059 = vpop.f32.mrf.mxu0
        %v1060 = vadd.f32 0.0, %v1059
        %v1061 = vpop.f32.mrf.mxu0
        %v1062 = vadd.f32 0.0, %v1061
        %1063 = vmatprep.mubr.f32.mxu0 0.0
        %1064 = vmatmul.mubr.f32.gmra.mxu0 %v764
        %v1065 = vpop.f32.mrf.mxu0
        %v1066 = vadd.f32 0.0, %v1065
        %v1067 = vpop.f32.mrf.mxu0
        %v1068 = vadd.f32 0.0, %v1067
        %1069 = vmatprep.mubr.f32.mxu0 0.0
        %1070 = vmatmul.mubr.f32.gmra.mxu0 %v765
        %v1071 = vpop.f32.mrf.mxu0
        %v1072 = vadd.f32 0.0, %v1071
        %v1073 = vpop.f32.mrf.mxu0
        %v1074 = vadd.f32 0.0, %v1073
        %1075 = vmatprep.mubr.f32.mxu0 0.0
        %1076 = vmatmul.mubr.f32.gmra.mxu0 %v766
        %v1077 = vpop.f32.mrf.mxu0
        %v1078 = vadd.f32 0.0, %v1077
        %v1079 = vpop.f32.mrf.mxu0
        %v1080 = vadd.f32 0.0, %v1079
        %1081 = vmatprep.mubr.f32.mxu0 0.0
        %1082 = vmatmul.mubr.f32.gmra.mxu0 %v767
        %v1083 = vpop.f32.mrf.mxu0
        %v1084 = vadd.f32 0.0, %v1083
        %v1085 = vpop.f32.mrf.mxu0
        %v1086 = vadd.f32 0.0, %v1085
        %1087 = vmatprep.mubr.f32.mxu0 0.0
        %1088 = vmatmul.mubr.f32.gmra.mxu0 %v768
        %v1089 = vpop.f32.mrf.mxu0
        %v1090 = vadd.f32 0.0, %v1089
        %v1091 = vpop.f32.mrf.mxu0
        %v1092 = vadd.f32 0.0, %v1091
        %1093 = vmatprep.mubr.f32.mxu0 0.0
        %1094 = vmatmul.mubr.f32.gmra.mxu0 %v769
        %v1095 = vpop.f32.mrf.mxu0
        %v1096 = vadd.f32 0.0, %v1095
        %v1097 = vpop.f32.mrf.mxu0
        %v1098 = vadd.f32 0.0, %v1097
        %1099 = vmatprep.mubr.f32.mxu0 0.0
        %1100 = vmatmul.mubr.f32.gmra.mxu0 %v770
        %v1101 = vpop.f32.mrf.mxu0
        %v1102 = vadd.f32 0.0, %v1101
        %v1103 = vpop.f32.mrf.mxu0
        %v1104 = vadd.f32 0.0, %v1103
        %1105 = vmatprep.mubr.f32.mxu0 0.0
        %1106 = vmatmul.mubr.f32.gmra.mxu0 %v771
        %v1107 = vpop.f32.mrf.mxu0
        %v1108 = vadd.f32 0.0, %v1107
        %v1109 = vpop.f32.mrf.mxu0
        %v1110 = vadd.f32 0.0, %v1109
        %1111 = vmatprep.mubr.f32.mxu0 0.0
        %1112 = vmatmul.mubr.f32.gmra.mxu0 %v772
        %v1113 = vpop.f32.mrf.mxu0
        %v1114 = vadd.f32 0.0, %v1113
        %v1115 = vpop.f32.mrf.mxu0
        %v1116 = vadd.f32 0.0, %v1115
        %1117 = vmatprep.mubr.f32.mxu0 0.0
        %1118 = vmatmul.mubr.f32.gmra.mxu0 %v773
        %v1119 = vpop.f32.mrf.mxu0
        %v1120 = vadd.f32 0.0, %v1119
        %v1121 = vpop.f32.mrf.mxu0
        %v1122 = vadd.f32 0.0, %v1121
        %1123 = vmatprep.mubr.f32.mxu0 0.0
        %1124 = vmatmul.mubr.f32.gmra.mxu0 %v774
        %v1125 = vpop.f32.mrf.mxu0
        %v1126 = vadd.f32 0.0, %v1125
        %v1127 = vpop.f32.mrf.mxu0
        %v1128 = vadd.f32 0.0, %v1127
        %1129 = vmatprep.mubr.f32.mxu0 0.0
        %1130 = vmatmul.mubr.f32.gmra.mxu0 %v775
        %v1131 = vpop.f32.mrf.mxu0
        %v1132 = vadd.f32 0.0, %v1131
        %v1133 = vpop.f32.mrf.mxu0
        %v1134 = vadd.f32 0.0, %v1133
        %1135 = vmatprep.mubr.f32.mxu0 0.0
        %1136 = vmatmul.mubr.f32.gmra.mxu0 %v776
        %v1137 = vpop.f32.mrf.mxu0
        %v1138 = vadd.f32 0.0, %v1137
        %v1139 = vpop.f32.mrf.mxu0
        %v1140 = vadd.f32 0.0, %v1139
        %1141 = vmatprep.mubr.f32.mxu0 0.0
        %1142 = vmatmul.mubr.f32.gmra.mxu0 %v777
        %v1143 = vpop.f32.mrf.mxu0
        %v1144 = vadd.f32 0.0, %v1143
        %v1145 = vpop.f32.mrf.mxu0
        %v1146 = vadd.f32 0.0, %v1145
        %1147 = vdwg.mxu0
        %1148 = vmatprep.subr.mxu0 %v986
        %1149 = vmatpush1.msra.mxu0 %v985
        %1150 = vmatprep.subr.mxu0 %v982
        %1151 = vmatpush1.msra.mxu0 %v981
        %1152 = vmatprep.subr.mxu0 %v978
        %1153 = vmatpush1.msra.mxu0 %v977
        %1154 = vmatprep.subr.mxu0 %v974
        %1155 = vmatpush1.msra.mxu0 %v973
        %1156 = vmatprep.subr.mxu0 %v970
        %1157 = vmatpush1.msra.mxu0 %v969
        %1158 = vmatprep.subr.mxu0 %v966
        %1159 = vmatpush1.msra.mxu0 %v965
        %1160 = vmatprep.subr.mxu0 %v962
        %1161 = vmatpush1.msra.mxu0 %v961
        %1162 = vmatprep.subr.mxu0 %v958
        %1163 = vmatpush1.msra.mxu0 %v957
        %1164 = vmatprep.subr.mxu0 %v954
        %1165 = vmatpush1.msra.mxu0 %v953
        %1166 = vmatprep.subr.mxu0 %v950
        %1167 = vmatpush1.msra.mxu0 %v949
        %1168 = vmatprep.subr.mxu0 %v946
        %1169 = vmatpush1.msra.mxu0 %v945
        %1170 = vmatprep.subr.mxu0 %v942
        %1171 = vmatpush1.msra.mxu0 %v941
        %1172 = vmatprep.subr.mxu0 %v938
        %1173 = vmatpush1.msra.mxu0 %v937
        %1174 = vmatprep.subr.mxu0 %v934
        %1175 = vmatpush1.msra.mxu0 %v933
        %1176 = vmatprep.subr.mxu0 %v930
        %1177 = vmatpush1.msra.mxu0 %v929
        %1178 = vmatprep.subr.mxu0 %v926
        %1179 = vmatpush1.msra.mxu0 %v925
        %1180 = vmatprep.subr.mxu0 0.0
        %1181 = vmatpush2.msra.mxu0 0.0
        %1182 = vmatprep.subr.mxu0 0.0
        %1183 = vmatpush2.msra.mxu0 0.0
        %1184 = vmatprep.subr.mxu0 0.0
        %1185 = vmatpush2.msra.mxu0 0.0
        %1186 = vmatprep.subr.mxu0 0.0
        %1187 = vmatpush2.msra.mxu0 0.0
        %1188 = vmatprep.subr.mxu0 0.0
        %1189 = vmatpush2.msra.mxu0 0.0
        %1190 = vmatprep.subr.mxu0 0.0
        %1191 = vmatpush2.msra.mxu0 0.0
        %1192 = vmatprep.subr.mxu0 0.0
        %1193 = vmatpush2.msra.mxu0 0.0
        %1194 = vmatprep.subr.mxu0 0.0
        %1195 = vmatpush2.msra.mxu0 0.0
        %1196 = vmatprep.subr.mxu0 0.0
        %1197 = vmatpush2.msra.mxu0 0.0
        %1198 = vmatprep.subr.mxu0 0.0
        %1199 = vmatpush2.msra.mxu0 0.0
        %1200 = vmatprep.subr.mxu0 0.0
        %1201 = vmatpush2.msra.mxu0 0.0
        %1202 = vmatprep.subr.mxu0 0.0
        %1203 = vmatpush2.msra.mxu0 0.0
        %1204 = vmatprep.subr.mxu0 0.0
        %1205 = vmatpush2.msra.mxu0 0.0
        %1206 = vmatprep.subr.mxu0 0.0
        %1207 = vmatpush2.msra.mxu0 0.0
        %1208 = vmatprep.subr.mxu0 0.0
        %1209 = vmatpush2.msra.mxu0 0.0
        %1210 = vmatprep.subr.mxu0 0.0
        %1211 = vmatpush2.msra.mxu0 0.0
        %1212 = vmatprep.mubr.f32.mxu0 0.0
        %1213 = vmatmul.mubr.f32.gmra.mxu0 %v762
        %v1214 = vpop.f32.mrf.mxu0
        %v1215 = vadd.f32 0.0, %v1214
        %v1216 = vpop.f32.mrf.mxu0
        %v1217 = vadd.f32 0.0, %v1216
        %1218 = vmatprep.mubr.f32.mxu0 0.0
        %1219 = vmatmul.mubr.f32.gmra.mxu0 %v763
        %v1220 = vpop.f32.mrf.mxu0
        %v1221 = vadd.f32 0.0, %v1220
        %v1222 = vpop.f32.mrf.mxu0
        %v1223 = vadd.f32 0.0, %v1222
        %1224 = vmatprep.mubr.f32.mxu0 0.0
        %1225 = vmatmul.mubr.f32.gmra.mxu0 %v764
        %v1226 = vpop.f32.mrf.mxu0
        %v1227 = vadd.f32 0.0, %v1226
        %v1228 = vpop.f32.mrf.mxu0
        %v1229 = vadd.f32 0.0, %v1228
        %1230 = vmatprep.mubr.f32.mxu0 0.0
        %1231 = vmatmul.mubr.f32.gmra.mxu0 %v765
        %v1232 = vpop.f32.mrf.mxu0
        %v1233 = vadd.f32 0.0, %v1232
        %v1234 = vpop.f32.mrf.mxu0
        %v1235 = vadd.f32 0.0, %v1234
        %1236 = vmatprep.mubr.f32.mxu0 0.0
        %1237 = vmatmul.mubr.f32.gmra.mxu0 %v766
        %v1238 = vpop.f32.mrf.mxu0
        %v1239 = vadd.f32 0.0, %v1238
        %v1240 = vpop.f32.mrf.mxu0
        %v1241 = vadd.f32 0.0, %v1240
        %1242 = vmatprep.mubr.f32.mxu0 0.0
        %1243 = vmatmul.mubr.f32.gmra.mxu0 %v767
        %v1244 = vpop.f32.mrf.mxu0
        %v1245 = vadd.f32 0.0, %v1244
        %v1246 = vpop.f32.mrf.mxu0
        %v1247 = vadd.f32 0.0, %v1246
        %1248 = vmatprep.mubr.f32.mxu0 0.0
        %1249 = vmatmul.mubr.f32.gmra.mxu0 %v768
        %v1250 = vpop.f32.mrf.mxu0
        %v1251 = vadd.f32 0.0, %v1250
        %v1252 = vpop.f32.mrf.mxu0
        %v1253 = vadd.f32 0.0, %v1252
        %1254 = vmatprep.mubr.f32.mxu0 0.0
        %1255 = vmatmul.mubr.f32.gmra.mxu0 %v769
        %v1256 = vpop.f32.mrf.mxu0
        %v1257 = vadd.f32 0.0, %v1256
        %v1258 = vpop.f32.mrf.mxu0
        %v1259 = vadd.f32 0.0, %v1258
        %1260 = vmatprep.mubr.f32.mxu0 0.0
        %1261 = vmatmul.mubr.f32.gmra.mxu0 %v770
        %v1262 = vpop.f32.mrf.mxu0
        %v1263 = vadd.f32 0.0, %v1262
        %v1264 = vpop.f32.mrf.mxu0
        %v1265 = vadd.f32 0.0, %v1264
        %1266 = vmatprep.mubr.f32.mxu0 0.0
        %1267 = vmatmul.mubr.f32.gmra.mxu0 %v771
        %v1268 = vpop.f32.mrf.mxu0
        %v1269 = vadd.f32 0.0, %v1268
        %v1270 = vpop.f32.mrf.mxu0
        %v1271 = vadd.f32 0.0, %v1270
        %1272 = vmatprep.mubr.f32.mxu0 0.0
        %1273 = vmatmul.mubr.f32.gmra.mxu0 %v772
        %v1274 = vpop.f32.mrf.mxu0
        %v1275 = vadd.f32 0.0, %v1274
        %v1276 = vpop.f32.mrf.mxu0
        %v1277 = vadd.f32 0.0, %v1276
        %1278 = vmatprep.mubr.f32.mxu0 0.0
        %1279 = vmatmul.mubr.f32.gmra.mxu0 %v773
        %v1280 = vpop.f32.mrf.mxu0
        %v1281 = vadd.f32 0.0, %v1280
        %v1282 = vpop.f32.mrf.mxu0
        %v1283 = vadd.f32 0.0, %v1282
        %1284 = vmatprep.mubr.f32.mxu0 0.0
        %1285 = vmatmul.mubr.f32.gmra.mxu0 %v774
        %v1286 = vpop.f32.mrf.mxu0
        %v1287 = vadd.f32 0.0, %v1286
        %v1288 = vpop.f32.mrf.mxu0
        %v1289 = vadd.f32 0.0, %v1288
        %1290 = vmatprep.mubr.f32.mxu0 0.0
        %1291 = vmatmul.mubr.f32.gmra.mxu0 %v775
        %v1292 = vpop.f32.mrf.mxu0
        %v1293 = vadd.f32 0.0, %v1292
        %v1294 = vpop.f32.mrf.mxu0
        %v1295 = vadd.f32 0.0, %v1294
        %1296 = vmatprep.mubr.f32.mxu0 0.0
        %1297 = vmatmul.mubr.f32.gmra.mxu0 %v776
        %v1298 = vpop.f32.mrf.mxu0
        %v1299 = vadd.f32 0.0, %v1298
        %v1300 = vpop.f32.mrf.mxu0
        %v1301 = vadd.f32 0.0, %v1300
        %1302 = vmatprep.mubr.f32.mxu0 0.0
        %1303 = vmatmul.mubr.f32.gmra.mxu0 %v777
        %v1304 = vpop.f32.mrf.mxu0
        %v1305 = vadd.f32 0.0, %v1304
        %v1306 = vpop.f32.mrf.mxu0
        %v1307 = vadd.f32 0.0, %v1306
        %1308 = vdwg.mxu0
        %vm1309 = vcmask 523264
        %v1311 = vsel %vm1309, %v877, 0
        %v1314 = vsel %vm1309, %v883, 0
        %v1317 = vsel %vm1309, %v889, 0
        %v1320 = vsel %vm1309, %v895, 0
        %v1323 = vsel %vm1309, %v901, 0
        %v1326 = vsel %vm1309, %v907, 0
        %v1329 = vsel %vm1309, %v913, 0
        %v1332 = vsel %vm1309, %v919, 0
        %v1335 = vsel %vm1309, %v1054, 0
        %v1338 = vsel %vm1309, %v1060, 0
        %v1341 = vsel %vm1309, %v1066, 0
        %v1344 = vsel %vm1309, %v1072, 0
        %v1347 = vsel %vm1309, %v1078, 0
        %v1350 = vsel %vm1309, %v1084, 0
        %v1353 = vsel %vm1309, %v1090, 0
        %v1356 = vsel %vm1309, %v1096, 0
        %v1359 = vsel %vm1309, %v1102, 0
        %v1362 = vsel %vm1309, %v1108, 0
        %v1365 = vsel %vm1309, %v1114, 0
        %v1368 = vsel %vm1309, %v1120, 0
        %v1371 = vsel %vm1309, %v1126, 0
        %v1374 = vsel %vm1309, %v1132, 0
        %v1377 = vsel %vm1309, %v1138, 0
        %v1380 = vsel %vm1309, %v1144, 0
        %1382 = vmatprep.subr.mxu0 0.0
        %1383 = vmatpush1.xpose.msra.mxu0 %v1380
        %1384 = vmatprep.subr.mxu0 0.0
        %1385 = vmatpush1.xpose.msra.mxu0 %v1377
        %1386 = vmatprep.subr.mxu0 0.0
        %1387 = vmatpush1.xpose.msra.mxu0 %v1374
        %1388 = vmatprep.subr.mxu0 0.0
        %1389 = vmatpush1.xpose.msra.mxu0 %v1371
        %1390 = vmatprep.subr.mxu0 0.0
        %1391 = vmatpush1.xpose.msra.mxu0 %v1368
        %1392 = vmatprep.subr.mxu0 0.0
        %1393 = vmatpush1.xpose.msra.mxu0 %v1365
        %1394 = vmatprep.subr.mxu0 0.0
        %1395 = vmatpush1.xpose.msra.mxu0 %v1362
        %1396 = vmatprep.subr.mxu0 0.0
        %1397 = vmatpush1.xpose.msra.mxu0 %v1359
        %1398 = vmatprep.subr.mxu0 0.0
        %1399 = vmatpush1.xpose.msra.mxu0 %v1356
        %1400 = vmatprep.subr.mxu0 0.0
        %1401 = vmatpush1.xpose.msra.mxu0 %v1353
        %1402 = vmatprep.subr.mxu0 0.0
        %1403 = vmatpush1.xpose.msra.mxu0 %v1350
        %1404 = vmatprep.subr.mxu0 0.0
        %1405 = vmatpush1.xpose.msra.mxu0 %v1347
        %1406 = vmatprep.subr.mxu0 0.0
        %1407 = vmatpush1.xpose.msra.mxu0 %v1344
        %1408 = vmatprep.subr.mxu0 0.0
        %1409 = vmatpush1.xpose.msra.mxu0 %v1341
        %1410 = vmatprep.subr.mxu0 0.0
        %1411 = vmatpush1.xpose.msra.mxu0 %v1338
        %1412 = vmatprep.subr.mxu0 0.0
        %1413 = vmatpush1.xpose.msra.mxu0 %v1335
        %1414 = vmatprep.subr.mxu0 0.0
        %1415 = vmatpush2.xpose.msra.mxu0 0.0
        %1416 = vmatprep.subr.mxu0 0.0
        %1417 = vmatpush2.xpose.msra.mxu0 0.0
        %1418 = vmatprep.subr.mxu0 0.0
        %1419 = vmatpush2.xpose.msra.mxu0 0.0
        %1420 = vmatprep.subr.mxu0 0.0
        %1421 = vmatpush2.xpose.msra.mxu0 0.0
        %1422 = vmatprep.subr.mxu0 0.0
        %1423 = vmatpush2.xpose.msra.mxu0 0.0
        %1424 = vmatprep.subr.mxu0 0.0
        %1425 = vmatpush2.xpose.msra.mxu0 0.0
        %1426 = vmatprep.subr.mxu0 0.0
        %1427 = vmatpush2.xpose.msra.mxu0 0.0
        %1428 = vmatprep.subr.mxu0 0.0
        %1429 = vmatpush2.xpose.msra.mxu0 0.0
        %1430 = vmatprep.subr.mxu0 0.0
        %1431 = vmatpush2.xpose.msra.mxu0 0.0
        %1432 = vmatprep.subr.mxu0 0.0
        %1433 = vmatpush2.xpose.msra.mxu0 0.0
        %1434 = vmatprep.subr.mxu0 0.0
        %1435 = vmatpush2.xpose.msra.mxu0 0.0
        %1436 = vmatprep.subr.mxu0 0.0
        %1437 = vmatpush2.xpose.msra.mxu0 0.0
        %1438 = vmatprep.subr.mxu0 0.0
        %1439 = vmatpush2.xpose.msra.mxu0 0.0
        %1440 = vmatprep.subr.mxu0 0.0
        %1441 = vmatpush2.xpose.msra.mxu0 0.0
        %1442 = vmatprep.subr.mxu0 0.0
        %1443 = vmatpush2.xpose.msra.mxu0 0.0
        %1444 = vmatprep.subr.mxu0 0.0
        %1445 = vmatpush2.xpose.msra.mxu0 0.0
        %1446 = vmatprep.mubr.f32.mxu0 0.0
        %1447 = vmatmul.mubr.f32.gmra.mxu0 %v1311
        %v1448 = vpop.f32.mrf.mxu0
        %v1449 = vadd.f32 0.0, %v1448
        %v1450 = vpop.f32.mrf.mxu0
        %1451 = vmatprep.mubr.f32.mxu0 0.0
        %1452 = vmatmul.mubr.f32.gmra.mxu0 %v1314
        %v1453 = vpop.f32.mrf.mxu0
        %v1454 = vadd.f32 0.0, %v1453
        %v1455 = vpop.f32.mrf.mxu0
        %1456 = vmatprep.mubr.f32.mxu0 0.0
        %1457 = vmatmul.mubr.f32.gmra.mxu0 %v1317
        %v1458 = vpop.f32.mrf.mxu0
        %v1459 = vadd.f32 0.0, %v1458
        %v1460 = vpop.f32.mrf.mxu0
        %1461 = vmatprep.mubr.f32.mxu0 0.0
        %1462 = vmatmul.mubr.f32.gmra.mxu0 %v1320
        %v1463 = vpop.f32.mrf.mxu0
        %v1464 = vadd.f32 0.0, %v1463
        %v1465 = vpop.f32.mrf.mxu0
        %1466 = vmatprep.mubr.f32.mxu0 0.0
        %1467 = vmatmul.mubr.f32.gmra.mxu0 %v1323
        %v1468 = vpop.f32.mrf.mxu0
        %v1469 = vadd.f32 0.0, %v1468
        %v1470 = vpop.f32.mrf.mxu0
        %1471 = vmatprep.mubr.f32.mxu0 0.0
        %1472 = vmatmul.mubr.f32.gmra.mxu0 %v1326
        %v1473 = vpop.f32.mrf.mxu0
        %v1474 = vadd.f32 0.0, %v1473
        %v1475 = vpop.f32.mrf.mxu0
        %1476 = vmatprep.mubr.f32.mxu0 0.0
        %1477 = vmatmul.mubr.f32.gmra.mxu0 %v1329
        %v1478 = vpop.f32.mrf.mxu0
        %v1479 = vadd.f32 0.0, %v1478
        %v1480 = vpop.f32.mrf.mxu0
        %1481 = vmatprep.mubr.f32.mxu0 0.0
        %1482 = vmatmul.mubr.f32.gmra.mxu0 %v1332
        %v1483 = vpop.f32.mrf.mxu0
        %v1484 = vadd.f32 0.0, %v1483
        %v1485 = vpop.f32.mrf.mxu0
        %1486 = vdwg.mxu0
        %1487 = vmax.xlane.f32.xlu0 %v1449
        %v1488 = vpop.xlane.xlu0 %1487
        %1489 = vmax.xlane.f32.xlu0 %v1454
        %v1490 = vpop.xlane.xlu0 %1489
        %1491 = vmax.xlane.f32.xlu0 %v1459
        %v1492 = vpop.xlane.xlu0 %1491
        %1493 = vmax.xlane.f32.xlu0 %v1464
        %v1494 = vpop.xlane.xlu0 %1493
        %1495 = vmax.xlane.f32.xlu0 %v1469
        %v1496 = vpop.xlane.xlu0 %1495
        %1497 = vmax.xlane.f32.xlu0 %v1474
        %v1498 = vpop.xlane.xlu0 %1497
        %1499 = vmax.xlane.f32.xlu0 %v1479
        %v1500 = vpop.xlane.xlu0 %1499
        %1501 = vmax.xlane.f32.xlu0 %v1484
        %v1502 = vpop.xlane.xlu0 %1501
        %v1503 = vsub.f32 %v1449, %v1488
        %v1504 = vsub.f32 %v1454, %v1490
        %v1505 = vsub.f32 %v1459, %v1492
        %v1506 = vsub.f32 %v1464, %v1494
        %v1507 = vsub.f32 %v1469, %v1496
        %v1508 = vsub.f32 %v1474, %v1498
        %v1509 = vsub.f32 %v1479, %v1500
        %v1510 = vsub.f32 %v1484, %v1502
        %v1511 = vmul.f32 %v1503, 1.442695
        %v1512 = vpow.pop %v1511
        %v1513 = vmul.f32 %v1504, 1.442695
        %v1514 = vpow.pop %v1513
        %v1515 = vmul.f32 %v1505, 1.442695
        %v1516 = vpow.pop %v1515
        %v1517 = vmul.f32 %v1506, 1.442695
        %v1518 = vpow.pop %v1517
        %v1519 = vmul.f32 %v1507, 1.442695
        %v1520 = vpow.pop %v1519
        %v1521 = vmul.f32 %v1508, 1.442695
        %v1522 = vpow.pop %v1521
        %v1523 = vmul.f32 %v1509, 1.442695
        %v1524 = vpow.pop %v1523
        %v1525 = vmul.f32 %v1510, 1.442695
        %v1526 = vpow.pop %v1525
        %1527 = vadd.xlane.f32.xlu0 %v1512
        %v1528 = vpop.xlane.xlu0 %1527
        %1529 = vadd.xlane.f32.xlu0 %v1514
        %v1530 = vpop.xlane.xlu0 %1529
        %1531 = vadd.xlane.f32.xlu0 %v1516
        %v1532 = vpop.xlane.xlu0 %1531
        %1533 = vadd.xlane.f32.xlu0 %v1518
        %v1534 = vpop.xlane.xlu0 %1533
        %1535 = vadd.xlane.f32.xlu0 %v1520
        %v1536 = vpop.xlane.xlu0 %1535
        %1537 = vadd.xlane.f32.xlu0 %v1522
        %v1538 = vpop.xlane.xlu0 %1537
        %1539 = vadd.xlane.f32.xlu0 %v1524
        %v1540 = vpop.xlane.xlu0 %1539
        %1541 = vadd.xlane.f32.xlu0 %v1526
        %v1542 = vpop.xlane.xlu0 %1541
        %1543 = vmatprep.subr.mxu0 0.0
        %1544 = vmatpush1.msra.mxu0 %v1305
        %1545 = vmatprep.subr.mxu0 0.0
        %1546 = vmatpush1.msra.mxu0 %v1299
        %1547 = vmatprep.subr.mxu0 0.0
        %1548 = vmatpush1.msra.mxu0 %v1293
        %1549 = vmatprep.subr.mxu0 0.0
        %1550 = vmatpush1.msra.mxu0 %v1287
        %1551 = vmatprep.subr.mxu0 0.0
        %1552 = vmatpush1.msra.mxu0 %v1281
        %1553 = vmatprep.subr.mxu0 0.0
        %1554 = vmatpush1.msra.mxu0 %v1275
        %1555 = vmatprep.subr.mxu0 0.0
        %1556 = vmatpush1.msra.mxu0 %v1269
        %1557 = vmatprep.subr.mxu0 0.0
        %1558 = vmatpush1.msra.mxu0 %v1263
        %1559 = vmatprep.subr.mxu0 0.0
        %1560 = vmatpush1.msra.mxu0 %v1257
        %1561 = vmatprep.subr.mxu0 0.0
        %1562 = vmatpush1.msra.mxu0 %v1251
        %1563 = vmatprep.subr.mxu0 0.0
        %1564 = vmatpush1.msra.mxu0 %v1245
        %1565 = vmatprep.subr.mxu0 0.0
        %1566 = vmatpush1.msra.mxu0 %v1239
        %1567 = vmatprep.subr.mxu0 0.0
        %1568 = vmatpush1.msra.mxu0 %v1233
        %1569 = vmatprep.subr.mxu0 0.0
        %1570 = vmatpush1.msra.mxu0 %v1227
        %1571 = vmatprep.subr.mxu0 0.0
        %1572 = vmatpush1.msra.mxu0 %v1221
        %1573 = vmatprep.subr.mxu0 0.0
        %1574 = vmatpush1.msra.mxu0 %v1215
        %1575 = vmatprep.subr.mxu0 0.0
        %1576 = vmatpush2.msra.mxu0 0.0
        %1577 = vmatprep.subr.mxu0 0.0
        %1578 = vmatpush2.msra.mxu0 0.0
        %1579 = vmatprep.subr.mxu0 0.0
        %1580 = vmatpush2.msra.mxu0 0.0
        %1581 = vmatprep.subr.mxu0 0.0
        %1582 = vmatpush2.msra.mxu0 0.0
        %1583 = vmatprep.subr.mxu0 0.0
        %1584 = vmatpush2.msra.mxu0 0.0
        %1585 = vmatprep.subr.mxu0 0.0
        %1586 = vmatpush2.msra.mxu0 0.0
        %1587 = vmatprep.subr.mxu0 0.0
        %1588 = vmatpush2.msra.mxu0 0.0
        %1589 = vmatprep.subr.mxu0 0.0
        %1590 = vmatpush2.msra.mxu0 0.0
        %1591 = vmatprep.subr.mxu0 0.0
        %1592 = vmatpush2.msra.mxu0 0.0
        %1593 = vmatprep.subr.mxu0 0.0
        %1594 = vmatpush2.msra.mxu0 0.0
        %1595 = vmatprep.subr.mxu0 0.0
        %1596 = vmatpush2.msra.mxu0 0.0
        %1597 = vmatprep.subr.mxu0 0.0
        %1598 = vmatpush2.msra.mxu0 0.0
        %1599 = vmatprep.subr.mxu0 0.0
        %1600 = vmatpush2.msra.mxu0 0.0
        %1601 = vmatprep.subr.mxu0 0.0
        %1602 = vmatpush2.msra.mxu0 0.0
        %1603 = vmatprep.subr.mxu0 0.0
        %1604 = vmatpush2.msra.mxu0 0.0
        %1605 = vmatprep.subr.mxu0 0.0
        %1606 = vmatpush2.msra.mxu0 0.0
        %1607 = vmatprep.mubr.f32.mxu0 0.0
        %1608 = vmatmul.mubr.f32.gmra.mxu0 %v1512
        %v1609 = vpop.f32.mrf.mxu0
        %v1610 = vadd.f32 0.0, %v1609
        %v1611 = vpop.f32.mrf.mxu0
        %1612 = vmatprep.mubr.f32.mxu0 0.0
        %1613 = vmatmul.mubr.f32.gmra.mxu0 %v1514
        %v1614 = vpop.f32.mrf.mxu0
        %v1615 = vadd.f32 0.0, %v1614
        %v1616 = vpop.f32.mrf.mxu0
        %1617 = vmatprep.mubr.f32.mxu0 0.0
        %1618 = vmatmul.mubr.f32.gmra.mxu0 %v1516
        %v1619 = vpop.f32.mrf.mxu0
        %v1620 = vadd.f32 0.0, %v1619
        %v1621 = vpop.f32.mrf.mxu0
        %1622 = vmatprep.mubr.f32.mxu0 0.0
        %1623 = vmatmul.mubr.f32.gmra.mxu0 %v1518
        %v1624 = vpop.f32.mrf.mxu0
        %v1625 = vadd.f32 0.0, %v1624
        %v1626 = vpop.f32.mrf.mxu0
        %1627 = vmatprep.mubr.f32.mxu0 0.0
        %1628 = vmatmul.mubr.f32.gmra.mxu0 %v1520
        %v1629 = vpop.f32.mrf.mxu0
        %v1630 = vadd.f32 0.0, %v1629
        %v1631 = vpop.f32.mrf.mxu0
        %1632 = vmatprep.mubr.f32.mxu0 0.0
        %1633 = vmatmul.mubr.f32.gmra.mxu0 %v1522
        %v1634 = vpop.f32.mrf.mxu0
        %v1635 = vadd.f32 0.0, %v1634
        %v1636 = vpop.f32.mrf.mxu0
        %1637 = vmatprep.mubr.f32.mxu0 0.0
        %1638 = vmatmul.mubr.f32.gmra.mxu0 %v1524
        %v1639 = vpop.f32.mrf.mxu0
        %v1640 = vadd.f32 0.0, %v1639
        %v1641 = vpop.f32.mrf.mxu0
        %1642 = vmatprep.mubr.f32.mxu0 0.0
        %1643 = vmatmul.mubr.f32.gmra.mxu0 %v1526
        %v1644 = vpop.f32.mrf.mxu0
        %v1645 = vadd.f32 0.0, %v1644
        %v1646 = vpop.f32.mrf.mxu0
        %1647 = vdwg.mxu0
        %v1648 = vrcp.pop %v1528
        %v1649 = vrcp.pop %v1530
        %v1650 = vrcp.pop %v1532
        %v1651 = vrcp.pop %v1534
        %v1652 = vrcp.pop %v1536
        %v1653 = vrcp.pop %v1538
        %v1654 = vrcp.pop %v1540
        %v1655 = vrcp.pop %v1542
        %v1656 = vmul.f32 %v1610, %v1648
        %v1657 = vmul.f32 %v1615, %v1649
        %v1658 = vmul.f32 %v1620, %v1650
        %v1659 = vmul.f32 %v1625, %v1651
        %v1660 = vmul.f32 %v1630, %v1652
        %v1661 = vmul.f32 %v1635, %v1653
        %v1662 = vmul.f32 %v1640, %v1654
        %v1663 = vmul.f32 %v1645, %v1655
        %1664 = vrot.lane.b32.xlu0 %v877, 64
        %v1665 = vpop.permute.xlu0 %1664
        %1666 = vrot.lane.b32.xlu0 %v883, 64
        %v1667 = vpop.permute.xlu0 %1666
        %1668 = vrot.lane.b32.xlu0 %v889, 64
        %v1669 = vpop.permute.xlu0 %1668
        %1670 = vrot.lane.b32.xlu0 %v895, 64
        %v1671 = vpop.permute.xlu0 %1670
        %1672 = vrot.lane.b32.xlu0 %v901, 64
        %v1673 = vpop.permute.xlu0 %1672
        %1674 = vrot.lane.b32.xlu0 %v907, 64
        %v1675 = vpop.permute.xlu0 %1674
        %1676 = vrot.lane.b32.xlu0 %v913, 64
        %v1677 = vpop.permute.xlu0 %1676
        %1678 = vrot.lane.b32.xlu0 %v919, 64
        %v1679 = vpop.permute.xlu0 %1678
        %1680 = vrot.lane.b32.xlu0 %v1054, 64
        %v1681 = vpop.permute.xlu0 %1680
        %1682 = vrot.lane.b32.xlu0 %v1060, 64
        %v1683 = vpop.permute.xlu0 %1682
        %1684 = vrot.lane.b32.xlu0 %v1066, 64
        %v1685 = vpop.permute.xlu0 %1684
        %1686 = vrot.lane.b32.xlu0 %v1072, 64
        %v1687 = vpop.permute.xlu0 %1686
        %1688 = vrot.lane.b32.xlu0 %v1078, 64
        %v1689 = vpop.permute.xlu0 %1688
        %1690 = vrot.lane.b32.xlu0 %v1084, 64
        %v1691 = vpop.permute.xlu0 %1690
        %1692 = vrot.lane.b32.xlu0 %v1090, 64
        %v1693 = vpop.permute.xlu0 %1692
        %1694 = vrot.lane.b32.xlu0 %v1096, 64
        %v1695 = vpop.permute.xlu0 %1694
        %1696 = vrot.lane.b32.xlu0 %v1102, 64
        %v1697 = vpop.permute.xlu0 %1696
        %1698 = vrot.lane.b32.xlu0 %v1108, 64
        %v1699 = vpop.permute.xlu0 %1698
        %1700 = vrot.lane.b32.xlu0 %v1114, 64
        %v1701 = vpop.permute.xlu0 %1700
        %1702 = vrot.lane.b32.xlu0 %v1120, 64
        %v1703 = vpop.permute.xlu0 %1702
        %1704 = vrot.lane.b32.xlu0 %v1126, 64
        %v1705 = vpop.permute.xlu0 %1704
        %1706 = vrot.lane.b32.xlu0 %v1132, 64
        %v1707 = vpop.permute.xlu0 %1706
        %1708 = vrot.lane.b32.xlu0 %v1138, 64
        %v1709 = vpop.permute.xlu0 %1708
        %1710 = vrot.lane.b32.xlu0 %v1144, 64
        %v1711 = vpop.permute.xlu0 %1710
        %v1712 = vsel %vm1309, %v1665, 0
        %v1714 = vsel %vm1309, %v1667, 0
        %v1716 = vsel %vm1309, %v1669, 0
        %v1718 = vsel %vm1309, %v1671, 0
        %v1720 = vsel %vm1309, %v1673, 0
        %v1722 = vsel %vm1309, %v1675, 0
        %v1724 = vsel %vm1309, %v1677, 0
        %v1726 = vsel %vm1309, %v1679, 0
        %v1728 = vsel %vm1309, %v1681, 0
        %v1730 = vsel %vm1309, %v1683, 0
        %v1732 = vsel %vm1309, %v1685, 0
        %v1734 = vsel %vm1309, %v1687, 0
        %v1736 = vsel %vm1309, %v1689, 0
        %v1738 = vsel %vm1309, %v1691, 0
        %v1740 = vsel %vm1309, %v1693, 0
        %v1742 = vsel %vm1309, %v1695, 0
        %v1744 = vsel %vm1309, %v1697, 0
        %v1746 = vsel %vm1309, %v1699, 0
        %v1748 = vsel %vm1309, %v1701, 0
        %v1750 = vsel %vm1309, %v1703, 0
        %v1752 = vsel %vm1309, %v1705, 0
        %v1754 = vsel %vm1309, %v1707, 0
        %v1756 = vsel %vm1309, %v1709, 0
        %v1758 = vsel %vm1309, %v1711, 0
        %1760 = vmatprep.subr.mxu0 0.0
        %1761 = vmatpush1.xpose.msra.mxu0 %v1758
        %1762 = vmatprep.subr.mxu0 0.0
        %1763 = vmatpush1.xpose.msra.mxu0 %v1756
        %1764 = vmatprep.subr.mxu0 0.0
        %1765 = vmatpush1.xpose.msra.mxu0 %v1754
        %1766 = vmatprep.subr.mxu0 0.0
        %1767 = vmatpush1.xpose.msra.mxu0 %v1752
        %1768 = vmatprep.subr.mxu0 0.0
        %1769 = vmatpush1.xpose.msra.mxu0 %v1750
        %1770 = vmatprep.subr.mxu0 0.0
        %1771 = vmatpush1.xpose.msra.mxu0 %v1748
        %1772 = vmatprep.subr.mxu0 0.0
        %1773 = vmatpush1.xpose.msra.mxu0 %v1746
        %1774 = vmatprep.subr.mxu0 0.0
        %1775 = vmatpush1.xpose.msra.mxu0 %v1744
        %1776 = vmatprep.subr.mxu0 0.0
        %1777 = vmatpush1.xpose.msra.mxu0 %v1742
        %1778 = vmatprep.subr.mxu0 0.0
        %1779 = vmatpush1.xpose.msra.mxu0 %v1740
        %1780 = vmatprep.subr.mxu0 0.0
        %1781 = vmatpush1.xpose.msra.mxu0 %v1738
        %1782 = vmatprep.subr.mxu0 0.0
        %1783 = vmatpush1.xpose.msra.mxu0 %v1736
        %1784 = vmatprep.subr.mxu0 0.0
        %1785 = vmatpush1.xpose.msra.mxu0 %v1734
        %1786 = vmatprep.subr.mxu0 0.0
        %1787 = vmatpush1.xpose.msra.mxu0 %v1732
        %1788 = vmatprep.subr.mxu0 0.0
        %1789 = vmatpush1.xpose.msra.mxu0 %v1730
        %1790 = vmatprep.subr.mxu0 0.0
        %1791 = vmatpush1.xpose.msra.mxu0 %v1728
        %1792 = vmatprep.subr.mxu0 0.0
        %1793 = vmatpush2.xpose.msra.mxu0 0.0
        %1794 = vmatprep.subr.mxu0 0.0
        %1795 = vmatpush2.xpose.msra.mxu0 0.0
        %1796 = vmatprep.subr.mxu0 0.0
        %1797 = vmatpush2.xpose.msra.mxu0 0.0
        %1798 = vmatprep.subr.mxu0 0.0
        %1799 = vmatpush2.xpose.msra.mxu0 0.0
        %1800 = vmatprep.subr.mxu0 0.0
        %1801 = vmatpush2.xpose.msra.mxu0 0.0
        %1802 = vmatprep.subr.mxu0 0.0
        %1803 = vmatpush2.xpose.msra.mxu0 0.0
        %1804 = vmatprep.subr.mxu0 0.0
        %1805 = vmatpush2.xpose.msra.mxu0 0.0
        %1806 = vmatprep.subr.mxu0 0.0
        %1807 = vmatpush2.xpose.msra.mxu0 0.0
        %1808 = vmatprep.subr.mxu0 0.0
        %1809 = vmatpush2.xpose.msra.mxu0 0.0
        %1810 = vmatprep.subr.mxu0 0.0
        %1811 = vmatpush2.xpose.msra.mxu0 0.0
        %1812 = vmatprep.subr.mxu0 0.0
        %1813 = vmatpush2.xpose.msra.mxu0 0.0
        %1814 = vmatprep.subr.mxu0 0.0
        %1815 = vmatpush2.xpose.msra.mxu0 0.0
        %1816 = vmatprep.subr.mxu0 0.0
        %1817 = vmatpush2.xpose.msra.mxu0 0.0
        %1818 = vmatprep.subr.mxu0 0.0
        %1819 = vmatpush2.xpose.msra.mxu0 0.0
        %1820 = vmatprep.subr.mxu0 0.0
        %1821 = vmatpush2.xpose.msra.mxu0 0.0
        %1822 = vmatprep.subr.mxu0 0.0
        %1823 = vmatpush2.xpose.msra.mxu0 0.0
        %1824 = vmatprep.mubr.f32.mxu0 0.0
        %1825 = vmatmul.mubr.f32.gmra.mxu0 %v1712
        %v1826 = vpop.f32.mrf.mxu0
        %v1827 = vadd.f32 0.0, %v1826
        %v1828 = vpop.f32.mrf.mxu0
        %1829 = vmatprep.mubr.f32.mxu0 0.0
        %1830 = vmatmul.mubr.f32.gmra.mxu0 %v1714
        %v1831 = vpop.f32.mrf.mxu0
        %v1832 = vadd.f32 0.0, %v1831
        %v1833 = vpop.f32.mrf.mxu0
        %1834 = vmatprep.mubr.f32.mxu0 0.0
        %1835 = vmatmul.mubr.f32.gmra.mxu0 %v1716
        %v1836 = vpop.f32.mrf.mxu0
        %v1837 = vadd.f32 0.0, %v1836
        %v1838 = vpop.f32.mrf.mxu0
        %1839 = vmatprep.mubr.f32.mxu0 0.0
        %1840 = vmatmul.mubr.f32.gmra.mxu0 %v1718
        %v1841 = vpop.f32.mrf.mxu0
        %v1842 = vadd.f32 0.0, %v1841
        %v1843 = vpop.f32.mrf.mxu0
        %1844 = vmatprep.mubr.f32.mxu0 0.0
        %1845 = vmatmul.mubr.f32.gmra.mxu0 %v1720
        %v1846 = vpop.f32.mrf.mxu0
        %v1847 = vadd.f32 0.0, %v1846
        %v1848 = vpop.f32.mrf.mxu0
        %1849 = vmatprep.mubr.f32.mxu0 0.0
        %1850 = vmatmul.mubr.f32.gmra.mxu0 %v1722
        %v1851 = vpop.f32.mrf.mxu0
        %v1852 = vadd.f32 0.0, %v1851
        %v1853 = vpop.f32.mrf.mxu0
        %1854 = vmatprep.mubr.f32.mxu0 0.0
        %1855 = vmatmul.mubr.f32.gmra.mxu0 %v1724
        %v1856 = vpop.f32.mrf.mxu0
        %v1857 = vadd.f32 0.0, %v1856
        %v1858 = vpop.f32.mrf.mxu0
        %1859 = vmatprep.mubr.f32.mxu0 0.0
        %1860 = vmatmul.mubr.f32.gmra.mxu0 %v1726
        %v1861 = vpop.f32.mrf.mxu0
        %v1862 = vadd.f32 0.0, %v1861
        %v1863 = vpop.f32.mrf.mxu0
        %1864 = vdwg.mxu0
        %1865 = vmax.xlane.f32.xlu0 %v1827
        %v1866 = vpop.xlane.xlu0 %1865
        %1867 = vmax.xlane.f32.xlu0 %v1832
        %v1868 = vpop.xlane.xlu0 %1867
        %1869 = vmax.xlane.f32.xlu0 %v1837
        %v1870 = vpop.xlane.xlu0 %1869
        %1871 = vmax.xlane.f32.xlu0 %v1842
        %v1872 = vpop.xlane.xlu0 %1871
        %1873 = vmax.xlane.f32.xlu0 %v1847
        %v1874 = vpop.xlane.xlu0 %1873
        %1875 = vmax.xlane.f32.xlu0 %v1852
        %v1876 = vpop.xlane.xlu0 %1875
        %1877 = vmax.xlane.f32.xlu0 %v1857
        %v1878 = vpop.xlane.xlu0 %1877
        %1879 = vmax.xlane.f32.xlu0 %v1862
        %v1880 = vpop.xlane.xlu0 %1879
        %v1881 = vsub.f32 %v1827, %v1866
        %v1882 = vsub.f32 %v1832, %v1868
        %v1883 = vsub.f32 %v1837, %v1870
        %v1884 = vsub.f32 %v1842, %v1872
        %v1885 = vsub.f32 %v1847, %v1874
        %v1886 = vsub.f32 %v1852, %v1876
        %v1887 = vsub.f32 %v1857, %v1878
        %v1888 = vsub.f32 %v1862, %v1880
        %v1889 = vmul.f32 %v1881, 1.442695
        %v1890 = vpow.pop %v1889
        %v1891 = vmul.f32 %v1882, 1.442695
        %v1892 = vpow.pop %v1891
        %v1893 = vmul.f32 %v1883, 1.442695
        %v1894 = vpow.pop %v1893
        %v1895 = vmul.f32 %v1884, 1.442695
        %v1896 = vpow.pop %v1895
        %v1897 = vmul.f32 %v1885, 1.442695
        %v1898 = vpow.pop %v1897
        %v1899 = vmul.f32 %v1886, 1.442695
        %v1900 = vpow.pop %v1899
        %v1901 = vmul.f32 %v1887, 1.442695
        %v1902 = vpow.pop %v1901
        %v1903 = vmul.f32 %v1888, 1.442695
        %v1904 = vpow.pop %v1903
        %1905 = vadd.xlane.f32.xlu0 %v1890
        %v1906 = vpop.xlane.xlu0 %1905
        %1907 = vadd.xlane.f32.xlu0 %v1892
        %v1908 = vpop.xlane.xlu0 %1907
        %1909 = vadd.xlane.f32.xlu0 %v1894
        %v1910 = vpop.xlane.xlu0 %1909
        %1911 = vadd.xlane.f32.xlu0 %v1896
        %v1912 = vpop.xlane.xlu0 %1911
        %1913 = vadd.xlane.f32.xlu0 %v1898
        %v1914 = vpop.xlane.xlu0 %1913
        %1915 = vadd.xlane.f32.xlu0 %v1900
        %v1916 = vpop.xlane.xlu0 %1915
        %1917 = vadd.xlane.f32.xlu0 %v1902
        %v1918 = vpop.xlane.xlu0 %1917
        %1919 = vadd.xlane.f32.xlu0 %v1904
        %v1920 = vpop.xlane.xlu0 %1919
        %1937 = vrot.lane.b32.xlu0 %v1215, 64
        %v1938 = vpop.permute.xlu0 %1937
        %1939 = vrot.lane.b32.xlu0 %v1221, 64
        %v1940 = vpop.permute.xlu0 %1939
        %1941 = vrot.lane.b32.xlu0 %v1227, 64
        %v1942 = vpop.permute.xlu0 %1941
        %1943 = vrot.lane.b32.xlu0 %v1233, 64
        %v1944 = vpop.permute.xlu0 %1943
        %1945 = vrot.lane.b32.xlu0 %v1239, 64
        %v1946 = vpop.permute.xlu0 %1945
        %1947 = vrot.lane.b32.xlu0 %v1245, 64
        %v1948 = vpop.permute.xlu0 %1947
        %1949 = vrot.lane.b32.xlu0 %v1251, 64
        %v1950 = vpop.permute.xlu0 %1949
        %1951 = vrot.lane.b32.xlu0 %v1257, 64
        %v1952 = vpop.permute.xlu0 %1951
        %1953 = vrot.lane.b32.xlu0 %v1263, 64
        %v1954 = vpop.permute.xlu0 %1953
        %1955 = vrot.lane.b32.xlu0 %v1269, 64
        %v1956 = vpop.permute.xlu0 %1955
        %1957 = vrot.lane.b32.xlu0 %v1275, 64
        %v1958 = vpop.permute.xlu0 %1957
        %1959 = vrot.lane.b32.xlu0 %v1281, 64
        %v1960 = vpop.permute.xlu0 %1959
        %1961 = vrot.lane.b32.xlu0 %v1287, 64
        %v1962 = vpop.permute.xlu0 %1961
        %1963 = vrot.lane.b32.xlu0 %v1293, 64
        %v1964 = vpop.permute.xlu0 %1963
        %1965 = vrot.lane.b32.xlu0 %v1299, 64
        %v1966 = vpop.permute.xlu0 %1965
        %1967 = vrot.lane.b32.xlu0 %v1305, 64
        %v1968 = vpop.permute.xlu0 %1967
        %1985 = vmatprep.subr.mxu0 0.0
        %1986 = vmatpush1.msra.mxu0 %v1968
        %1987 = vmatprep.subr.mxu0 0.0
        %1988 = vmatpush1.msra.mxu0 %v1966
        %1989 = vmatprep.subr.mxu0 0.0
        %1990 = vmatpush1.msra.mxu0 %v1964
        %1991 = vmatprep.subr.mxu0 0.0
        %1992 = vmatpush1.msra.mxu0 %v1962
        %1993 = vmatprep.subr.mxu0 0.0
        %1994 = vmatpush1.msra.mxu0 %v1960
        %1995 = vmatprep.subr.mxu0 0.0
        %1996 = vmatpush1.msra.mxu0 %v1958
        %1997 = vmatprep.subr.mxu0 0.0
        %1998 = vmatpush1.msra.mxu0 %v1956
        %1999 = vmatprep.subr.mxu0 0.0
        %2000 = vmatpush1.msra.mxu0 %v1954
        %2001 = vmatprep.subr.mxu0 0.0
        %2002 = vmatpush1.msra.mxu0 %v1952
        %2003 = vmatprep.subr.mxu0 0.0
        %2004 = vmatpush1.msra.mxu0 %v1950
        %2005 = vmatprep.subr.mxu0 0.0
        %2006 = vmatpush1.msra.mxu0 %v1948
        %2007 = vmatprep.subr.mxu0 0.0
        %2008 = vmatpush1.msra.mxu0 %v1946
        %2009 = vmatprep.subr.mxu0 0.0
        %2010 = vmatpush1.msra.mxu0 %v1944
        %2011 = vmatprep.subr.mxu0 0.0
        %2012 = vmatpush1.msra.mxu0 %v1942
        %2013 = vmatprep.subr.mxu0 0.0
        %2014 = vmatpush1.msra.mxu0 %v1940
        %2015 = vmatprep.subr.mxu0 0.0
        %2016 = vmatpush1.msra.mxu0 %v1938
        %2017 = vmatprep.subr.mxu0 0.0
        %2018 = vmatpush2.msra.mxu0 0.0
        %2019 = vmatprep.subr.mxu0 0.0
        %2020 = vmatpush2.msra.mxu0 0.0
        %2021 = vmatprep.subr.mxu0 0.0
        %2022 = vmatpush2.msra.mxu0 0.0
        %2023 = vmatprep.subr.mxu0 0.0
        %2024 = vmatpush2.msra.mxu0 0.0
        %2025 = vmatprep.subr.mxu0 0.0
        %2026 = vmatpush2.msra.mxu0 0.0
        %2027 = vmatprep.subr.mxu0 0.0
        %2028 = vmatpush2.msra.mxu0 0.0
        %2029 = vmatprep.subr.mxu0 0.0
        %2030 = vmatpush2.msra.mxu0 0.0
        %2031 = vmatprep.subr.mxu0 0.0
        %2032 = vmatpush2.msra.mxu0 0.0
        %2033 = vmatprep.subr.mxu0 0.0
        %2034 = vmatpush2.msra.mxu0 0.0
        %2035 = vmatprep.subr.mxu0 0.0
        %2036 = vmatpush2.msra.mxu0 0.0
        %2037 = vmatprep.subr.mxu0 0.0
        %2038 = vmatpush2.msra.mxu0 0.0
        %2039 = vmatprep.subr.mxu0 0.0
        %2040 = vmatpush2.msra.mxu0 0.0
        %2041 = vmatprep.subr.mxu0 0.0
        %2042 = vmatpush2.msra.mxu0 0.0
        %2043 = vmatprep.subr.mxu0 0.0
        %2044 = vmatpush2.msra.mxu0 0.0
        %2045 = vmatprep.subr.mxu0 0.0
        %2046 = vmatpush2.msra.mxu0 0.0
        %2047 = vmatprep.subr.mxu0 0.0
        %2048 = vmatpush2.msra.mxu0 0.0
        %2049 = vmatprep.mubr.f32.mxu0 0.0
        %2050 = vmatmul.mubr.f32.gmra.mxu0 %v1890
        %v2051 = vpop.f32.mrf.mxu0
        %v2052 = vadd.f32 0.0, %v2051
        %v2053 = vpop.f32.mrf.mxu0
        %2054 = vmatprep.mubr.f32.mxu0 0.0
        %2055 = vmatmul.mubr.f32.gmra.mxu0 %v1892
        %v2056 = vpop.f32.mrf.mxu0
        %v2057 = vadd.f32 0.0, %v2056
        %v2058 = vpop.f32.mrf.mxu0
        %2059 = vmatprep.mubr.f32.mxu0 0.0
        %2060 = vmatmul.mubr.f32.gmra.mxu0 %v1894
        %v2061 = vpop.f32.mrf.mxu0
        %v2062 = vadd.f32 0.0, %v2061
        %v2063 = vpop.f32.mrf.mxu0
        %2064 = vmatprep.mubr.f32.mxu0 0.0
        %2065 = vmatmul.mubr.f32.gmra.mxu0 %v1896
        %v2066 = vpop.f32.mrf.mxu0
        %v2067 = vadd.f32 0.0, %v2066
        %v2068 = vpop.f32.mrf.mxu0
        %2069 = vmatprep.mubr.f32.mxu0 0.0
        %2070 = vmatmul.mubr.f32.gmra.mxu0 %v1898
        %v2071 = vpop.f32.mrf.mxu0
        %v2072 = vadd.f32 0.0, %v2071
        %v2073 = vpop.f32.mrf.mxu0
        %2074 = vmatprep.mubr.f32.mxu0 0.0
        %2075 = vmatmul.mubr.f32.gmra.mxu0 %v1900
        %v2076 = vpop.f32.mrf.mxu0
        %v2077 = vadd.f32 0.0, %v2076
        %v2078 = vpop.f32.mrf.mxu0
        %2079 = vmatprep.mubr.f32.mxu0 0.0
        %2080 = vmatmul.mubr.f32.gmra.mxu0 %v1902
        %v2081 = vpop.f32.mrf.mxu0
        %v2082 = vadd.f32 0.0, %v2081
        %v2083 = vpop.f32.mrf.mxu0
        %2084 = vmatprep.mubr.f32.mxu0 0.0
        %2085 = vmatmul.mubr.f32.gmra.mxu0 %v1904
        %v2086 = vpop.f32.mrf.mxu0
        %v2087 = vadd.f32 0.0, %v2086
        %v2088 = vpop.f32.mrf.mxu0
        %2089 = vdwg.mxu0
        %v2090 = vrcp.pop %v1906
        %v2091 = vrcp.pop %v1908
        %v2092 = vrcp.pop %v1910
        %v2093 = vrcp.pop %v1912
        %v2094 = vrcp.pop %v1914
        %v2095 = vrcp.pop %v1916
        %v2096 = vrcp.pop %v1918
        %v2097 = vrcp.pop %v1920
        %v2098 = vmul.f32 %v2052, %v2090
        %v2099 = vmul.f32 %v2057, %v2091
        %v2100 = vmul.f32 %v2062, %v2092
        %v2101 = vmul.f32 %v2067, %v2093
        %v2102 = vmul.f32 %v2072, %v2094
        %v2103 = vmul.f32 %v2077, %v2095
        %v2104 = vmul.f32 %v2082, %v2096
        %v2105 = vmul.f32 %v2087, %v2097
        %v2107 = vsel %vm1309, %v879, 0
        %v2110 = vsel %vm1309, %v885, 0
        %v2113 = vsel %vm1309, %v891, 0
        %v2116 = vsel %vm1309, %v897, 0
        %v2119 = vsel %vm1309, %v903, 0
        %v2122 = vsel %vm1309, %v909, 0
        %v2125 = vsel %vm1309, %v915, 0
        %v2128 = vsel %vm1309, %v921, 0
        %v2131 = vsel %vm1309, %v1056, 0
        %v2134 = vsel %vm1309, %v1062, 0
        %v2137 = vsel %vm1309, %v1068, 0
        %v2140 = vsel %vm1309, %v1074, 0
        %v2143 = vsel %vm1309, %v1080, 0
        %v2146 = vsel %vm1309, %v1086, 0
        %v2149 = vsel %vm1309, %v1092, 0
        %v2152 = vsel %vm1309, %v1098, 0
        %v2155 = vsel %vm1309, %v1104, 0
        %v2158 = vsel %vm1309, %v1110, 0
        %v2161 = vsel %vm1309, %v1116, 0
        %v2164 = vsel %vm1309, %v1122, 0
        %v2167 = vsel %vm1309, %v1128, 0
        %v2170 = vsel %vm1309, %v1134, 0
        %v2173 = vsel %vm1309, %v1140, 0
        %v2176 = vsel %vm1309, %v1146, 0
        %2178 = vmatprep.subr.mxu0 0.0
        %2179 = vmatpush1.xpose.msra.mxu0 %v2176
        %2180 = vmatprep.subr.mxu0 0.0
        %2181 = vmatpush1.xpose.msra.mxu0 %v2173
        %2182 = vmatprep.subr.mxu0 0.0
        %2183 = vmatpush1.xpose.msra.mxu0 %v2170
        %2184 = vmatprep.subr.mxu0 0.0
        %2185 = vmatpush1.xpose.msra.mxu0 %v2167
        %2186 = vmatprep.subr.mxu0 0.0
        %2187 = vmatpush1.xpose.msra.mxu0 %v2164
        %2188 = vmatprep.subr.mxu0 0.0
        %2189 = vmatpush1.xpose.msra.mxu0 %v2161
        %2190 = vmatprep.subr.mxu0 0.0
        %2191 = vmatpush1.xpose.msra.mxu0 %v2158
        %2192 = vmatprep.subr.mxu0 0.0
        %2193 = vmatpush1.xpose.msra.mxu0 %v2155
        %2194 = vmatprep.subr.mxu0 0.0
        %2195 = vmatpush1.xpose.msra.mxu0 %v2152
        %2196 = vmatprep.subr.mxu0 0.0
        %2197 = vmatpush1.xpose.msra.mxu0 %v2149
        %2198 = vmatprep.subr.mxu0 0.0
        %2199 = vmatpush1.xpose.msra.mxu0 %v2146
        %2200 = vmatprep.subr.mxu0 0.0
        %2201 = vmatpush1.xpose.msra.mxu0 %v2143
        %2202 = vmatprep.subr.mxu0 0.0
        %2203 = vmatpush1.xpose.msra.mxu0 %v2140
        %2204 = vmatprep.subr.mxu0 0.0
        %2205 = vmatpush1.xpose.msra.mxu0 %v2137
        %2206 = vmatprep.subr.mxu0 0.0
        %2207 = vmatpush1.xpose.msra.mxu0 %v2134
        %2208 = vmatprep.subr.mxu0 0.0
        %2209 = vmatpush1.xpose.msra.mxu0 %v2131
        %2210 = vmatprep.subr.mxu0 0.0
        %2211 = vmatpush2.xpose.msra.mxu0 0.0
        %2212 = vmatprep.subr.mxu0 0.0
        %2213 = vmatpush2.xpose.msra.mxu0 0.0
        %2214 = vmatprep.subr.mxu0 0.0
        %2215 = vmatpush2.xpose.msra.mxu0 0.0
        %2216 = vmatprep.subr.mxu0 0.0
        %2217 = vmatpush2.xpose.msra.mxu0 0.0
        %2218 = vmatprep.subr.mxu0 0.0
        %2219 = vmatpush2.xpose.msra.mxu0 0.0
        %2220 = vmatprep.subr.mxu0 0.0
        %2221 = vmatpush2.xpose.msra.mxu0 0.0
        %2222 = vmatprep.subr.mxu0 0.0
        %2223 = vmatpush2.xpose.msra.mxu0 0.0
        %2224 = vmatprep.subr.mxu0 0.0
        %2225 = vmatpush2.xpose.msra.mxu0 0.0
        %2226 = vmatprep.subr.mxu0 0.0
        %2227 = vmatpush2.xpose.msra.mxu0 0.0
        %2228 = vmatprep.subr.mxu0 0.0
        %2229 = vmatpush2.xpose.msra.mxu0 0.0
        %2230 = vmatprep.subr.mxu0 0.0
        %2231 = vmatpush2.xpose.msra.mxu0 0.0
        %2232 = vmatprep.subr.mxu0 0.0
        %2233 = vmatpush2.xpose.msra.mxu0 0.0
        %2234 = vmatprep.subr.mxu0 0.0
        %2235 = vmatpush2.xpose.msra.mxu0 0.0
        %2236 = vmatprep.subr.mxu0 0.0
        %2237 = vmatpush2.xpose.msra.mxu0 0.0
        %2238 = vmatprep.subr.mxu0 0.0
        %2239 = vmatpush2.xpose.msra.mxu0 0.0
        %2240 = vmatprep.subr.mxu0 0.0
        %2241 = vmatpush2.xpose.msra.mxu0 0.0
        %2242 = vmatprep.mubr.f32.mxu0 0.0
        %2243 = vmatmul.mubr.f32.gmra.mxu0 %v2107
        %v2244 = vpop.f32.mrf.mxu0
        %v2245 = vadd.f32 0.0, %v2244
        %v2246 = vpop.f32.mrf.mxu0
        %2247 = vmatprep.mubr.f32.mxu0 0.0
        %2248 = vmatmul.mubr.f32.gmra.mxu0 %v2110
        %v2249 = vpop.f32.mrf.mxu0
        %v2250 = vadd.f32 0.0, %v2249
        %v2251 = vpop.f32.mrf.mxu0
        %2252 = vmatprep.mubr.f32.mxu0 0.0
        %2253 = vmatmul.mubr.f32.gmra.mxu0 %v2113
        %v2254 = vpop.f32.mrf.mxu0
        %v2255 = vadd.f32 0.0, %v2254
        %v2256 = vpop.f32.mrf.mxu0
        %2257 = vmatprep.mubr.f32.mxu0 0.0
        %2258 = vmatmul.mubr.f32.gmra.mxu0 %v2116
        %v2259 = vpop.f32.mrf.mxu0
        %v2260 = vadd.f32 0.0, %v2259
        %v2261 = vpop.f32.mrf.mxu0
        %2262 = vmatprep.mubr.f32.mxu0 0.0
        %2263 = vmatmul.mubr.f32.gmra.mxu0 %v2119
        %v2264 = vpop.f32.mrf.mxu0
        %v2265 = vadd.f32 0.0, %v2264
        %v2266 = vpop.f32.mrf.mxu0
        %2267 = vmatprep.mubr.f32.mxu0 0.0
        %2268 = vmatmul.mubr.f32.gmra.mxu0 %v2122
        %v2269 = vpop.f32.mrf.mxu0
        %v2270 = vadd.f32 0.0, %v2269
        %v2271 = vpop.f32.mrf.mxu0
        %2272 = vmatprep.mubr.f32.mxu0 0.0
        %2273 = vmatmul.mubr.f32.gmra.mxu0 %v2125
        %v2274 = vpop.f32.mrf.mxu0
        %v2275 = vadd.f32 0.0, %v2274
        %v2276 = vpop.f32.mrf.mxu0
        %2277 = vmatprep.mubr.f32.mxu0 0.0
        %2278 = vmatmul.mubr.f32.gmra.mxu0 %v2128
        %v2279 = vpop.f32.mrf.mxu0
        %v2280 = vadd.f32 0.0, %v2279
        %v2281 = vpop.f32.mrf.mxu0
        %2282 = vdwg.mxu0
        %2283 = vmax.xlane.f32.xlu0 %v2245
        %v2284 = vpop.xlane.xlu0 %2283
        %2285 = vmax.xlane.f32.xlu0 %v2250
        %v2286 = vpop.xlane.xlu0 %2285
        %2287 = vmax.xlane.f32.xlu0 %v2255
        %v2288 = vpop.xlane.xlu0 %2287
        %2289 = vmax.xlane.f32.xlu0 %v2260
        %v2290 = vpop.xlane.xlu0 %2289
        %2291 = vmax.xlane.f32.xlu0 %v2265
        %v2292 = vpop.xlane.xlu0 %2291
        %2293 = vmax.xlane.f32.xlu0 %v2270
        %v2294 = vpop.xlane.xlu0 %2293
        %2295 = vmax.xlane.f32.xlu0 %v2275
        %v2296 = vpop.xlane.xlu0 %2295
        %2297 = vmax.xlane.f32.xlu0 %v2280
        %v2298 = vpop.xlane.xlu0 %2297
        %v2299 = vsub.f32 %v2245, %v2284
        %v2300 = vsub.f32 %v2250, %v2286
        %v2301 = vsub.f32 %v2255, %v2288
        %v2302 = vsub.f32 %v2260, %v2290
        %v2303 = vsub.f32 %v2265, %v2292
        %v2304 = vsub.f32 %v2270, %v2294
        %v2305 = vsub.f32 %v2275, %v2296
        %v2306 = vsub.f32 %v2280, %v2298
        %v2307 = vmul.f32 %v2299, 1.442695
        %v2308 = vpow.pop %v2307
        %v2309 = vmul.f32 %v2300, 1.442695
        %v2310 = vpow.pop %v2309
        %v2311 = vmul.f32 %v2301, 1.442695
        %v2312 = vpow.pop %v2311
        %v2313 = vmul.f32 %v2302, 1.442695
        %v2314 = vpow.pop %v2313
        %v2315 = vmul.f32 %v2303, 1.442695
        %v2316 = vpow.pop %v2315
        %v2317 = vmul.f32 %v2304, 1.442695
        %v2318 = vpow.pop %v2317
        %v2319 = vmul.f32 %v2305, 1.442695
        %v2320 = vpow.pop %v2319
        %v2321 = vmul.f32 %v2306, 1.442695
        %v2322 = vpow.pop %v2321
        %2323 = vadd.xlane.f32.xlu0 %v2308
        %v2324 = vpop.xlane.xlu0 %2323
        %2325 = vadd.xlane.f32.xlu0 %v2310
        %v2326 = vpop.xlane.xlu0 %2325
        %2327 = vadd.xlane.f32.xlu0 %v2312
        %v2328 = vpop.xlane.xlu0 %2327
        %2329 = vadd.xlane.f32.xlu0 %v2314
        %v2330 = vpop.xlane.xlu0 %2329
        %2331 = vadd.xlane.f32.xlu0 %v2316
        %v2332 = vpop.xlane.xlu0 %2331
        %2333 = vadd.xlane.f32.xlu0 %v2318
        %v2334 = vpop.xlane.xlu0 %2333
        %2335 = vadd.xlane.f32.xlu0 %v2320
        %v2336 = vpop.xlane.xlu0 %2335
        %2337 = vadd.xlane.f32.xlu0 %v2322
        %v2338 = vpop.xlane.xlu0 %2337
        %2339 = vmatprep.subr.mxu0 0.0
        %2340 = vmatpush1.msra.mxu0 %v1307
        %2341 = vmatprep.subr.mxu0 0.0
        %2342 = vmatpush1.msra.mxu0 %v1301
        %2343 = vmatprep.subr.mxu0 0.0
        %2344 = vmatpush1.msra.mxu0 %v1295
        %2345 = vmatprep.subr.mxu0 0.0
        %2346 = vmatpush1.msra.mxu0 %v1289
        %2347 = vmatprep.subr.mxu0 0.0
        %2348 = vmatpush1.msra.mxu0 %v1283
        %2349 = vmatprep.subr.mxu0 0.0
        %2350 = vmatpush1.msra.mxu0 %v1277
        %2351 = vmatprep.subr.mxu0 0.0
        %2352 = vmatpush1.msra.mxu0 %v1271
        %2353 = vmatprep.subr.mxu0 0.0
        %2354 = vmatpush1.msra.mxu0 %v1265
        %2355 = vmatprep.subr.mxu0 0.0
        %2356 = vmatpush1.msra.mxu0 %v1259
        %2357 = vmatprep.subr.mxu0 0.0
        %2358 = vmatpush1.msra.mxu0 %v1253
        %2359 = vmatprep.subr.mxu0 0.0
        %2360 = vmatpush1.msra.mxu0 %v1247
        %2361 = vmatprep.subr.mxu0 0.0
        %2362 = vmatpush1.msra.mxu0 %v1241
        %2363 = vmatprep.subr.mxu0 0.0
        %2364 = vmatpush1.msra.mxu0 %v1235
        %2365 = vmatprep.subr.mxu0 0.0
        %2366 = vmatpush1.msra.mxu0 %v1229
        %2367 = vmatprep.subr.mxu0 0.0
        %2368 = vmatpush1.msra.mxu0 %v1223
        %2369 = vmatprep.subr.mxu0 0.0
        %2370 = vmatpush1.msra.mxu0 %v1217
        %2371 = vmatprep.subr.mxu0 0.0
        %2372 = vmatpush2.msra.mxu0 0.0
        %2373 = vmatprep.subr.mxu0 0.0
        %2374 = vmatpush2.msra.mxu0 0.0
        %2375 = vmatprep.subr.mxu0 0.0
        %2376 = vmatpush2.msra.mxu0 0.0
        %2377 = vmatprep.subr.mxu0 0.0
        %2378 = vmatpush2.msra.mxu0 0.0
        %2379 = vmatprep.subr.mxu0 0.0
        %2380 = vmatpush2.msra.mxu0 0.0
        %2381 = vmatprep.subr.mxu0 0.0
        %2382 = vmatpush2.msra.mxu0 0.0
        %2383 = vmatprep.subr.mxu0 0.0
        %2384 = vmatpush2.msra.mxu0 0.0
        %2385 = vmatprep.subr.mxu0 0.0
        %2386 = vmatpush2.msra.mxu0 0.0
        %2387 = vmatprep.subr.mxu0 0.0
        %2388 = vmatpush2.msra.mxu0 0.0
        %2389 = vmatprep.subr.mxu0 0.0
        %2390 = vmatpush2.msra.mxu0 0.0
        %2391 = vmatprep.subr.mxu0 0.0
        %2392 = vmatpush2.msra.mxu0 0.0
        %2393 = vmatprep.subr.mxu0 0.0
        %2394 = vmatpush2.msra.mxu0 0.0
        %2395 = vmatprep.subr.mxu0 0.0
        %2396 = vmatpush2.msra.mxu0 0.0
        %2397 = vmatprep.subr.mxu0 0.0
        %2398 = vmatpush2.msra.mxu0 0.0
        %2399 = vmatprep.subr.mxu0 0.0
        %2400 = vmatpush2.msra.mxu0 0.0
        %2401 = vmatprep.subr.mxu0 0.0
        %2402 = vmatpush2.msra.mxu0 0.0
        %2403 = vmatprep.mubr.f32.mxu0 0.0
        %2404 = vmatmul.mubr.f32.gmra.mxu0 %v2308
        %v2405 = vpop.f32.mrf.mxu0
        %v2406 = vadd.f32 0.0, %v2405
        %v2407 = vpop.f32.mrf.mxu0
        %2408 = vmatprep.mubr.f32.mxu0 0.0
        %2409 = vmatmul.mubr.f32.gmra.mxu0 %v2310
        %v2410 = vpop.f32.mrf.mxu0
        %v2411 = vadd.f32 0.0, %v2410
        %v2412 = vpop.f32.mrf.mxu0
        %2413 = vmatprep.mubr.f32.mxu0 0.0
        %2414 = vmatmul.mubr.f32.gmra.mxu0 %v2312
        %v2415 = vpop.f32.mrf.mxu0
        %v2416 = vadd.f32 0.0, %v2415
        %v2417 = vpop.f32.mrf.mxu0
        %2418 = vmatprep.mubr.f32.mxu0 0.0
        %2419 = vmatmul.mubr.f32.gmra.mxu0 %v2314
        %v2420 = vpop.f32.mrf.mxu0
        %v2421 = vadd.f32 0.0, %v2420
        %v2422 = vpop.f32.mrf.mxu0
        %2423 = vmatprep.mubr.f32.mxu0 0.0
        %2424 = vmatmul.mubr.f32.gmra.mxu0 %v2316
        %v2425 = vpop.f32.mrf.mxu0
        %v2426 = vadd.f32 0.0, %v2425
        %v2427 = vpop.f32.mrf.mxu0
        %2428 = vmatprep.mubr.f32.mxu0 0.0
        %2429 = vmatmul.mubr.f32.gmra.mxu0 %v2318
        %v2430 = vpop.f32.mrf.mxu0
        %v2431 = vadd.f32 0.0, %v2430
        %v2432 = vpop.f32.mrf.mxu0
        %2433 = vmatprep.mubr.f32.mxu0 0.0
        %2434 = vmatmul.mubr.f32.gmra.mxu0 %v2320
        %v2435 = vpop.f32.mrf.mxu0
        %v2436 = vadd.f32 0.0, %v2435
        %v2437 = vpop.f32.mrf.mxu0
        %2438 = vmatprep.mubr.f32.mxu0 0.0
        %2439 = vmatmul.mubr.f32.gmra.mxu0 %v2322
        %v2440 = vpop.f32.mrf.mxu0
        %v2441 = vadd.f32 0.0, %v2440
        %v2442 = vpop.f32.mrf.mxu0
        %2443 = vdwg.mxu0
        %v2444 = vrcp.pop %v2324
        %v2445 = vrcp.pop %v2326
        %v2446 = vrcp.pop %v2328
        %v2447 = vrcp.pop %v2330
        %v2448 = vrcp.pop %v2332
        %v2449 = vrcp.pop %v2334
        %v2450 = vrcp.pop %v2336
        %v2451 = vrcp.pop %v2338
        %v2452 = vmul.f32 %v2406, %v2444
        %v2453 = vmul.f32 %v2411, %v2445
        %v2454 = vmul.f32 %v2416, %v2446
        %v2455 = vmul.f32 %v2421, %v2447
        %v2456 = vmul.f32 %v2426, %v2448
        %v2457 = vmul.f32 %v2431, %v2449
        %v2458 = vmul.f32 %v2436, %v2450
        %v2459 = vmul.f32 %v2441, %v2451
        %2460 = vrot.lane.b32.xlu0 %v879, 64
        %v2461 = vpop.permute.xlu0 %2460
        %2462 = vrot.lane.b32.xlu0 %v885, 64
        %v2463 = vpop.permute.xlu0 %2462
        %2464 = vrot.lane.b32.xlu0 %v891, 64
        %v2465 = vpop.permute.xlu0 %2464
        %2466 = vrot.lane.b32.xlu0 %v897, 64
        %v2467 = vpop.permute.xlu0 %2466
        %2468 = vrot.lane.b32.xlu0 %v903, 64
        %v2469 = vpop.permute.xlu0 %2468
        %2470 = vrot.lane.b32.xlu0 %v909, 64
        %v2471 = vpop.permute.xlu0 %2470
        %2472 = vrot.lane.b32.xlu0 %v915, 64
        %v2473 = vpop.permute.xlu0 %2472
        %2474 = vrot.lane.b32.xlu0 %v921, 64
        %v2475 = vpop.permute.xlu0 %2474
        %2476 = vrot.lane.b32.xlu0 %v1056, 64
        %v2477 = vpop.permute.xlu0 %2476
        %2478 = vrot.lane.b32.xlu0 %v1062, 64
        %v2479 = vpop.permute.xlu0 %2478
        %2480 = vrot.lane.b32.xlu0 %v1068, 64
        %v2481 = vpop.permute.xlu0 %2480
        %2482 = vrot.lane.b32.xlu0 %v1074, 64
        %v2483 = vpop.permute.xlu0 %2482
        %2484 = vrot.lane.b32.xlu0 %v1080, 64
        %v2485 = vpop.permute.xlu0 %2484
        %2486 = vrot.lane.b32.xlu0 %v1086, 64
        %v2487 = vpop.permute.xlu0 %2486
        %2488 = vrot.lane.b32.xlu0 %v1092, 64
        %v2489 = vpop.permute.xlu0 %2488
        %2490 = vrot.lane.b32.xlu0 %v1098, 64
        %v2491 = vpop.permute.xlu0 %2490
        %2492 = vrot.lane.b32.xlu0 %v1104, 64
        %v2493 = vpop.permute.xlu0 %2492
        %2494 = vrot.lane.b32.xlu0 %v1110, 64
        %v2495 = vpop.permute.xlu0 %2494
        %2496 = vrot.lane.b32.xlu0 %v1116, 64
        %v2497 = vpop.permute.xlu0 %2496
        %2498 = vrot.lane.b32.xlu0 %v1122, 64
        %v2499 = vpop.permute.xlu0 %2498
        %2500 = vrot.lane.b32.xlu0 %v1128, 64
        %v2501 = vpop.permute.xlu0 %2500
        %2502 = vrot.lane.b32.xlu0 %v1134, 64
        %v2503 = vpop.permute.xlu0 %2502
        %2504 = vrot.lane.b32.xlu0 %v1140, 64
        %v2505 = vpop.permute.xlu0 %2504
        %2506 = vrot.lane.b32.xlu0 %v1146, 64
        %v2507 = vpop.permute.xlu0 %2506
        %v2508 = vsel %vm1309, %v2461, 0
        %v2510 = vsel %vm1309, %v2463, 0
        %v2512 = vsel %vm1309, %v2465, 0
        %v2514 = vsel %vm1309, %v2467, 0
        %v2516 = vsel %vm1309, %v2469, 0
        %v2518 = vsel %vm1309, %v2471, 0
        %v2520 = vsel %vm1309, %v2473, 0
        %v2522 = vsel %vm1309, %v2475, 0
        %v2524 = vsel %vm1309, %v2477, 0
        %v2526 = vsel %vm1309, %v2479, 0
        %v2528 = vsel %vm1309, %v2481, 0
        %v2530 = vsel %vm1309, %v2483, 0
        %v2532 = vsel %vm1309, %v2485, 0
        %v2534 = vsel %vm1309, %v2487, 0
        %v2536 = vsel %vm1309, %v2489, 0
        %v2538 = vsel %vm1309, %v2491, 0
        %v2540 = vsel %vm1309, %v2493, 0
        %v2542 = vsel %vm1309, %v2495, 0
        %v2544 = vsel %vm1309, %v2497, 0
        %v2546 = vsel %vm1309, %v2499, 0
        %v2548 = vsel %vm1309, %v2501, 0
        %v2550 = vsel %vm1309, %v2503, 0
        %v2552 = vsel %vm1309, %v2505, 0
        %v2554 = vsel %vm1309, %v2507, 0
        %2556 = vmatprep.subr.mxu0 0.0
        %2557 = vmatpush1.xpose.msra.mxu0 %v2554
        %2558 = vmatprep.subr.mxu0 0.0
        %2559 = vmatpush1.xpose.msra.mxu0 %v2552
        %2560 = vmatprep.subr.mxu0 0.0
        %2561 = vmatpush1.xpose.msra.mxu0 %v2550
        %2562 = vmatprep.subr.mxu0 0.0
        %2563 = vmatpush1.xpose.msra.mxu0 %v2548
        %2564 = vmatprep.subr.mxu0 0.0
        %2565 = vmatpush1.xpose.msra.mxu0 %v2546
        %2566 = vmatprep.subr.mxu0 0.0
        %2567 = vmatpush1.xpose.msra.mxu0 %v2544
        %2568 = vmatprep.subr.mxu0 0.0
        %2569 = vmatpush1.xpose.msra.mxu0 %v2542
        %2570 = vmatprep.subr.mxu0 0.0
        %2571 = vmatpush1.xpose.msra.mxu0 %v2540
        %2572 = vmatprep.subr.mxu0 0.0
        %2573 = vmatpush1.xpose.msra.mxu0 %v2538
        %2574 = vmatprep.subr.mxu0 0.0
        %2575 = vmatpush1.xpose.msra.mxu0 %v2536
        %2576 = vmatprep.subr.mxu0 0.0
        %2577 = vmatpush1.xpose.msra.mxu0 %v2534
        %2578 = vmatprep.subr.mxu0 0.0
        %2579 = vmatpush1.xpose.msra.mxu0 %v2532
        %2580 = vmatprep.subr.mxu0 0.0
        %2581 = vmatpush1.xpose.msra.mxu0 %v2530
        %2582 = vmatprep.subr.mxu0 0.0
        %2583 = vmatpush1.xpose.msra.mxu0 %v2528
        %2584 = vmatprep.subr.mxu0 0.0
        %2585 = vmatpush1.xpose.msra.mxu0 %v2526
        %2586 = vmatprep.subr.mxu0 0.0
        %2587 = vmatpush1.xpose.msra.mxu0 %v2524
        %2588 = vmatprep.subr.mxu0 0.0
        %2589 = vmatpush2.xpose.msra.mxu0 0.0
        %2590 = vmatprep.subr.mxu0 0.0
        %2591 = vmatpush2.xpose.msra.mxu0 0.0
        %2592 = vmatprep.subr.mxu0 0.0
        %2593 = vmatpush2.xpose.msra.mxu0 0.0
        %2594 = vmatprep.subr.mxu0 0.0
        %2595 = vmatpush2.xpose.msra.mxu0 0.0
        %2596 = vmatprep.subr.mxu0 0.0
        %2597 = vmatpush2.xpose.msra.mxu0 0.0
        %2598 = vmatprep.subr.mxu0 0.0
        %2599 = vmatpush2.xpose.msra.mxu0 0.0
        %2600 = vmatprep.subr.mxu0 0.0
        %2601 = vmatpush2.xpose.msra.mxu0 0.0
        %2602 = vmatprep.subr.mxu0 0.0
        %2603 = vmatpush2.xpose.msra.mxu0 0.0
        %2604 = vmatprep.subr.mxu0 0.0
        %2605 = vmatpush2.xpose.msra.mxu0 0.0
        %2606 = vmatprep.subr.mxu0 0.0
        %2607 = vmatpush2.xpose.msra.mxu0 0.0
        %2608 = vmatprep.subr.mxu0 0.0
        %2609 = vmatpush2.xpose.msra.mxu0 0.0
        %2610 = vmatprep.subr.mxu0 0.0
        %2611 = vmatpush2.xpose.msra.mxu0 0.0
        %2612 = vmatprep.subr.mxu0 0.0
        %2613 = vmatpush2.xpose.msra.mxu0 0.0
        %2614 = vmatprep.subr.mxu0 0.0
        %2615 = vmatpush2.xpose.msra.mxu0 0.0
        %2616 = vmatprep.subr.mxu0 0.0
        %2617 = vmatpush2.xpose.msra.mxu0 0.0
        %2618 = vmatprep.subr.mxu0 0.0
        %2619 = vmatpush2.xpose.msra.mxu0 0.0
        %2620 = vmatprep.mubr.f32.mxu0 0.0
        %2621 = vmatmul.mubr.f32.gmra.mxu0 %v2508
        %v2622 = vpop.f32.mrf.mxu0
        %v2623 = vadd.f32 0.0, %v2622
        %v2624 = vpop.f32.mrf.mxu0
        %2625 = vmatprep.mubr.f32.mxu0 0.0
        %2626 = vmatmul.mubr.f32.gmra.mxu0 %v2510
        %v2627 = vpop.f32.mrf.mxu0
        %v2628 = vadd.f32 0.0, %v2627
        %v2629 = vpop.f32.mrf.mxu0
        %2630 = vmatprep.mubr.f32.mxu0 0.0
        %2631 = vmatmul.mubr.f32.gmra.mxu0 %v2512
        %v2632 = vpop.f32.mrf.mxu0
        %v2633 = vadd.f32 0.0, %v2632
        %v2634 = vpop.f32.mrf.mxu0
        %2635 = vmatprep.mubr.f32.mxu0 0.0
        %2636 = vmatmul.mubr.f32.gmra.mxu0 %v2514
        %v2637 = vpop.f32.mrf.mxu0
        %v2638 = vadd.f32 0.0, %v2637
        %v2639 = vpop.f32.mrf.mxu0
        %2640 = vmatprep.mubr.f32.mxu0 0.0
        %2641 = vmatmul.mubr.f32.gmra.mxu0 %v2516
        %v2642 = vpop.f32.mrf.mxu0
        %v2643 = vadd.f32 0.0, %v2642
        %v2644 = vpop.f32.mrf.mxu0
        %2645 = vmatprep.mubr.f32.mxu0 0.0
        %2646 = vmatmul.mubr.f32.gmra.mxu0 %v2518
        %v2647 = vpop.f32.mrf.mxu0
        %v2648 = vadd.f32 0.0, %v2647
        %v2649 = vpop.f32.mrf.mxu0
        %2650 = vmatprep.mubr.f32.mxu0 0.0
        %2651 = vmatmul.mubr.f32.gmra.mxu0 %v2520
        %v2652 = vpop.f32.mrf.mxu0
        %v2653 = vadd.f32 0.0, %v2652
        %v2654 = vpop.f32.mrf.mxu0
        %2655 = vmatprep.mubr.f32.mxu0 0.0
        %2656 = vmatmul.mubr.f32.gmra.mxu0 %v2522
        %v2657 = vpop.f32.mrf.mxu0
        %v2658 = vadd.f32 0.0, %v2657
        %v2659 = vpop.f32.mrf.mxu0
        %2660 = vdwg.mxu0
        %2661 = vmax.xlane.f32.xlu0 %v2623
        %v2662 = vpop.xlane.xlu0 %2661
        %2663 = vmax.xlane.f32.xlu0 %v2628
        %v2664 = vpop.xlane.xlu0 %2663
        %2665 = vmax.xlane.f32.xlu0 %v2633
        %v2666 = vpop.xlane.xlu0 %2665
        %2667 = vmax.xlane.f32.xlu0 %v2638
        %v2668 = vpop.xlane.xlu0 %2667
        %2669 = vmax.xlane.f32.xlu0 %v2643
        %v2670 = vpop.xlane.xlu0 %2669
        %2671 = vmax.xlane.f32.xlu0 %v2648
        %v2672 = vpop.xlane.xlu0 %2671
        %2673 = vmax.xlane.f32.xlu0 %v2653
        %v2674 = vpop.xlane.xlu0 %2673
        %2675 = vmax.xlane.f32.xlu0 %v2658
        %v2676 = vpop.xlane.xlu0 %2675
        %v2677 = vsub.f32 %v2623, %v2662
        %v2678 = vsub.f32 %v2628, %v2664
        %v2679 = vsub.f32 %v2633, %v2666
        %v2680 = vsub.f32 %v2638, %v2668
        %v2681 = vsub.f32 %v2643, %v2670
        %v2682 = vsub.f32 %v2648, %v2672
        %v2683 = vsub.f32 %v2653, %v2674
        %v2684 = vsub.f32 %v2658, %v2676
        %v2685 = vmul.f32 %v2677, 1.442695
        %v2686 = vpow.pop %v2685
        %v2687 = vmul.f32 %v2678, 1.442695
        %v2688 = vpow.pop %v2687
        %v2689 = vmul.f32 %v2679, 1.442695
        %v2690 = vpow.pop %v2689
        %v2691 = vmul.f32 %v2680, 1.442695
        %v2692 = vpow.pop %v2691
        %v2693 = vmul.f32 %v2681, 1.442695
        %v2694 = vpow.pop %v2693
        %v2695 = vmul.f32 %v2682, 1.442695
        %v2696 = vpow.pop %v2695
        %v2697 = vmul.f32 %v2683, 1.442695
        %v2698 = vpow.pop %v2697
        %v2699 = vmul.f32 %v2684, 1.442695
        %v2700 = vpow.pop %v2699
        %2701 = vadd.xlane.f32.xlu0 %v2686
        %v2702 = vpop.xlane.xlu0 %2701
        %2703 = vadd.xlane.f32.xlu0 %v2688
        %v2704 = vpop.xlane.xlu0 %2703
        %2705 = vadd.xlane.f32.xlu0 %v2690
        %v2706 = vpop.xlane.xlu0 %2705
        %2707 = vadd.xlane.f32.xlu0 %v2692
        %v2708 = vpop.xlane.xlu0 %2707
        %2709 = vadd.xlane.f32.xlu0 %v2694
        %v2710 = vpop.xlane.xlu0 %2709
        %2711 = vadd.xlane.f32.xlu0 %v2696
        %v2712 = vpop.xlane.xlu0 %2711
        %2713 = vadd.xlane.f32.xlu0 %v2698
        %v2714 = vpop.xlane.xlu0 %2713
        %2715 = vadd.xlane.f32.xlu0 %v2700
        %v2716 = vpop.xlane.xlu0 %2715
        %2733 = vrot.lane.b32.xlu0 %v1217, 64
        %v2734 = vpop.permute.xlu0 %2733
        %2735 = vrot.lane.b32.xlu0 %v1223, 64
        %v2736 = vpop.permute.xlu0 %2735
        %2737 = vrot.lane.b32.xlu0 %v1229, 64
        %v2738 = vpop.permute.xlu0 %2737
        %2739 = vrot.lane.b32.xlu0 %v1235, 64
        %v2740 = vpop.permute.xlu0 %2739
        %2741 = vrot.lane.b32.xlu0 %v1241, 64
        %v2742 = vpop.permute.xlu0 %2741
        %2743 = vrot.lane.b32.xlu0 %v1247, 64
        %v2744 = vpop.permute.xlu0 %2743
        %2745 = vrot.lane.b32.xlu0 %v1253, 64
        %v2746 = vpop.permute.xlu0 %2745
        %2747 = vrot.lane.b32.xlu0 %v1259, 64
        %v2748 = vpop.permute.xlu0 %2747
        %2749 = vrot.lane.b32.xlu0 %v1265, 64
        %v2750 = vpop.permute.xlu0 %2749
        %2751 = vrot.lane.b32.xlu0 %v1271, 64
        %v2752 = vpop.permute.xlu0 %2751
        %2753 = vrot.lane.b32.xlu0 %v1277, 64
        %v2754 = vpop.permute.xlu0 %2753
        %2755 = vrot.lane.b32.xlu0 %v1283, 64
        %v2756 = vpop.permute.xlu0 %2755
        %2757 = vrot.lane.b32.xlu0 %v1289, 64
        %v2758 = vpop.permute.xlu0 %2757
        %2759 = vrot.lane.b32.xlu0 %v1295, 64
        %v2760 = vpop.permute.xlu0 %2759
        %2761 = vrot.lane.b32.xlu0 %v1301, 64
        %v2762 = vpop.permute.xlu0 %2761
        %2763 = vrot.lane.b32.xlu0 %v1307, 64
        %v2764 = vpop.permute.xlu0 %2763
        %2781 = vmatprep.subr.mxu0 0.0
        %2782 = vmatpush1.msra.mxu0 %v2764
        %2783 = vmatprep.subr.mxu0 0.0
        %2784 = vmatpush1.msra.mxu0 %v2762
        %2785 = vmatprep.subr.mxu0 0.0
        %2786 = vmatpush1.msra.mxu0 %v2760
        %2787 = vmatprep.subr.mxu0 0.0
        %2788 = vmatpush1.msra.mxu0 %v2758
        %2789 = vmatprep.subr.mxu0 0.0
        %2790 = vmatpush1.msra.mxu0 %v2756
        %2791 = vmatprep.subr.mxu0 0.0
        %2792 = vmatpush1.msra.mxu0 %v2754
        %2793 = vmatprep.subr.mxu0 0.0
        %2794 = vmatpush1.msra.mxu0 %v2752
        %2795 = vmatprep.subr.mxu0 0.0
        %2796 = vmatpush1.msra.mxu0 %v2750
        %2797 = vmatprep.subr.mxu0 0.0
        %2798 = vmatpush1.msra.mxu0 %v2748
        %2799 = vmatprep.subr.mxu0 0.0
        %2800 = vmatpush1.msra.mxu0 %v2746
        %2801 = vmatprep.subr.mxu0 0.0
        %2802 = vmatpush1.msra.mxu0 %v2744
        %2803 = vmatprep.subr.mxu0 0.0
        %2804 = vmatpush1.msra.mxu0 %v2742
        %2805 = vmatprep.subr.mxu0 0.0
        %2806 = vmatpush1.msra.mxu0 %v2740
        %2807 = vmatprep.subr.mxu0 0.0
        %2808 = vmatpush1.msra.mxu0 %v2738
        %2809 = vmatprep.subr.mxu0 0.0
        %2810 = vmatpush1.msra.mxu0 %v2736
        %2811 = vmatprep.subr.mxu0 0.0
        %2812 = vmatpush1.msra.mxu0 %v2734
        %2813 = vmatprep.subr.mxu0 0.0
        %2814 = vmatpush2.msra.mxu0 0.0
        %2815 = vmatprep.subr.mxu0 0.0
        %2816 = vmatpush2.msra.mxu0 0.0
        %2817 = vmatprep.subr.mxu0 0.0
        %2818 = vmatpush2.msra.mxu0 0.0
        %2819 = vmatprep.subr.mxu0 0.0
        %2820 = vmatpush2.msra.mxu0 0.0
        %2821 = vmatprep.subr.mxu0 0.0
        %2822 = vmatpush2.msra.mxu0 0.0
        %2823 = vmatprep.subr.mxu0 0.0
        %2824 = vmatpush2.msra.mxu0 0.0
        %2825 = vmatprep.subr.mxu0 0.0
        %2826 = vmatpush2.msra.mxu0 0.0
        %2827 = vmatprep.subr.mxu0 0.0
        %2828 = vmatpush2.msra.mxu0 0.0
        %2829 = vmatprep.subr.mxu0 0.0
        %2830 = vmatpush2.msra.mxu0 0.0
        %2831 = vmatprep.subr.mxu0 0.0
        %2832 = vmatpush2.msra.mxu0 0.0
        %2833 = vmatprep.subr.mxu0 0.0
        %2834 = vmatpush2.msra.mxu0 0.0
        %2835 = vmatprep.subr.mxu0 0.0
        %2836 = vmatpush2.msra.mxu0 0.0
        %2837 = vmatprep.subr.mxu0 0.0
        %2838 = vmatpush2.msra.mxu0 0.0
        %2839 = vmatprep.subr.mxu0 0.0
        %2840 = vmatpush2.msra.mxu0 0.0
        %2841 = vmatprep.subr.mxu0 0.0
        %2842 = vmatpush2.msra.mxu0 0.0
        %2843 = vmatprep.subr.mxu0 0.0
        %2844 = vmatpush2.msra.mxu0 0.0
        %2845 = vmatprep.mubr.f32.mxu0 0.0
        %2846 = vmatmul.mubr.f32.gmra.mxu0 %v2686
        %v2847 = vpop.f32.mrf.mxu0
        %v2848 = vadd.f32 0.0, %v2847
        %v2849 = vpop.f32.mrf.mxu0
        %2850 = vmatprep.mubr.f32.mxu0 0.0
        %2851 = vmatmul.mubr.f32.gmra.mxu0 %v2688
        %v2852 = vpop.f32.mrf.mxu0
        %v2853 = vadd.f32 0.0, %v2852
        %v2854 = vpop.f32.mrf.mxu0
        %2855 = vmatprep.mubr.f32.mxu0 0.0
        %2856 = vmatmul.mubr.f32.gmra.mxu0 %v2690
        %v2857 = vpop.f32.mrf.mxu0
        %v2858 = vadd.f32 0.0, %v2857
        %v2859 = vpop.f32.mrf.mxu0
        %2860 = vmatprep.mubr.f32.mxu0 0.0
        %2861 = vmatmul.mubr.f32.gmra.mxu0 %v2692
        %v2862 = vpop.f32.mrf.mxu0
        %v2863 = vadd.f32 0.0, %v2862
        %v2864 = vpop.f32.mrf.mxu0
        %2865 = vmatprep.mubr.f32.mxu0 0.0
        %2866 = vmatmul.mubr.f32.gmra.mxu0 %v2694
        %v2867 = vpop.f32.mrf.mxu0
        %v2868 = vadd.f32 0.0, %v2867
        %v2869 = vpop.f32.mrf.mxu0
        %2870 = vmatprep.mubr.f32.mxu0 0.0
        %2871 = vmatmul.mubr.f32.gmra.mxu0 %v2696
        %v2872 = vpop.f32.mrf.mxu0
        %v2873 = vadd.f32 0.0, %v2872
        %v2874 = vpop.f32.mrf.mxu0
        %2875 = vmatprep.mubr.f32.mxu0 0.0
        %2876 = vmatmul.mubr.f32.gmra.mxu0 %v2698
        %v2877 = vpop.f32.mrf.mxu0
        %v2878 = vadd.f32 0.0, %v2877
        %v2879 = vpop.f32.mrf.mxu0
        %2880 = vmatprep.mubr.f32.mxu0 0.0
        %2881 = vmatmul.mubr.f32.gmra.mxu0 %v2700
        %v2882 = vpop.f32.mrf.mxu0
        %v2883 = vadd.f32 0.0, %v2882
        %v2884 = vpop.f32.mrf.mxu0
        %2885 = vdwg.mxu0
        %v2886 = vrcp.pop %v2702
        %v2887 = vrcp.pop %v2704
        %v2888 = vrcp.pop %v2706
        %v2889 = vrcp.pop %v2708
        %v2890 = vrcp.pop %v2710
        %v2891 = vrcp.pop %v2712
        %v2892 = vrcp.pop %v2714
        %v2893 = vrcp.pop %v2716
        %v2894 = vmul.f32 %v2848, %v2886
        %v2895 = vmul.f32 %v2853, %v2887
        %v2896 = vmul.f32 %v2858, %v2888
        %v2897 = vmul.f32 %v2863, %v2889
        %v2898 = vmul.f32 %v2868, %v2890
        %v2899 = vmul.f32 %v2873, %v2891
        %v2900 = vmul.f32 %v2878, %v2892
        %v2901 = vmul.f32 %v2883, %v2893
        %2910 = vrot.lane.b32.xlu0 %v2098, 64
        %v2911 = vpop.permute.xlu0 %2910
        %2912 = vrot.lane.b32.xlu0 %v2099, 64
        %v2913 = vpop.permute.xlu0 %2912
        %2914 = vrot.lane.b32.xlu0 %v2100, 64
        %v2915 = vpop.permute.xlu0 %2914
        %2916 = vrot.lane.b32.xlu0 %v2101, 64
        %v2917 = vpop.permute.xlu0 %2916
        %2918 = vrot.lane.b32.xlu0 %v2102, 64
        %v2919 = vpop.permute.xlu0 %2918
        %2920 = vrot.lane.b32.xlu0 %v2103, 64
        %v2921 = vpop.permute.xlu0 %2920
        %2922 = vrot.lane.b32.xlu0 %v2104, 64
        %v2923 = vpop.permute.xlu0 %2922
        %2924 = vrot.lane.b32.xlu0 %v2105, 64
        %v2925 = vpop.permute.xlu0 %2924
        %2942 = vrot.lane.b32.xlu0 %v2894, 64
        %v2943 = vpop.permute.xlu0 %2942
        %2944 = vrot.lane.b32.xlu0 %v2895, 64
        %v2945 = vpop.permute.xlu0 %2944
        %2946 = vrot.lane.b32.xlu0 %v2896, 64
        %v2947 = vpop.permute.xlu0 %2946
        %2948 = vrot.lane.b32.xlu0 %v2897, 64
        %v2949 = vpop.permute.xlu0 %2948
        %2950 = vrot.lane.b32.xlu0 %v2898, 64
        %v2951 = vpop.permute.xlu0 %2950
        %2952 = vrot.lane.b32.xlu0 %v2899, 64
        %v2953 = vpop.permute.xlu0 %2952
        %2954 = vrot.lane.b32.xlu0 %v2900, 64
        %v2955 = vpop.permute.xlu0 %2954
        %2956 = vrot.lane.b32.xlu0 %v2901, 64
        %v2957 = vpop.permute.xlu0 %2956
        %v2966 = vsel %vm1309, %v1656, %v2911
        %v2967 = vsel %vm1309, %v1657, %v2913
        %v2968 = vsel %vm1309, %v1658, %v2915
        %v2969 = vsel %vm1309, %v1659, %v2917
        %v2970 = vsel %vm1309, %v1660, %v2919
        %v2971 = vsel %vm1309, %v1661, %v2921
        %v2972 = vsel %vm1309, %v1662, %v2923
        %v2973 = vsel %vm1309, %v1663, %v2925
        %v2974 = vsel %vm1309, %v2452, %v2943
        %v2975 = vsel %vm1309, %v2453, %v2945
        %v2976 = vsel %vm1309, %v2454, %v2947
        %v2977 = vsel %vm1309, %v2455, %v2949
        %v2978 = vsel %vm1309, %v2456, %v2951
        %v2979 = vsel %vm1309, %v2457, %v2953
        %v2980 = vsel %vm1309, %v2458, %v2955
        %v2981 = vsel %vm1309, %v2459, %v2957
        %v2982 = vld [vmem:[#allocation10] sm:$0xff]
        %v2983 = vld [vmem:[#allocation10 + $0x8] sm:$0xff]
        %v2984 = vld [vmem:[#allocation10 + $0x10] sm:$0xff]
        %v2985 = vld [vmem:[#allocation10 + $0x18] sm:$0xff]
        %v2986 = vld [vmem:[#allocation10 + $0x20] sm:$0xff]
        %v2987 = vld [vmem:[#allocation10 + $0x28] sm:$0xff]
        %v2988 = vld [vmem:[#allocation10 + $0x30] sm:$0xff]
        %v2989 = vld [vmem:[#allocation10 + $0x38] sm:$0xff]
        %v2990 = vld [vmem:[#allocation10 + $0x40] sm:$0xff]
        %v2991 = vld [vmem:[#allocation10 + $0x48] sm:$0xff]
        %v2992 = vld [vmem:[#allocation10 + $0x50] sm:$0xff]
        %v2993 = vld [vmem:[#allocation10 + $0x58] sm:$0xff]
        %v2994 = vld [vmem:[#allocation10 + $0x60] sm:$0xff]
        %v2995 = vld [vmem:[#allocation10 + $0x68] sm:$0xff]
        %v2996 = vld [vmem:[#allocation10 + $0x70] sm:$0xff]
        %v2997 = vld [vmem:[#allocation10 + $0x78] sm:$0xff]
        %v2998 = vld [vmem:[#allocation10 + $0x80] sm:$0xff]
        %v2999 = vld [vmem:[#allocation10 + $0x88] sm:$0xff]
        %v3000 = vld [vmem:[#allocation10 + $0x90] sm:$0xff]
        %v3001 = vld [vmem:[#allocation10 + $0x98] sm:$0xff]
        %v3002 = vld [vmem:[#allocation10 + $0xa0] sm:$0xff]
        %v3003 = vld [vmem:[#allocation10 + $0xa8] sm:$0xff]
        %v3004 = vld [vmem:[#allocation10 + $0xb0] sm:$0xff]
        %v3005 = vld [vmem:[#allocation10 + $0xb8] sm:$0xff]
        %v3006 = vld [vmem:[#allocation10 + $0xc0] sm:$0xff]
        %v3007 = vld [vmem:[#allocation10 + $0xc8] sm:$0xff]
        %v3008 = vld [vmem:[#allocation10 + $0xd0] sm:$0xff]
        %v3009 = vld [vmem:[#allocation10 + $0xd8] sm:$0xff]
        %v3010 = vld [vmem:[#allocation10 + $0xe0] sm:$0xff]
        %v3011 = vld [vmem:[#allocation10 + $0xe8] sm:$0xff]
        %v3012 = vld [vmem:[#allocation10 + $0xf0] sm:$0xff]
        %v3013 = vld [vmem:[#allocation10 + $0xf8] sm:$0xff]
        %3014 = vmatprep.subr.mxu0 0.0
        %3015 = vmatpush1.msra.mxu0 %v2997
        %3016 = vmatprep.subr.mxu0 0.0
        %3017 = vmatpush1.msra.mxu0 %v2996
        %3018 = vmatprep.subr.mxu0 0.0
        %3019 = vmatpush1.msra.mxu0 %v2995
        %3020 = vmatprep.subr.mxu0 0.0
        %3021 = vmatpush1.msra.mxu0 %v2994
        %3022 = vmatprep.subr.mxu0 0.0
        %3023 = vmatpush1.msra.mxu0 %v2993
        %3024 = vmatprep.subr.mxu0 0.0
        %3025 = vmatpush1.msra.mxu0 %v2992
        %3026 = vmatprep.subr.mxu0 0.0
        %3027 = vmatpush1.msra.mxu0 %v2991
        %3028 = vmatprep.subr.mxu0 0.0
        %3029 = vmatpush1.msra.mxu0 %v2990
        %3030 = vmatprep.subr.mxu0 0.0
        %3031 = vmatpush1.msra.mxu0 %v2989
        %3032 = vmatprep.subr.mxu0 0.0
        %3033 = vmatpush1.msra.mxu0 %v2988
        %3034 = vmatprep.subr.mxu0 0.0
        %3035 = vmatpush1.msra.mxu0 %v2987
        %3036 = vmatprep.subr.mxu0 0.0
        %3037 = vmatpush1.msra.mxu0 %v2986
        %3038 = vmatprep.subr.mxu0 0.0
        %3039 = vmatpush1.msra.mxu0 %v2985
        %3040 = vmatprep.subr.mxu0 0.0
        %3041 = vmatpush1.msra.mxu0 %v2984
        %3042 = vmatprep.subr.mxu0 0.0
        %3043 = vmatpush1.msra.mxu0 %v2983
        %3044 = vmatprep.subr.mxu0 0.0
        %3045 = vmatpush1.msra.mxu0 %v2982
        %3046 = vmatprep.subr.mxu0 0.0
        %3047 = vmatpush2.msra.mxu0 %v3013
        %3048 = vmatprep.subr.mxu0 0.0
        %3049 = vmatpush2.msra.mxu0 %v3012
        %3050 = vmatprep.subr.mxu0 0.0
        %3051 = vmatpush2.msra.mxu0 %v3011
        %3052 = vmatprep.subr.mxu0 0.0
        %3053 = vmatpush2.msra.mxu0 %v3010
        %3054 = vmatprep.subr.mxu0 0.0
        %3055 = vmatpush2.msra.mxu0 %v3009
        %3056 = vmatprep.subr.mxu0 0.0
        %3057 = vmatpush2.msra.mxu0 %v3008
        %3058 = vmatprep.subr.mxu0 0.0
        %3059 = vmatpush2.msra.mxu0 %v3007
        %3060 = vmatprep.subr.mxu0 0.0
        %3061 = vmatpush2.msra.mxu0 %v3006
        %3062 = vmatprep.subr.mxu0 0.0
        %3063 = vmatpush2.msra.mxu0 %v3005
        %3064 = vmatprep.subr.mxu0 0.0
        %3065 = vmatpush2.msra.mxu0 %v3004
        %3066 = vmatprep.subr.mxu0 0.0
        %3067 = vmatpush2.msra.mxu0 %v3003
        %3068 = vmatprep.subr.mxu0 0.0
        %3069 = vmatpush2.msra.mxu0 %v3002
        %3070 = vmatprep.subr.mxu0 0.0
        %3071 = vmatpush2.msra.mxu0 %v3001
        %3072 = vmatprep.subr.mxu0 0.0
        %3073 = vmatpush2.msra.mxu0 %v3000
        %3074 = vmatprep.subr.mxu0 0.0
        %3075 = vmatpush2.msra.mxu0 %v2999
        %3076 = vmatprep.subr.mxu0 0.0
        %3077 = vmatpush2.msra.mxu0 %v2998
        %3078 = vmatprep.mubr.f32.mxu0 %v2974
        %3079 = vmatmul.mubr.f32.gmra.mxu0 %v2966
        %v3080 = vpop.f32.mrf.mxu0
        %v3081 = vadd.f32 0.0, %v3080
        %v3082 = vpop.f32.mrf.mxu0
        %3083 = vmatprep.mubr.f32.mxu0 %v2975
        %3084 = vmatmul.mubr.f32.gmra.mxu0 %v2967
        %v3085 = vpop.f32.mrf.mxu0
        %v3086 = vadd.f32 0.0, %v3085
        %v3087 = vpop.f32.mrf.mxu0
        %3088 = vmatprep.mubr.f32.mxu0 %v2976
        %3089 = vmatmul.mubr.f32.gmra.mxu0 %v2968
        %v3090 = vpop.f32.mrf.mxu0
        %v3091 = vadd.f32 0.0, %v3090
        %v3092 = vpop.f32.mrf.mxu0
        %3093 = vmatprep.mubr.f32.mxu0 %v2977
        %3094 = vmatmul.mubr.f32.gmra.mxu0 %v2969
        %v3095 = vpop.f32.mrf.mxu0
        %v3096 = vadd.f32 0.0, %v3095
        %v3097 = vpop.f32.mrf.mxu0
        %3098 = vmatprep.mubr.f32.mxu0 %v2978
        %3099 = vmatmul.mubr.f32.gmra.mxu0 %v2970
        %v3100 = vpop.f32.mrf.mxu0
        %v3101 = vadd.f32 0.0, %v3100
        %v3102 = vpop.f32.mrf.mxu0
        %3103 = vmatprep.mubr.f32.mxu0 %v2979
        %3104 = vmatmul.mubr.f32.gmra.mxu0 %v2971
        %v3105 = vpop.f32.mrf.mxu0
        %v3106 = vadd.f32 0.0, %v3105
        %v3107 = vpop.f32.mrf.mxu0
        %3108 = vmatprep.mubr.f32.mxu0 %v2980
        %3109 = vmatmul.mubr.f32.gmra.mxu0 %v2972
        %v3110 = vpop.f32.mrf.mxu0
        %v3111 = vadd.f32 0.0, %v3110
        %v3112 = vpop.f32.mrf.mxu0
        %3113 = vmatprep.mubr.f32.mxu0 %v2981
        %3114 = vmatmul.mubr.f32.gmra.mxu0 %v2973
        %v3115 = vpop.f32.mrf.mxu0
        %v3116 = vadd.f32 0.0, %v3115
        %v3117 = vpop.f32.mrf.mxu0
        %3118 = vdwg.mxu0
        %v3119 = vadd.f32 %v427, %v3081
        %v3120 = vadd.f32 %v428, %v3086
        %v3121 = vadd.f32 %v429, %v3091
        %v3122 = vadd.f32 %v430, %v3096
        %v3123 = vadd.f32 %v431, %v3101
        %v3124 = vadd.f32 %v432, %v3106
        %v3125 = vadd.f32 %v433, %v3111
        %v3126 = vadd.f32 %v434, %v3116
        %v3127 = vld [vmem:[%s7] sm:$0x1]
        %v3129 = vlaneseq
        %v3130 = vshrl.u32 %v3129, 7
        %v3131 = vsub.s32 0, %v3130
        %v3132 = vrot.slane %v3127, %v3131
        %v3134 = vadd.f32 %v3119, %v3132
        %v3135 = vadd.f32 %v3120, %v3132
        %v3136 = vadd.f32 %v3121, %v3132
        %v3137 = vadd.f32 %v3122, %v3132
        %v3138 = vadd.f32 %v3123, %v3132
        %v3139 = vadd.f32 %v3124, %v3132
        %v3140 = vadd.f32 %v3125, %v3132
        %v3141 = vadd.f32 %v3126, %v3132
        %3142 = vst [vmem:[%s424] sm:$0xff] %v3134
        %3143 = vst [vmem:[%s424 + $0x8] sm:$0xff] %v3135
        %3144 = vst [vmem:[%s424 + $0x10] sm:$0xff] %v3136
        %3145 = vst [vmem:[%s424 + $0x18] sm:$0xff] %v3137
        %3146 = vst [vmem:[%s424 + $0x20] sm:$0xff] %v3138
        %3147 = vst [vmem:[%s424 + $0x28] sm:$0xff] %v3139
        %3148 = vst [vmem:[%s424 + $0x30] sm:$0xff] %v3140
        %3149 = vst [vmem:[%s424 + $0x38] sm:$0xff] %v3141
        %s3150 = sand.u32 %s231, 1
        %s3151 = scalar_lea.sflag [#allocation4], %s3150
        %s3152 = sand.u32 %s231, 1
        %s3153 = smul.addr %s3152, 64
        %s3154 = scalar_lea.vmem [#allocation11], %s3153
        // Predicated region
        $region73: #{tpu_custom_call.1} parent=51 // pred_check
          %p3155 = pneg %p241
        $region74: #{tpu_custom_call.1} parent=51 // pred_check_branch
          %3157 = sbr.rel (%p3155) target = $region76
        $region75: #{tpu_custom_call.1} parent=51 // pred_region
          %s3158 = smul.u32 8, %s34
          %s3160 = ssub.s32 1024, 1024
          %3161 = vsyncadd %s3151, %s3160
          %s3162 = smul.addr %s33, 16
          %s3163 = sadd.s32 %s3158, %s3162
          %s3164 = smul.addr %s3163, 128
          %s3165 = scalar_lea.hbm %s8, %s3164
          %s3166 = sshll.u32 %s3154, 4
          %s3167 = int_to_ptr.vmem [resolvable:$true] %s3166
          %3172 = dma.vmem_to_hbm [thread:$0]  %s3167, 1024, %s3165, %s3151, 128, 128, 8
        $region76: #{tpu_custom_call.1} parent=51 // pred_fallthru
          _
      $region52: #{tpu_custom_call.1} parent=5 // pred_fallthru
        _
      %p3173 = scmp.le.s32.totalorder 2, %s24
      // Predicated region
      $region77: #{tpu_custom_call.1} parent=5 // pred_check
        %p3174 = pneg %p3173
      $region78: #{tpu_custom_call.1} parent=5 // pred_check_branch
        %3176 = sbr.rel (%p3174) target = $region80
      $region79: #{tpu_custom_call.1} parent=5 // pred_region
        %s3177 = ssub.s32 %s24, 2
        // Predicated region
        $region81: #{tpu_custom_call.1} parent=79 // pred_check
          %p3178 = pneg %p247
        $region82: #{tpu_custom_call.1} parent=79 // pred_check_branch
          %3180 = sbr.rel (%p3178) target = $region84
        $region83: #{tpu_custom_call.1} parent=79 // pred_region
          %s3181 = sand.u32 %s232, 1
          %s3182 = scalar_lea.sflag [#allocation4], %s3181
          %s3183 = sand.u32 %s232, 1
          %s3184 = smul.addr %s3183, 64
          %s3185 = scalar_lea.vmem [#allocation11], %s3184
          %3186 = dma.done %s3182, 1024
        $region84: #{tpu_custom_call.1} parent=79 // pred_fallthru
          _
      $region80: #{tpu_custom_call.1} parent=5 // pred_fallthru
        _
    $region6: #{tpu_custom_call.1} parent=1 // loop_footer
      %s28 = sadd.s32 1, %s24
    $region7: #{tpu_custom_call.1} parent=1 // loop_footer_branch
      %23 = sbr.rel target = $region3
    $region8: #{tpu_custom_call.1} parent=1 // loop_exit
      _
    %3187 = vsyncpa [#allocation3], 1
    %s3188 = scalar_lea.sflag [#allocation3], 1
    %3189 = vsyncpa %s3188, 1
    %3190 = vsyncpa [#allocation6], 1
    %s3191 = scalar_lea.sflag [#allocation6], 1
    %3192 = vsyncpa %s3191, 1
    %3193 = vsyncpa [#allocation9], 1
    %3194 = vsyncpa [#allocation4], 1
    %s3195 = scalar_lea.sflag [#allocation4], 1
    %3196 = vsyncpa %s3195, 1

</llo_original>
